<compile_context>
chip_gen: v7x
topology: tpu7x:2x2x1
jax: 0.10.0
libtpu: 0.0.40
codegen_flags: <defaults>
</compile_context>

<pallas_src>
import functools
import math

import jax
import jax.numpy as jnp
from jax.experimental import pallas as pl
from jax.experimental.pallas import tpu as pltpu


def _round_up(x, m):
    return (x + m - 1) // m * m


def _softplus(z):
    # numerically stable log1p(exp(z))  (== jax.nn.softplus / torch softplus)
    return jnp.maximum(z, 0.0) + jnp.log1p(jnp.exp(-jnp.abs(z)))


def _maybe_single_buffered(block_shape, index_map):
    """BlockSpec for inputs whose block index is grid-invariant (or changes only
    with the MC-sample axis): single-buffer them to halve VMEM footprint."""
    if hasattr(pl, "Buffered"):
        try:
            return pl.BlockSpec(block_shape, index_map, pipeline_mode=pl.Buffered(1))
        except (TypeError, ValueError):
            pass
    return pl.BlockSpec(block_shape, index_map)


def bnn_forward(x, params, eps, *, batch_tile=None, use_bf16_matmul=False,
                return_sampled_params=True):
    """Fused BNN forward.

    params: dict of W*_mu / W*_logsigma / b*_mu / b*_logsigma.
    eps:    dict w1/b1/w2/b2/w3/b3; each either single-sample (2-D weight / 1-D
            bias, like the PyTorch module) or with a leading MC-sample dim S.
    Returns (h, W1, W2, W3, b1, b2, b3) (stacked along S if eps has a sample
    dim), or just h when return_sampled_params=False.
    """
    f32 = jnp.float32
    x = jnp.asarray(x, f32)
    B, n_in = x.shape
    n_h1 = params["W1_mu"].shape[1]
    n_h2 = params["W2_mu"].shape[1]
    n_out = params["W3_mu"].shape[1]

    single = jnp.asarray(eps["w1"]).ndim == 2

    def eps_w(v):
        v = jnp.asarray(v, f32)
        return v[None] if single else v            # [S, fan_in, fan_out]

    def eps_b(v):
        v = jnp.asarray(v, f32)
        v = v[None] if single else v               # [S, fan_out]
        return v[:, None, :]                       # [S, 1, fan_out]

    ew1, ew2, ew3 = eps_w(eps["w1"]), eps_w(eps["w2"]), eps_w(eps["w3"])
    eb1, eb2, eb3 = eps_b(eps["b1"]), eps_b(eps["b2"]), eps_b(eps["b3"])
    S = ew1.shape[0]

    # ---- lane-dense padding (multiples of 128 on feature dims) ----
    n_in_p = _round_up(n_in, 128)
    n_h1_p = _round_up(n_h1, 128)
    n_h2_p = _round_up(n_h2, 128)
    n_out_p = _round_up(n_out, 128)
    TB = _round_up(batch_tile, 8) if batch_tile else min(256, _round_up(B, 8))
    B_p = _round_up(B, TB)

    def pad_w(a, r, c):                            # [R, C] -> [r, c]
        a = jnp.asarray(a, f32)
        return jnp.pad(a, ((0, r - a.shape[0]), (0, c - a.shape[1])))

    def pad_sw(a, r, c):                           # [S, R, C] -> [S, r, c]
        return jnp.pad(a, ((0, 0), (0, r - a.shape[1]), (0, c - a.shape[2])))

    def pad_b(a, c):                               # [C] -> [1, c]
        a = jnp.asarray(a, f32).reshape(1, -1)
        return jnp.pad(a, ((0, 0), (0, c - a.shape[1])))

    def pad_sb(a, c):                              # [S, 1, C] -> [S, 1, c]
        return jnp.pad(a, ((0, 0), (0, 0), (0, c - a.shape[2])))

    xp = jnp.pad(x, ((0, B_p - B), (0, n_in_p - n_in)))
    # 0/1 mask zeroing padded logit columns (multiplied into exp'd logits)
    maskp = (jnp.arange(n_out_p) < n_out).astype(f32).reshape(1, n_out_p)

    inputs = (
        xp, maskp,
        pad_w(params["W1_mu"], n_in_p, n_h1_p), pad_w(params["W1_logsigma"], n_in_p, n_h1_p),
        pad_sw(ew1, n_in_p, n_h1_p),
        pad_b(params["b1_mu"], n_h1_p), pad_b(params["b1_logsigma"], n_h1_p), pad_sb(eb1, n_h1_p),
        pad_w(params["W2_mu"], n_h1_p, n_h2_p), pad_w(params["W2_logsigma"], n_h1_p, n_h2_p),
        pad_sw(ew2, n_h1_p, n_h2_p),
        pad_b(params["b2_mu"], n_h2_p), pad_b(params["b2_logsigma"], n_h2_p), pad_sb(eb2, n_h2_p),
        pad_w(params["W3_mu"], n_h2_p, n_out_p), pad_w(params["W3_logsigma"], n_h2_p, n_out_p),
        pad_sw(ew3, n_h2_p, n_out_p),
        pad_b(params["b3_mu"], n_out_p), pad_b(params["b3_logsigma"], n_out_p), pad_sb(eb3, n_out_p),
    )

    # ---------------------------- kernel -----------------------------------
    def kernel(x_ref, mask_ref,
               w1mu, w1ls, ew1_r, b1mu, b1ls, eb1_r,
               w2mu, w2ls, ew2_r, b2mu, b2ls, eb2_r,
               w3mu, w3ls, ew3_r, b3mu, b3ls, eb3_r,
               *refs):
        if return_sampled_params:
            h_ref, W1o, W2o, W3o, b1o, b2o, b3o = refs[:7]
            W1s, W2s, W3s, b1s, b2s, b3s = refs[7:]
        else:
            h_ref = refs[0]
            W1s, W2s, W3s, b1s, b2s, b3s = refs[1:]

        bt = pl.program_id(1)   # batch-tile axis: must stay "arbitrary" (sequential)

        # ---- sample weights once per MC sample, into persistent VMEM scratch ----
        @pl.when(bt == 0)
        def _sample():
            W1s[...] = w1mu[...] + _softplus(w1ls[...]) * ew1_r[...]
            b1s[...] = b1mu[...] + _softplus(b1ls[...]) * eb1_r[...]
            W2s[...] = w2mu[...] + _softplus(w2ls[...]) * ew2_r[...]
            b2s[...] = b2mu[...] + _softplus(b2ls[...]) * eb2_r[...]
            W3s[...] = w3mu[...] + _softplus(w3ls[...]) * ew3_r[...]
            b3s[...] = b3mu[...] + _softplus(b3ls[...]) * eb3_r[...]
            if return_sampled_params:
                W1o[...] = W1s[...]; b1o[...] = b1s[...]
                W2o[...] = W2s[...]; b2o[...] = b2s[...]
                W3o[...] = W3s[...]; b3o[...] = b3s[...]

        def mm(a, w_ref):
            if use_bf16_matmul:
                return jnp.dot(a.astype(jnp.bfloat16),
                               w_ref[...].astype(jnp.bfloat16),
                               preferred_element_type=jnp.float32)
            return jnp.dot(a, w_ref[...], preferred_element_type=jnp.float32)

        xv = x_ref[...]
        a1 = jnp.maximum(mm(xv, W1s) + b1s[...], 0.0)
        a2 = jnp.maximum(mm(a1, W2s) + b2s[...], 0.0)
        # ReLU on the final logits before softmax: intentional, matches the module.
        z3 = jnp.maximum(mm(a2, W3s) + b3s[...], 0.0)

        # padded columns of z3 are exactly 0 (zero-padded W3/b3) -> they never
        # affect the row max; kill them after exp with the 0/1 mask.
        e = jnp.exp(z3 - jnp.max(z3, axis=1, keepdims=True)) * mask_ref[...]
        denom = jnp.sum(e, axis=1, keepdims=True)
        h_ref[...] = e / denom

    # ---------------------------- specs -------------------------------------
    def wspec(r, c):        # shared (no sample dim) weight params
        return _maybe_single_buffered((r, c), lambda s, b: (0, 0))

    def swspec(r, c):       # per-sample weight eps
        return _maybe_single_buffered((None, r, c), lambda s, b: (s, 0, 0))

    def bspec(c):           # shared bias params
        return _maybe_single_buffered((1, c), lambda s, b: (0, 0))

    def sbspec(c):          # per-sample bias eps
        return _maybe_single_buffered((None, 1, c), lambda s, b: (s, 0, 0))

    in_specs = [
        pl.BlockSpec((TB, n_in_p), lambda s, b: (b, 0)),
        _maybe_single_buffered((1, n_out_p), lambda s, b: (0, 0)),
        wspec(n_in_p, n_h1_p), wspec(n_in_p, n_h1_p), swspec(n_in_p, n_h1_p),
        bspec(n_h1_p), bspec(n_h1_p), sbspec(n_h1_p),
        wspec(n_h1_p, n_h2_p), wspec(n_h1_p, n_h2_p), swspec(n_h1_p, n_h2_p),
        bspec(n_h2_p), bspec(n_h2_p), sbspec(n_h2_p),
        wspec(n_h2_p, n_out_p), wspec(n_h2_p, n_out_p), swspec(n_h2_p, n_out_p),
        bspec(n_out_p), bspec(n_out_p), sbspec(n_out_p),
    ]

    out_shape = [jax.ShapeDtypeStruct((S, B_p, n_out_p), f32)]
    out_specs = [pl.BlockSpec((None, TB, n_out_p), lambda s, b: (s, b, 0))]
    if return_sampled_params:
        out_shape += [
            jax.ShapeDtypeStruct((S, n_in_p, n_h1_p), f32),
            jax.ShapeDtypeStruct((S, n_h1_p, n_h2_p), f32),
            jax.ShapeDtypeStruct((S, n_h2_p, n_out_p), f32),
            jax.ShapeDtypeStruct((S, 1, n_h1_p), f32),
            jax.ShapeDtypeStruct((S, 1, n_h2_p), f32),
            jax.ShapeDtypeStruct((S, 1, n_out_p), f32),
        ]
        out_specs += [
            pl.BlockSpec((None, n_in_p, n_h1_p), lambda s, b: (s, 0, 0)),
            pl.BlockSpec((None, n_h1_p, n_h2_p), lambda s, b: (s, 0, 0)),
            pl.BlockSpec((None, n_h2_p, n_out_p), lambda s, b: (s, 0, 0)),
            pl.BlockSpec((None, 1, n_h1_p), lambda s, b: (s, 0, 0)),
            pl.BlockSpec((None, 1, n_h2_p), lambda s, b: (s, 0, 0)),
            pl.BlockSpec((None, 1, n_out_p), lambda s, b: (s, 0, 0)),
        ]

    scratch_shapes = [
        pltpu.VMEM((n_in_p, n_h1_p), f32),
        pltpu.VMEM((n_h1_p, n_h2_p), f32),
        pltpu.VMEM((n_h2_p, n_out_p), f32),
        pltpu.VMEM((1, n_h1_p), f32),
        pltpu.VMEM((1, n_h2_p), f32),
        pltpu.VMEM((1, n_out_p), f32),
    ]

    grid = (S, B_p // TB)

    # ---- VMEM limit from actual block sizes (cap for v7x's 64 MiB physical) ----
    def _b(*dims):
        n = 1
        for d in dims:
            n *= d
        return 4 * n

    w_blk = _b(n_in_p, n_h1_p) + _b(n_h1_p, n_h2_p) + _b(n_h2_p, n_out_p)
    b_blk = _b(1, n_h1_p) + _b(1, n_h2_p) + _b(1, n_out_p)
    vmem_need = (2 * _b(TB, n_in_p)                      # x (double-buffered)
                 + 3 * (w_blk + b_blk)                   # mu / logsigma / eps (single-buffered)
                 + 2 * _b(TB, n_out_p)                   # h out (double-buffered)
                 + (w_blk + b_blk)                       # sampled-weight scratch
                 + _b(TB, n_h1_p) + _b(TB, n_h2_p) + _b(TB, n_out_p)   # live activations
                 + _b(1, n_out_p))                       # mask
    if return_sampled_params:
        vmem_need += 2 * (w_blk + b_blk)                 # W/b output blocks
    vmem_limit = int(min(max(2 * vmem_need, 16 * 1024 * 1024), 64 * 1024 * 1024))

    # ---- advisory cost estimate ----
    flops = 2 * S * B_p * (n_in_p * n_h1_p + n_h1_p * n_h2_p + n_h2_p * n_out_p)
    n_w = (n_in_p * n_h1_p + n_h1_p * n_h2_p + n_h2_p * n_out_p
           + n_h1_p + n_h2_p + n_out_p)
    transcendentals = S * (2 * n_w + B_p * n_out_p)
    bytes_accessed = 4 * (sum(int(a.size) for a in inputs)
                          + sum(int(math.prod(o.shape)) for o in out_shape))

    results = pl.pallas_call(
        kernel,
        out_shape=tuple(out_shape),
        grid_spec=pltpu.PrefetchScalarGridSpec(
            num_scalar_prefetch=0,
            grid=grid,
            in_specs=in_specs,
            out_specs=tuple(out_specs),
            scratch_shapes=scratch_shapes,
        ),
        compiler_params=pltpu.CompilerParams(
            # sample axis "parallel" (megacore); batch-tile axis MUST stay "arbitrary"
            dimension_semantics=("parallel", "arbitrary"),
            vmem_limit_bytes=vmem_limit,
        ),
        cost_estimate=pl.CostEstimate(
            flops=int(flops),
            transcendentals=int(transcendentals),
            bytes_accessed=int(bytes_accessed),
        ),
    )(*inputs)

    # ---- slice padding off ----
    h_p = results[0]
    h = h_p[:, :B, :n_out]
    if not return_sampled_params:
        return h[0] if single else h

    W1_p, W2_p, W3_p, b1_p, b2_p, b3_p = results[1:]
    W1 = W1_p[:, :n_in, :n_h1]
    W2 = W2_p[:, :n_h1, :n_h2]
    W3 = W3_p[:, :n_h2, :n_out]
    b1 = b1_p[:, 0, :n_h1]
    b2 = b2_p[:, 0, :n_h2]
    b3 = b3_p[:, 0, :n_out]
    if single:
        h, W1, W2, W3, b1, b2, b3 = (a[0] for a in (h, W1, W2, W3, b1, b2, b3))
    return h, W1, W2, W3, b1, b2, b3


def init_params(key, n_input, n_h1, n_h2, n_out):
    ks = jax.random.split(key, 6)
    f32 = jnp.float32
    return {
        "W1_mu": (jax.random.normal(ks[0], (n_input, n_h1)) * 0.1).astype(f32),
        "W1_logsigma": (jax.random.normal(ks[1], (n_input, n_h1)) * 0.1).astype(f32),
        "b1_mu": jnp.zeros((n_h1,), f32),
        "b1_logsigma": jnp.zeros((n_h1,), f32),
        "W2_mu": (jax.random.normal(ks[2], (n_h1, n_h2)) * 0.1).astype(f32),
        "W2_logsigma": (jax.random.normal(ks[3], (n_h1, n_h2)) * 0.1).astype(f32),
        "b2_mu": jnp.zeros((n_h2,), f32),
        "b2_logsigma": jnp.zeros((n_h2,), f32),
        "W3_mu": (jax.random.normal(ks[4], (n_h2, n_out)) * 0.1).astype(f32),
        "W3_logsigma": (jax.random.normal(ks[5], (n_h2, n_out)) * 0.1).astype(f32),
        "b3_mu": jnp.zeros((n_out,), f32),
        "b3_logsigma": jnp.zeros((n_out,), f32),
    }


def sample_epsilons(key, epsilon_prior, n_samples, n_input, n_h1, n_h2, n_out):
    # get_random(shape, avg=0, std=epsilon_prior) == randn(shape) * epsilon_prior
    ks = jax.random.split(key, 6)
    f32 = jnp.float32
    S = n_samples
    return {
        "w1": (jax.random.normal(ks[0], (S, n_input, n_h1)) * epsilon_prior).astype(f32),
        "b1": (jax.random.normal(ks[1], (S, n_h1)) * epsilon_prior).astype(f32),
        "w2": (jax.random.normal(ks[2], (S, n_h1, n_h2)) * epsilon_prior).astype(f32),
        "b2": (jax.random.normal(ks[3], (S, n_h2)) * epsilon_prior).astype(f32),
        "w3": (jax.random.normal(ks[4], (S, n_h2, n_out)) * epsilon_prior).astype(f32),
        "b3": (jax.random.normal(ks[5], (S, n_out)) * epsilon_prior).astype(f32),
    }


if __name__ == "__main__":
    # small, MLP-consistent shapes; 2 MC samples keeps both v7x cores busy
    batch, n_input, n_h1, n_h2, n_out = 48, 32, 64, 64, 16
    n_samples = 2
    epsilon_prior = 0.1   # modest prior keeps logits O(1) -> tight numeric check

    root = jax.random.PRNGKey(0)
    k_params, k_eps, k_x = jax.random.split(root, 3)

    params = init_params(k_params, n_input, n_h1, n_h2, n_out)
    eps = sample_epsilons(k_eps, epsilon_prior, n_samples, n_input, n_h1, n_h2, n_out)
    x = jax.random.normal(k_x, (batch, n_input), dtype=jnp.float32)

    # (a) default tiling: whole padded batch in one tile (perf-recommended path)
    h_a, W1, W2, W3, b1, b2, b3 = bnn_forward(x, params, eps)
    # (b) multi batch-tile path: exercises weight-scratch reuse across batch tiles
    h_b, *_ = bnn_forward(x, params, eps, batch_tile=16)
    # (c) bf16-matmul fast path, predictive probabilities only
    h_c = bnn_forward(x, params, eps, use_bf16_matmul=True, return_sampled_params=False)
    jax.block_until_ready((h_a, h_b, h_c, W1, W2, W3, b1, b2, b3))

    assert h_a.shape == (n_samples, batch, n_out)
    assert h_b.shape == (n_samples, batch, n_out)
    assert h_c.shape == (n_samples, batch, n_out)

    # single-sample (module-shaped eps) path
    eps0 = {k: v[0] for k, v in eps.items()}
    h_single, *_ = bnn_forward(x, params, eps0)
    jax.block_until_ready(h_single)
    assert h_single.shape == (batch, n_out)
    assert jnp.allclose(h_single, h_a[0], atol=1e-5)

    # ---- pure-JAX reference per sample ----
    sp = jax.nn.softplus
    for s in range(n_samples):
        W1_r = params["W1_mu"] + sp(params["W1_logsigma"]) * eps["w1"][s]
        b1_r = params["b1_mu"] + sp(params["b1_logsigma"]) * eps["b1"][s]
        W2_r = params["W2_mu"] + sp(params["W2_logsigma"]) * eps["w2"][s]
        b2_r = params["b2_mu"] + sp(params["b2_logsigma"]) * eps["b2"][s]
        W3_r = params["W3_mu"] + sp(params["W3_logsigma"]) * eps["w3"][s]
        b3_r = params["b3_mu"] + sp(params["b3_logsigma"]) * eps["b3"][s]
        a1 = jnp.maximum(x @ W1_r + b1_r, 0.0)
        a2 = jnp.maximum(a1 @ W2_r + b2_r, 0.0)
        h_r = jax.nn.softmax(jnp.maximum(a2 @ W3_r + b3_r, 0.0), axis=1)

        assert jnp.allclose(W1[s], W1_r, atol=1e-5) and jnp.allclose(b1[s], b1_r, atol=1e-5)
        assert jnp.allclose(W2[s], W2_r, atol=1e-5) and jnp.allclose(b2[s], b2_r, atol=1e-5)
        assert jnp.allclose(W3[s], W3_r, atol=1e-5) and jnp.allclose(b3[s], b3_r, atol=1e-5)
        # f32 kernel vs reference (tolerance absorbs MXU default-precision differences)
        assert jnp.allclose(h_a[s], h_r, atol=1e-2)
        assert jnp.allclose(h_b[s], h_r, atol=1e-2)
        # bf16-matmul variant: looser
        assert jnp.allclose(h_c[s], h_r, atol=3e-2)
        # exact-divide softmax: rows sum to 1 tightly
        assert jnp.allclose(jnp.sum(h_a[s], axis=1), 1.0, atol=1e-3)
        assert jnp.allclose(jnp.sum(h_b[s], axis=1), 1.0, atol=1e-3)

    print("KERNEL_OK")
</pallas_src>

<mosaic_0001>
module attributes {stable_mosaic.version = 11 : i64} {
  func.func @kernel(%arg0: i32, %arg1: i32, %arg2: memref<48x128xf32, #tpu.memory_space<vmem>>, %arg3: memref<1x128xf32, #tpu.memory_space<vmem>>, %arg4: memref<128x128xf32, #tpu.memory_space<vmem>>, %arg5: memref<128x128xf32, #tpu.memory_space<vmem>>, %arg6: memref<1x128x128xf32, #tpu.memory_space<vmem>>, %arg7: memref<1x128xf32, #tpu.memory_space<vmem>>, %arg8: memref<1x128xf32, #tpu.memory_space<vmem>>, %arg9: memref<1x1x128xf32, #tpu.memory_space<vmem>>, %arg10: memref<128x128xf32, #tpu.memory_space<vmem>>, %arg11: memref<128x128xf32, #tpu.memory_space<vmem>>, %arg12: memref<1x128x128xf32, #tpu.memory_space<vmem>>, %arg13: memref<1x128xf32, #tpu.memory_space<vmem>>, %arg14: memref<1x128xf32, #tpu.memory_space<vmem>>, %arg15: memref<1x1x128xf32, #tpu.memory_space<vmem>>, %arg16: memref<128x128xf32, #tpu.memory_space<vmem>>, %arg17: memref<128x128xf32, #tpu.memory_space<vmem>>, %arg18: memref<1x128x128xf32, #tpu.memory_space<vmem>>, %arg19: memref<1x128xf32, #tpu.memory_space<vmem>>, %arg20: memref<1x128xf32, #tpu.memory_space<vmem>>, %arg21: memref<1x1x128xf32, #tpu.memory_space<vmem>>, %arg22: memref<1x48x128xf32, #tpu.memory_space<vmem>>, %arg23: memref<1x128x128xf32, #tpu.memory_space<vmem>>, %arg24: memref<1x128x128xf32, #tpu.memory_space<vmem>>, %arg25: memref<1x128x128xf32, #tpu.memory_space<vmem>>, %arg26: memref<1x1x128xf32, #tpu.memory_space<vmem>>, %arg27: memref<1x1x128xf32, #tpu.memory_space<vmem>>, %arg28: memref<1x1x128xf32, #tpu.memory_space<vmem>>, %arg29: memref<128x128xf32, #tpu.memory_space<vmem>>, %arg30: memref<128x128xf32, #tpu.memory_space<vmem>>, %arg31: memref<128x128xf32, #tpu.memory_space<vmem>>, %arg32: memref<1x128xf32, #tpu.memory_space<vmem>>, %arg33: memref<1x128xf32, #tpu.memory_space<vmem>>, %arg34: memref<1x128xf32, #tpu.memory_space<vmem>>) attributes {dimension_semantics = [#tpu.dimension_semantics<parallel>, #tpu.dimension_semantics<arbitrary>], iteration_bounds = array<i64: 2, 1>, scalar_prefetch = 0 : i64, scratch_operands = 6 : i64, tpu.core_type = #tpu.core_type<tc>, window_params = [{transform_indices = @transform_0, window_bounds = array<i64: 48, 128>}, {pipeline_mode = #tpu.pipeline_mode<synchronous>, transform_indices = @transform_1, window_bounds = array<i64: 1, 128>}, {pipeline_mode = #tpu.pipeline_mode<synchronous>, transform_indices = @transform_2, window_bounds = array<i64: 128, 128>}, {pipeline_mode = #tpu.pipeline_mode<synchronous>, transform_indices = @transform_3, window_bounds = array<i64: 128, 128>}, {pipeline_mode = #tpu.pipeline_mode<synchronous>, transform_indices = @transform_4, window_bounds = array<i64: 1, 128, 128>}, {pipeline_mode = #tpu.pipeline_mode<synchronous>, transform_indices = @transform_5, window_bounds = array<i64: 1, 128>}, {pipeline_mode = #tpu.pipeline_mode<synchronous>, transform_indices = @transform_6, window_bounds = array<i64: 1, 128>}, {pipeline_mode = #tpu.pipeline_mode<synchronous>, transform_indices = @transform_7, window_bounds = array<i64: 1, 1, 128>}, {pipeline_mode = #tpu.pipeline_mode<synchronous>, transform_indices = @transform_8, window_bounds = array<i64: 128, 128>}, {pipeline_mode = #tpu.pipeline_mode<synchronous>, transform_indices = @transform_9, window_bounds = array<i64: 128, 128>}, {pipeline_mode = #tpu.pipeline_mode<synchronous>, transform_indices = @transform_10, window_bounds = array<i64: 1, 128, 128>}, {pipeline_mode = #tpu.pipeline_mode<synchronous>, transform_indices = @transform_11, window_bounds = array<i64: 1, 128>}, {pipeline_mode = #tpu.pipeline_mode<synchronous>, transform_indices = @transform_12, window_bounds = array<i64: 1, 128>}, {pipeline_mode = #tpu.pipeline_mode<synchronous>, transform_indices = @transform_13, window_bounds = array<i64: 1, 1, 128>}, {pipeline_mode = #tpu.pipeline_mode<synchronous>, transform_indices = @transform_14, window_bounds = array<i64: 128, 128>}, {pipeline_mode = #tpu.pipeline_mode<synchronous>, transform_indices = @transform_15, window_bounds = array<i64: 128, 128>}, {pipeline_mode = #tpu.pipeline_mode<synchronous>, transform_indices = @transform_16, window_bounds = array<i64: 1, 128, 128>}, {pipeline_mode = #tpu.pipeline_mode<synchronous>, transform_indices = @transform_17, window_bounds = array<i64: 1, 128>}, {pipeline_mode = #tpu.pipeline_mode<synchronous>, transform_indices = @transform_18, window_bounds = array<i64: 1, 128>}, {pipeline_mode = #tpu.pipeline_mode<synchronous>, transform_indices = @transform_19, window_bounds = array<i64: 1, 1, 128>}, {transform_indices = @transform_20, window_bounds = array<i64: 1, 48, 128>}, {transform_indices = @transform_21, window_bounds = array<i64: 1, 128, 128>}, {transform_indices = @transform_22, window_bounds = array<i64: 1, 128, 128>}, {transform_indices = @transform_23, window_bounds = array<i64: 1, 128, 128>}, {transform_indices = @transform_24, window_bounds = array<i64: 1, 1, 128>}, {transform_indices = @transform_25, window_bounds = array<i64: 1, 1, 128>}, {transform_indices = @transform_26, window_bounds = array<i64: 1, 1, 128>}]} {
    %c0_i32 = arith.constant 0 : i32
    %0 = arith.cmpi eq, %arg1, %c0_i32 : i32
    %1 = arith.extui %0 : i1 to i32
    %c0_i32_0 = arith.constant 0 : i32
    %2 = arith.cmpi ne, %1, %c0_i32_0 : i32
    scf.if %2 {
      %c0_26 = arith.constant 0 : index
      %c0_27 = arith.constant 0 : index
      %40 = vector.load %arg4[%c0_26, %c0_27] : memref<128x128xf32, #tpu.memory_space<vmem>>, vector<128x128xf32>
      %c0_28 = arith.constant 0 : index
      %c0_29 = arith.constant 0 : index
      %41 = vector.load %arg5[%c0_28, %c0_29] : memref<128x128xf32, #tpu.memory_space<vmem>>, vector<128x128xf32>
      %cst_30 = arith.constant 0.000000e+00 : f32
      %42 = vector.broadcast %cst_30 : f32 to vector<128x128xf32>
      %43 = arith.maximumf %41, %42 : vector<128x128xf32>
      %44 = math.absf %41 : vector<128x128xf32>
      %cst_31 = arith.constant 0.000000e+00 : f32
      %45 = vector.broadcast %cst_31 : f32 to vector<128x128xf32>
      %46 = arith.subf %45, %44 : vector<128x128xf32>
      %47 = math.exp %46 : vector<128x128xf32>
      %48 = math.log1p %47 : vector<128x128xf32>
      %49 = arith.addf %43, %48 : vector<128x128xf32>
      %c0_32 = arith.constant 0 : index
      %c0_33 = arith.constant 0 : index
      %c0_34 = arith.constant 0 : index
      %50 = vector.load %arg6[%c0_32, %c0_33, %c0_34] : memref<1x128x128xf32, #tpu.memory_space<vmem>>, vector<1x128x128xf32>
      %51 = vector.shape_cast %50 : vector<1x128x128xf32> to vector<128x128xf32>
      %52 = arith.mulf %49, %51 : vector<128x128xf32>
      %53 = arith.addf %40, %52 : vector<128x128xf32>
      %c0_35 = arith.constant 0 : index
      %c0_36 = arith.constant 0 : index
      %54 = vector.load %arg29[%c0_35, %c0_36] : memref<128x128xf32, #tpu.memory_space<vmem>>, vector<128x128xf32>
      tpu.vector_store %arg29[%c0_35, %c0_36], %53 {strides = array<i32>} : memref<128x128xf32, #tpu.memory_space<vmem>>, vector<128x128xf32>,
      %c0_37 = arith.constant 0 : index
      %c0_38 = arith.constant 0 : index
      %55 = vector.load %arg7[%c0_37, %c0_38] : memref<1x128xf32, #tpu.memory_space<vmem>>, vector<1x128xf32>
      %c0_39 = arith.constant 0 : index
      %c0_40 = arith.constant 0 : index
      %56 = vector.load %arg8[%c0_39, %c0_40] : memref<1x128xf32, #tpu.memory_space<vmem>>, vector<1x128xf32>
      %cst_41 = arith.constant 0.000000e+00 : f32
      %57 = vector.broadcast %cst_41 : f32 to vector<1x128xf32>
      %58 = arith.maximumf %56, %57 : vector<1x128xf32>
      %59 = math.absf %56 : vector<1x128xf32>
      %cst_42 = arith.constant 0.000000e+00 : f32
      %60 = vector.broadcast %cst_42 : f32 to vector<1x128xf32>
      %61 = arith.subf %60, %59 : vector<1x128xf32>
      %62 = math.exp %61 : vector<1x128xf32>
      %63 = math.log1p %62 : vector<1x128xf32>
      %64 = arith.addf %58, %63 : vector<1x128xf32>
      %c0_43 = arith.constant 0 : index
      %c0_44 = arith.constant 0 : index
      %c0_45 = arith.constant 0 : index
      %65 = vector.load %arg9[%c0_43, %c0_44, %c0_45] : memref<1x1x128xf32, #tpu.memory_space<vmem>>, vector<1x1x128xf32>
      %66 = vector.shape_cast %65 : vector<1x1x128xf32> to vector<1x128xf32>
      %67 = arith.mulf %64, %66 : vector<1x128xf32>
      %68 = arith.addf %55, %67 : vector<1x128xf32>
      %c0_46 = arith.constant 0 : index
      %c0_47 = arith.constant 0 : index
      %69 = vector.load %arg32[%c0_46, %c0_47] : memref<1x128xf32, #tpu.memory_space<vmem>>, vector<1x128xf32>
      tpu.vector_store %arg32[%c0_46, %c0_47], %68 {strides = array<i32>} : memref<1x128xf32, #tpu.memory_space<vmem>>, vector<1x128xf32>,
      %c0_48 = arith.constant 0 : index
      %c0_49 = arith.constant 0 : index
      %70 = vector.load %arg10[%c0_48, %c0_49] : memref<128x128xf32, #tpu.memory_space<vmem>>, vector<128x128xf32>
      %c0_50 = arith.constant 0 : index
      %c0_51 = arith.constant 0 : index
      %71 = vector.load %arg11[%c0_50, %c0_51] : memref<128x128xf32, #tpu.memory_space<vmem>>, vector<128x128xf32>
      %cst_52 = arith.constant 0.000000e+00 : f32
      %72 = vector.broadcast %cst_52 : f32 to vector<128x128xf32>
      %73 = arith.maximumf %71, %72 : vector<128x128xf32>
      %74 = math.absf %71 : vector<128x128xf32>
      %cst_53 = arith.constant 0.000000e+00 : f32
      %75 = vector.broadcast %cst_53 : f32 to vector<128x128xf32>
      %76 = arith.subf %75, %74 : vector<128x128xf32>
      %77 = math.exp %76 : vector<128x128xf32>
      %78 = math.log1p %77 : vector<128x128xf32>
      %79 = arith.addf %73, %78 : vector<128x128xf32>
      %c0_54 = arith.constant 0 : index
      %c0_55 = arith.constant 0 : index
      %c0_56 = arith.constant 0 : index
      %80 = vector.load %arg12[%c0_54, %c0_55, %c0_56] : memref<1x128x128xf32, #tpu.memory_space<vmem>>, vector<1x128x128xf32>
      %81 = vector.shape_cast %80 : vector<1x128x128xf32> to vector<128x128xf32>
      %82 = arith.mulf %79, %81 : vector<128x128xf32>
      %83 = arith.addf %70, %82 : vector<128x128xf32>
      %c0_57 = arith.constant 0 : index
      %c0_58 = arith.constant 0 : index
      %84 = vector.load %arg30[%c0_57, %c0_58] : memref<128x128xf32, #tpu.memory_space<vmem>>, vector<128x128xf32>
      tpu.vector_store %arg30[%c0_57, %c0_58], %83 {strides = array<i32>} : memref<128x128xf32, #tpu.memory_space<vmem>>, vector<128x128xf32>,
      %c0_59 = arith.constant 0 : index
      %c0_60 = arith.constant 0 : index
      %85 = vector.load %arg13[%c0_59, %c0_60] : memref<1x128xf32, #tpu.memory_space<vmem>>, vector<1x128xf32>
      %c0_61 = arith.constant 0 : index
      %c0_62 = arith.constant 0 : index
      %86 = vector.load %arg14[%c0_61, %c0_62] : memref<1x128xf32, #tpu.memory_space<vmem>>, vector<1x128xf32>
      %cst_63 = arith.constant 0.000000e+00 : f32
      %87 = vector.broadcast %cst_63 : f32 to vector<1x128xf32>
      %88 = arith.maximumf %86, %87 : vector<1x128xf32>
      %89 = math.absf %86 : vector<1x128xf32>
      %cst_64 = arith.constant 0.000000e+00 : f32
      %90 = vector.broadcast %cst_64 : f32 to vector<1x128xf32>
      %91 = arith.subf %90, %89 : vector<1x128xf32>
      %92 = math.exp %91 : vector<1x128xf32>
      %93 = math.log1p %92 : vector<1x128xf32>
      %94 = arith.addf %88, %93 : vector<1x128xf32>
      %c0_65 = arith.constant 0 : index
      %c0_66 = arith.constant 0 : index
      %c0_67 = arith.constant 0 : index
      %95 = vector.load %arg15[%c0_65, %c0_66, %c0_67] : memref<1x1x128xf32, #tpu.memory_space<vmem>>, vector<1x1x128xf32>
      %96 = vector.shape_cast %95 : vector<1x1x128xf32> to vector<1x128xf32>
      %97 = arith.mulf %94, %96 : vector<1x128xf32>
      %98 = arith.addf %85, %97 : vector<1x128xf32>
      %c0_68 = arith.constant 0 : index
      %c0_69 = arith.constant 0 : index
      %99 = vector.load %arg33[%c0_68, %c0_69] : memref<1x128xf32, #tpu.memory_space<vmem>>, vector<1x128xf32>
      tpu.vector_store %arg33[%c0_68, %c0_69], %98 {strides = array<i32>} : memref<1x128xf32, #tpu.memory_space<vmem>>, vector<1x128xf32>,
      %c0_70 = arith.constant 0 : index
      %c0_71 = arith.constant 0 : index
      %100 = vector.load %arg16[%c0_70, %c0_71] : memref<128x128xf32, #tpu.memory_space<vmem>>, vector<128x128xf32>
      %c0_72 = arith.constant 0 : index
      %c0_73 = arith.constant 0 : index
      %101 = vector.load %arg17[%c0_72, %c0_73] : memref<128x128xf32, #tpu.memory_space<vmem>>, vector<128x128xf32>
      %cst_74 = arith.constant 0.000000e+00 : f32
      %102 = vector.broadcast %cst_74 : f32 to vector<128x128xf32>
      %103 = arith.maximumf %101, %102 : vector<128x128xf32>
      %104 = math.absf %101 : vector<128x128xf32>
      %cst_75 = arith.constant 0.000000e+00 : f32
      %105 = vector.broadcast %cst_75 : f32 to vector<128x128xf32>
      %106 = arith.subf %105, %104 : vector<128x128xf32>
      %107 = math.exp %106 : vector<128x128xf32>
      %108 = math.log1p %107 : vector<128x128xf32>
      %109 = arith.addf %103, %108 : vector<128x128xf32>
      %c0_76 = arith.constant 0 : index
      %c0_77 = arith.constant 0 : index
      %c0_78 = arith.constant 0 : index
      %110 = vector.load %arg18[%c0_76, %c0_77, %c0_78] : memref<1x128x128xf32, #tpu.memory_space<vmem>>, vector<1x128x128xf32>
      %111 = vector.shape_cast %110 : vector<1x128x128xf32> to vector<128x128xf32>
      %112 = arith.mulf %109, %111 : vector<128x128xf32>
      %113 = arith.addf %100, %112 : vector<128x128xf32>
      %c0_79 = arith.constant 0 : index
      %c0_80 = arith.constant 0 : index
      %114 = vector.load %arg31[%c0_79, %c0_80] : memref<128x128xf32, #tpu.memory_space<vmem>>, vector<128x128xf32>
      tpu.vector_store %arg31[%c0_79, %c0_80], %113 {strides = array<i32>} : memref<128x128xf32, #tpu.memory_space<vmem>>, vector<128x128xf32>,
      %c0_81 = arith.constant 0 : index
      %c0_82 = arith.constant 0 : index
      %115 = vector.load %arg19[%c0_81, %c0_82] : memref<1x128xf32, #tpu.memory_space<vmem>>, vector<1x128xf32>
      %c0_83 = arith.constant 0 : index
      %c0_84 = arith.constant 0 : index
      %116 = vector.load %arg20[%c0_83, %c0_84] : memref<1x128xf32, #tpu.memory_space<vmem>>, vector<1x128xf32>
      %cst_85 = arith.constant 0.000000e+00 : f32
      %117 = vector.broadcast %cst_85 : f32 to vector<1x128xf32>
      %118 = arith.maximumf %116, %117 : vector<1x128xf32>
      %119 = math.absf %116 : vector<1x128xf32>
      %cst_86 = arith.constant 0.000000e+00 : f32
      %120 = vector.broadcast %cst_86 : f32 to vector<1x128xf32>
      %121 = arith.subf %120, %119 : vector<1x128xf32>
      %122 = math.exp %121 : vector<1x128xf32>
      %123 = math.log1p %122 : vector<1x128xf32>
      %124 = arith.addf %118, %123 : vector<1x128xf32>
      %c0_87 = arith.constant 0 : index
      %c0_88 = arith.constant 0 : index
      %c0_89 = arith.constant 0 : index
      %125 = vector.load %arg21[%c0_87, %c0_88, %c0_89] : memref<1x1x128xf32, #tpu.memory_space<vmem>>, vector<1x1x128xf32>
      %126 = vector.shape_cast %125 : vector<1x1x128xf32> to vector<1x128xf32>
      %127 = arith.mulf %124, %126 : vector<1x128xf32>
      %128 = arith.addf %115, %127 : vector<1x128xf32>
      %c0_90 = arith.constant 0 : index
      %c0_91 = arith.constant 0 : index
      %129 = vector.load %arg34[%c0_90, %c0_91] : memref<1x128xf32, #tpu.memory_space<vmem>>, vector<1x128xf32>
      tpu.vector_store %arg34[%c0_90, %c0_91], %128 {strides = array<i32>} : memref<1x128xf32, #tpu.memory_space<vmem>>, vector<1x128xf32>,
      %c0_92 = arith.constant 0 : index
      %c0_93 = arith.constant 0 : index
      %130 = vector.load %arg29[%c0_92, %c0_93] : memref<128x128xf32, #tpu.memory_space<vmem>>, vector<128x128xf32>
      %c0_94 = arith.constant 0 : index
      %c0_95 = arith.constant 0 : index
      %c0_96 = arith.constant 0 : index
      %131 = vector.load %arg23[%c0_94, %c0_95, %c0_96] : memref<1x128x128xf32, #tpu.memory_space<vmem>>, vector<1x128x128xf32>
      %132 = vector.shape_cast %131 : vector<1x128x128xf32> to vector<128x128xf32>
      %133 = vector.shape_cast %130 : vector<128x128xf32> to vector<1x128x128xf32>
      tpu.vector_store %arg23[%c0_94, %c0_95, %c0_96], %133 {strides = array<i32>} : memref<1x128x128xf32, #tpu.memory_space<vmem>>, vector<1x128x128xf32>,
      %c0_97 = arith.constant 0 : index
      %c0_98 = arith.constant 0 : index
      %134 = vector.load %arg32[%c0_97, %c0_98] : memref<1x128xf32, #tpu.memory_space<vmem>>, vector<1x128xf32>
      %c0_99 = arith.constant 0 : index
      %c0_100 = arith.constant 0 : index
      %c0_101 = arith.constant 0 : index
      %135 = vector.load %arg26[%c0_99, %c0_100, %c0_101] : memref<1x1x128xf32, #tpu.memory_space<vmem>>, vector<1x1x128xf32>
      %136 = vector.shape_cast %135 : vector<1x1x128xf32> to vector<1x128xf32>
      %137 = vector.shape_cast %134 : vector<1x128xf32> to vector<1x1x128xf32>
      tpu.vector_store %arg26[%c0_99, %c0_100, %c0_101], %137 {strides = array<i32>} : memref<1x1x128xf32, #tpu.memory_space<vmem>>, vector<1x1x128xf32>,
      %c0_102 = arith.constant 0 : index
      %c0_103 = arith.constant 0 : index
      %138 = vector.load %arg30[%c0_102, %c0_103] : memref<128x128xf32, #tpu.memory_space<vmem>>, vector<128x128xf32>
      %c0_104 = arith.constant 0 : index
      %c0_105 = arith.constant 0 : index
      %c0_106 = arith.constant 0 : index
      %139 = vector.load %arg24[%c0_104, %c0_105, %c0_106] : memref<1x128x128xf32, #tpu.memory_space<vmem>>, vector<1x128x128xf32>
      %140 = vector.shape_cast %139 : vector<1x128x128xf32> to vector<128x128xf32>
      %141 = vector.shape_cast %138 : vector<128x128xf32> to vector<1x128x128xf32>
      tpu.vector_store %arg24[%c0_104, %c0_105, %c0_106], %141 {strides = array<i32>} : memref<1x128x128xf32, #tpu.memory_space<vmem>>, vector<1x128x128xf32>,
      %c0_107 = arith.constant 0 : index
      %c0_108 = arith.constant 0 : index
      %142 = vector.load %arg33[%c0_107, %c0_108] : memref<1x128xf32, #tpu.memory_space<vmem>>, vector<1x128xf32>
      %c0_109 = arith.constant 0 : index
      %c0_110 = arith.constant 0 : index
      %c0_111 = arith.constant 0 : index
      %143 = vector.load %arg27[%c0_109, %c0_110, %c0_111] : memref<1x1x128xf32, #tpu.memory_space<vmem>>, vector<1x1x128xf32>
      %144 = vector.shape_cast %143 : vector<1x1x128xf32> to vector<1x128xf32>
      %145 = vector.shape_cast %142 : vector<1x128xf32> to vector<1x1x128xf32>
      tpu.vector_store %arg27[%c0_109, %c0_110, %c0_111], %145 {strides = array<i32>} : memref<1x1x128xf32, #tpu.memory_space<vmem>>, vector<1x1x128xf32>,
      %c0_112 = arith.constant 0 : index
      %c0_113 = arith.constant 0 : index
      %146 = vector.load %arg31[%c0_112, %c0_113] : memref<128x128xf32, #tpu.memory_space<vmem>>, vector<128x128xf32>
      %c0_114 = arith.constant 0 : index
      %c0_115 = arith.constant 0 : index
      %c0_116 = arith.constant 0 : index
      %147 = vector.load %arg25[%c0_114, %c0_115, %c0_116] : memref<1x128x128xf32, #tpu.memory_space<vmem>>, vector<1x128x128xf32>
      %148 = vector.shape_cast %147 : vector<1x128x128xf32> to vector<128x128xf32>
      %149 = vector.shape_cast %146 : vector<128x128xf32> to vector<1x128x128xf32>
      tpu.vector_store %arg25[%c0_114, %c0_115, %c0_116], %149 {strides = array<i32>} : memref<1x128x128xf32, #tpu.memory_space<vmem>>, vector<1x128x128xf32>,
      %c0_117 = arith.constant 0 : index
      %c0_118 = arith.constant 0 : index
      %150 = vector.load %arg34[%c0_117, %c0_118] : memref<1x128xf32, #tpu.memory_space<vmem>>, vector<1x128xf32>
      %c0_119 = arith.constant 0 : index
      %c0_120 = arith.constant 0 : index
      %c0_121 = arith.constant 0 : index
      %151 = vector.load %arg28[%c0_119, %c0_120, %c0_121] : memref<1x1x128xf32, #tpu.memory_space<vmem>>, vector<1x1x128xf32>
      %152 = vector.shape_cast %151 : vector<1x1x128xf32> to vector<1x128xf32>
      %153 = vector.shape_cast %150 : vector<1x128xf32> to vector<1x1x128xf32>
      tpu.vector_store %arg28[%c0_119, %c0_120, %c0_121], %153 {strides = array<i32>} : memref<1x1x128xf32, #tpu.memory_space<vmem>>, vector<1x1x128xf32>,
    } else {
    }
    %c0 = arith.constant 0 : index
    %c0_1 = arith.constant 0 : index
    %3 = vector.load %arg2[%c0, %c0_1] : memref<48x128xf32, #tpu.memory_space<vmem>>, vector<48x128xf32>
    %c0_2 = arith.constant 0 : index
    %c0_3 = arith.constant 0 : index
    %4 = vector.load %arg29[%c0_2, %c0_3] : memref<128x128xf32, #tpu.memory_space<vmem>>, vector<128x128xf32>
    %cst = arith.constant dense<0.000000e+00> : vector<48x128xf32>
    %5 = tpu.matmul %3, %4, %cst {dimension_numbers = #tpu.dot_dimension_numbers<[1], [0], [0], [1], [0, 0, 1, 1], [], []>} : vector<48x128xf32>, vector<128x128xf32>, vector<48x128xf32> -> vector<48x128xf32>
    %c0_4 = arith.constant 0 : index
    %c0_5 = arith.constant 0 : index
    %6 = vector.load %arg32[%c0_4, %c0_5] : memref<1x128xf32, #tpu.memory_space<vmem>>, vector<1x128xf32>
    %7 = vector.broadcast %6 : vector<1x128xf32> to vector<48x128xf32>
    %8 = arith.addf %5, %7 : vector<48x128xf32>
    %cst_6 = arith.constant 0.000000e+00 : f32
    %9 = vector.broadcast %cst_6 : f32 to vector<48x128xf32>
    %10 = arith.maximumf %8, %9 : vector<48x128xf32>
    %c0_7 = arith.constant 0 : index
    %c0_8 = arith.constant 0 : index
    %11 = vector.load %arg30[%c0_7, %c0_8] : memref<128x128xf32, #tpu.memory_space<vmem>>, vector<128x128xf32>
    %cst_9 = arith.constant dense<0.000000e+00> : vector<48x128xf32>
    %12 = tpu.matmul %10, %11, %cst_9 {dimension_numbers = #tpu.dot_dimension_numbers<[1], [0], [0], [1], [0, 0, 1, 1], [], []>} : vector<48x128xf32>, vector<128x128xf32>, vector<48x128xf32> -> vector<48x128xf32>
    %c0_10 = arith.constant 0 : index
    %c0_11 = arith.constant 0 : index
    %13 = vector.load %arg33[%c0_10, %c0_11] : memref<1x128xf32, #tpu.memory_space<vmem>>, vector<1x128xf32>
    %14 = vector.broadcast %13 : vector<1x128xf32> to vector<48x128xf32>
    %15 = arith.addf %12, %14 : vector<48x128xf32>
    %cst_12 = arith.constant 0.000000e+00 : f32
    %16 = vector.broadcast %cst_12 : f32 to vector<48x128xf32>
    %17 = arith.maximumf %15, %16 : vector<48x128xf32>
    %c0_13 = arith.constant 0 : index
    %c0_14 = arith.constant 0 : index
    %18 = vector.load %arg31[%c0_13, %c0_14] : memref<128x128xf32, #tpu.memory_space<vmem>>, vector<128x128xf32>
    %cst_15 = arith.constant dense<0.000000e+00> : vector<48x128xf32>
    %19 = tpu.matmul %17, %18, %cst_15 {dimension_numbers = #tpu.dot_dimension_numbers<[1], [0], [0], [1], [0, 0, 1, 1], [], []>} : vector<48x128xf32>, vector<128x128xf32>, vector<48x128xf32> -> vector<48x128xf32>
    %c0_16 = arith.constant 0 : index
    %c0_17 = arith.constant 0 : index
    %20 = vector.load %arg34[%c0_16, %c0_17] : memref<1x128xf32, #tpu.memory_space<vmem>>, vector<1x128xf32>
    %21 = vector.broadcast %20 : vector<1x128xf32> to vector<48x128xf32>
    %22 = arith.addf %19, %21 : vector<48x128xf32>
    %cst_18 = arith.constant 0.000000e+00 : f32
    %23 = vector.broadcast %cst_18 : f32 to vector<48x128xf32>
    %24 = arith.maximumf %22, %23 : vector<48x128xf32>
    %cst_19 = arith.constant dense<0xFF800000> : vector<48xf32>
    %25 = vector.multi_reduction <maximumf>, %24, %cst_19 [1] : vector<48x128xf32> to vector<48xf32>
    %26 = vector.shape_cast %25 : vector<48xf32> to vector<48x1xf32>
    %27 = vector.broadcast %26 : vector<48x1xf32> to vector<48x128xf32>
    %28 = arith.subf %24, %27 : vector<48x128xf32>
    %29 = math.exp %28 : vector<48x128xf32>
    %c0_20 = arith.constant 0 : index
    %c0_21 = arith.constant 0 : index
    %30 = vector.load %arg3[%c0_20, %c0_21] : memref<1x128xf32, #tpu.memory_space<vmem>>, vector<1x128xf32>
    %31 = vector.broadcast %30 : vector<1x128xf32> to vector<48x128xf32>
    %32 = arith.mulf %29, %31 : vector<48x128xf32>
    %cst_22 = arith.constant dense<0.000000e+00> : vector<48xf32>
    %33 = vector.multi_reduction <add>, %32, %cst_22 [1] : vector<48x128xf32> to vector<48xf32>
    %34 = vector.shape_cast %33 : vector<48xf32> to vector<48x1xf32>
    %35 = vector.broadcast %34 : vector<48x1xf32> to vector<48x128xf32>
    %36 = arith.divf %32, %35 : vector<48x128xf32>
    %c0_23 = arith.constant 0 : index
    %c0_24 = arith.constant 0 : index
    %c0_25 = arith.constant 0 : index
    %37 = vector.load %arg22[%c0_23, %c0_24, %c0_25] : memref<1x48x128xf32, #tpu.memory_space<vmem>>, vector<1x48x128xf32>
    %38 = vector.shape_cast %37 : vector<1x48x128xf32> to vector<48x128xf32>
    %39 = vector.shape_cast %36 : vector<48x128xf32> to vector<1x48x128xf32>
    tpu.vector_store %arg22[%c0_23, %c0_24, %c0_25], %39 {strides = array<i32>} : memref<1x48x128xf32, #tpu.memory_space<vmem>>, vector<1x48x128xf32>,
    return
  }
  func.func @transform_0(%arg0: i32, %arg1: i32) -> (i32, i32) {
    %c0_i32 = arith.constant 0 : i32
    %c0_i32_0 = arith.constant 0 : i32
    return %arg1, %c0_i32 : i32, i32
  }
  func.func @transform_1(%arg0: i32, %arg1: i32) -> (i32, i32) {
    %c0_i32 = arith.constant 0 : i32
    %c0_i32_0 = arith.constant 0 : i32
    %c0_i32_1 = arith.constant 0 : i32
    return %c0_i32, %c0_i32_0 : i32, i32
  }
  func.func @transform_2(%arg0: i32, %arg1: i32) -> (i32, i32) {
    %c0_i32 = arith.constant 0 : i32
    %c0_i32_0 = arith.constant 0 : i32
    %c0_i32_1 = arith.constant 0 : i32
    return %c0_i32, %c0_i32_0 : i32, i32
  }
  func.func @transform_3(%arg0: i32, %arg1: i32) -> (i32, i32) {
    %c0_i32 = arith.constant 0 : i32
    %c0_i32_0 = arith.constant 0 : i32
    %c0_i32_1 = arith.constant 0 : i32
    return %c0_i32, %c0_i32_0 : i32, i32
  }
  func.func @transform_4(%arg0: i32, %arg1: i32) -> (i32, i32, i32) {
    %c0_i32 = arith.constant 0 : i32
    %c0_i32_0 = arith.constant 0 : i32
    %c0_i32_1 = arith.constant 0 : i32
    return %arg0, %c0_i32, %c0_i32_0 : i32, i32, i32
  }
  func.func @transform_5(%arg0: i32, %arg1: i32) -> (i32, i32) {
    %c0_i32 = arith.constant 0 : i32
    %c0_i32_0 = arith.constant 0 : i32
    %c0_i32_1 = arith.constant 0 : i32
    return %c0_i32, %c0_i32_0 : i32, i32
  }
  func.func @transform_6(%arg0: i32, %arg1: i32) -> (i32, i32) {
    %c0_i32 = arith.constant 0 : i32
    %c0_i32_0 = arith.constant 0 : i32
    %c0_i32_1 = arith.constant 0 : i32
    return %c0_i32, %c0_i32_0 : i32, i32
  }
  func.func @transform_7(%arg0: i32, %arg1: i32) -> (i32, i32, i32) {
    %c0_i32 = arith.constant 0 : i32
    %c0_i32_0 = arith.constant 0 : i32
    %c0_i32_1 = arith.constant 0 : i32
    return %arg0, %c0_i32, %c0_i32_0 : i32, i32, i32
  }
  func.func @transform_8(%arg0: i32, %arg1: i32) -> (i32, i32) {
    %c0_i32 = arith.constant 0 : i32
    %c0_i32_0 = arith.constant 0 : i32
    %c0_i32_1 = arith.constant 0 : i32
    return %c0_i32, %c0_i32_0 : i32, i32
  }
  func.func @transform_9(%arg0: i32, %arg1: i32) -> (i32, i32) {
    %c0_i32 = arith.constant 0 : i32
    %c0_i32_0 = arith.constant 0 : i32
    %c0_i32_1 = arith.constant 0 : i32
    return %c0_i32, %c0_i32_0 : i32, i32
  }
  func.func @transform_10(%arg0: i32, %arg1: i32) -> (i32, i32, i32) {
    %c0_i32 = arith.constant 0 : i32
    %c0_i32_0 = arith.constant 0 : i32
    %c0_i32_1 = arith.constant 0 : i32
    return %arg0, %c0_i32, %c0_i32_0 : i32, i32, i32
  }
  func.func @transform_11(%arg0: i32, %arg1: i32) -> (i32, i32) {
    %c0_i32 = arith.constant 0 : i32
    %c0_i32_0 = arith.constant 0 : i32
    %c0_i32_1 = arith.constant 0 : i32
    return %c0_i32, %c0_i32_0 : i32, i32
  }
  func.func @transform_12(%arg0: i32, %arg1: i32) -> (i32, i32) {
    %c0_i32 = arith.constant 0 : i32
    %c0_i32_0 = arith.constant 0 : i32
    %c0_i32_1 = arith.constant 0 : i32
    return %c0_i32, %c0_i32_0 : i32, i32
  }
  func.func @transform_13(%arg0: i32, %arg1: i32) -> (i32, i32, i32) {
    %c0_i32 = arith.constant 0 : i32
    %c0_i32_0 = arith.constant 0 : i32
    %c0_i32_1 = arith.constant 0 : i32
    return %arg0, %c0_i32, %c0_i32_0 : i32, i32, i32
  }
  func.func @transform_14(%arg0: i32, %arg1: i32) -> (i32, i32) {
    %c0_i32 = arith.constant 0 : i32
    %c0_i32_0 = arith.constant 0 : i32
    %c0_i32_1 = arith.constant 0 : i32
    return %c0_i32, %c0_i32_0 : i32, i32
  }
  func.func @transform_15(%arg0: i32, %arg1: i32) -> (i32, i32) {
    %c0_i32 = arith.constant 0 : i32
    %c0_i32_0 = arith.constant 0 : i32
    %c0_i32_1 = arith.constant 0 : i32
    return %c0_i32, %c0_i32_0 : i32, i32
  }
  func.func @transform_16(%arg0: i32, %arg1: i32) -> (i32, i32, i32) {
    %c0_i32 = arith.constant 0 : i32
    %c0_i32_0 = arith.constant 0 : i32
    %c0_i32_1 = arith.constant 0 : i32
    return %arg0, %c0_i32, %c0_i32_0 : i32, i32, i32
  }
  func.func @transform_17(%arg0: i32, %arg1: i32) -> (i32, i32) {
    %c0_i32 = arith.constant 0 : i32
    %c0_i32_0 = arith.constant 0 : i32
    %c0_i32_1 = arith.constant 0 : i32
    return %c0_i32, %c0_i32_0 : i32, i32
  }
  func.func @transform_18(%arg0: i32, %arg1: i32) -> (i32, i32) {
    %c0_i32 = arith.constant 0 : i32
    %c0_i32_0 = arith.constant 0 : i32
    %c0_i32_1 = arith.constant 0 : i32
    return %c0_i32, %c0_i32_0 : i32, i32
  }
  func.func @transform_19(%arg0: i32, %arg1: i32) -> (i32, i32, i32) {
    %c0_i32 = arith.constant 0 : i32
    %c0_i32_0 = arith.constant 0 : i32
    %c0_i32_1 = arith.constant 0 : i32
    return %arg0, %c0_i32, %c0_i32_0 : i32, i32, i32
  }
  func.func @transform_20(%arg0: i32, %arg1: i32) -> (i32, i32, i32) {
    %c0_i32 = arith.constant 0 : i32
    %c0_i32_0 = arith.constant 0 : i32
    return %arg0, %arg1, %c0_i32 : i32, i32, i32
  }
  func.func @transform_21(%arg0: i32, %arg1: i32) -> (i32, i32, i32) {
    %c0_i32 = arith.constant 0 : i32
    %c0_i32_0 = arith.constant 0 : i32
    %c0_i32_1 = arith.constant 0 : i32
    return %arg0, %c0_i32, %c0_i32_0 : i32, i32, i32
  }
  func.func @transform_22(%arg0: i32, %arg1: i32) -> (i32, i32, i32) {
    %c0_i32 = arith.constant 0 : i32
    %c0_i32_0 = arith.constant 0 : i32
    %c0_i32_1 = arith.constant 0 : i32
    return %arg0, %c0_i32, %c0_i32_0 : i32, i32, i32
  }
  func.func @transform_23(%arg0: i32, %arg1: i32) -> (i32, i32, i32) {
    %c0_i32 = arith.constant 0 : i32
    %c0_i32_0 = arith.constant 0 : i32
    %c0_i32_1 = arith.constant 0 : i32
    return %arg0, %c0_i32, %c0_i32_0 : i32, i32, i32
  }
  func.func @transform_24(%arg0: i32, %arg1: i32) -> (i32, i32, i32) {
    %c0_i32 = arith.constant 0 : i32
    %c0_i32_0 = arith.constant 0 : i32
    %c0_i32_1 = arith.constant 0 : i32
    return %arg0, %c0_i32, %c0_i32_0 : i32, i32, i32
  }
  func.func @transform_25(%arg0: i32, %arg1: i32) -> (i32, i32, i32) {
    %c0_i32 = arith.constant 0 : i32
    %c0_i32_0 = arith.constant 0 : i32
    %c0_i32_1 = arith.constant 0 : i32
    return %arg0, %c0_i32, %c0_i32_0 : i32, i32, i32
  }
  func.func @transform_26(%arg0: i32, %arg1: i32) -> (i32, i32, i32) {
    %c0_i32 = arith.constant 0 : i32
    %c0_i32_0 = arith.constant 0 : i32
    %c0_i32_1 = arith.constant 0 : i32
    return %arg0, %c0_i32, %c0_i32_0 : i32, i32, i32
  }
}

</mosaic_0001>

<llo_original>
// kernel: tpu_custom_call.1
$region0: #{tpu_custom_call.1}
  #allocation0 [shape = 'u32[]', space=smem, size = 0x4, offset = 0x4, fixed_abs, tag = 'smem constant byte address 0x4 - core index']
  #allocation1 [shape = 'u32[144,128]{1,0:T(1,128)}', space=vmem, size = 0x12000, scoped, tag = 'internal scratch']
  #allocation2 [shape = 'f32[128,128]{1,0:T(8,128)}', space=vmem, size = 0x10000, scoped, tag = 'scratch operand']
  #allocation3 [shape = 'f32[128,128]{1,0:T(8,128)}', space=vmem, size = 0x10000, scoped, tag = 'scratch operand']
  #allocation4 [shape = 'f32[128,128]{1,0:T(8,128)}', space=vmem, size = 0x10000, scoped, tag = 'scratch operand']
  #allocation5 [shape = 'f32[1,128]{1,0:T(1,128)}', space=vmem, size = 0x200, scoped, tag = 'scratch operand']
  #allocation6 [shape = 'f32[1,128]{1,0:T(1,128)}', space=vmem, size = 0x200, scoped, tag = 'scratch operand']
  #allocation7 [shape = 'f32[1,128]{1,0:T(1,128)}', space=vmem, size = 0x200, scoped, tag = 'scratch operand']
  %s0 = inlined_call_operand.hbm [shape: f32[48,128], index: 0, kind: input, shape index: {}]
  %s1 = inlined_call_operand.vmem [shape: f32[1,128], index: 1, kind: input, shape index: {}]
  %s2 = inlined_call_operand.hbm [shape: f32[128,128], index: 2, kind: input, shape index: {}]
  %s3 = inlined_call_operand.hbm [shape: f32[128,128], index: 3, kind: input, shape index: {}]
  %s4 = inlined_call_operand.hbm [shape: f32[2,128,128], index: 4, kind: input, shape index: {}]
  %s5 = inlined_call_operand.vmem [shape: f32[1,128], index: 5, kind: input, shape index: {}]
  %s6 = inlined_call_operand.vmem [shape: f32[1,128], index: 6, kind: input, shape index: {}]
  %s7 = inlined_call_operand.vmem [shape: f32[2,1,128], index: 7, kind: input, shape index: {}]
  %s8 = inlined_call_operand.hbm [shape: f32[128,128], index: 8, kind: input, shape index: {}]
  %s9 = inlined_call_operand.hbm [shape: f32[128,128], index: 9, kind: input, shape index: {}]
  %s10 = inlined_call_operand.hbm [shape: f32[2,128,128], index: 10, kind: input, shape index: {}]
  %s11 = inlined_call_operand.vmem [shape: f32[1,128], index: 11, kind: input, shape index: {}]
  %s12 = inlined_call_operand.vmem [shape: f32[1,128], index: 12, kind: input, shape index: {}]
  %s13 = inlined_call_operand.vmem [shape: f32[2,1,128], index: 13, kind: input, shape index: {}]
  %s14 = inlined_call_operand.hbm [shape: f32[128,128], index: 14, kind: input, shape index: {}]
  %s15 = inlined_call_operand.hbm [shape: f32[128,128], index: 15, kind: input, shape index: {}]
  %s16 = inlined_call_operand.hbm [shape: f32[2,128,128], index: 16, kind: input, shape index: {}]
  %s17 = inlined_call_operand.vmem [shape: f32[1,128], index: 17, kind: input, shape index: {}]
  %s18 = inlined_call_operand.vmem [shape: f32[1,128], index: 18, kind: input, shape index: {}]
  %s19 = inlined_call_operand.vmem [shape: f32[2,1,128], index: 19, kind: input, shape index: {}]
  %s20 = inlined_call_operand.hbm [shape: f32[2,48,128], index: 20, kind: output, shape index: {0}]
  %s21 = inlined_call_operand.hbm [shape: f32[2,128,128], index: 21, kind: output, shape index: {1}]
  %s22 = inlined_call_operand.hbm [shape: f32[2,128,128], index: 22, kind: output, shape index: {2}]
  %s23 = inlined_call_operand.hbm [shape: f32[2,128,128], index: 23, kind: output, shape index: {3}]
  %s24 = inlined_call_operand.hbm [shape: f32[2,1,128], index: 24, kind: output, shape index: {4}]
  %s25 = inlined_call_operand.hbm [shape: f32[2,1,128], index: 25, kind: output, shape index: {5}]
  %s26 = inlined_call_operand.hbm [shape: f32[2,1,128], index: 26, kind: output, shape index: {6}]
  %27 = xla_tuple %s20, %s21, %s22, %s23, %s24, %s25, %s26
  %s28 = sld [smem:[#allocation0]]
  $region205: #{tpu_custom_call.1} parent=0
    _
  %s30 = ssub.s32 1, %s28
  %s31 = scalar_select 0, %s30, %s28
  $region1: #{tpu_custom_call.1} parent=0
    #allocation8 [shape = 'u8[24576]{0}', space=vmem, size = 0x6000, scoped, tag = 'input window, operand 0, single buffered']
    #allocation9 [shape = 's32[2]{0}', space=sflag, size = 0x8, scoped, tag = 'scoped memory for tpu_custom_call.1']
    #allocation10 [shape = 's32[2]{0}', space=sflag, size = 0x8, scoped, tag = 'scoped memory for tpu_custom_call.1']
    #allocation11 [shape = 'u8[65536]{0}', space=vmem, size = 0x10000, scoped, tag = 'input window, operand 2, single buffered']
    #allocation12 [shape = 's32[1]{0}', space=sflag, size = 0x4, scoped, tag = 'scoped memory for tpu_custom_call.1']
    #allocation13 [shape = 'u8[65536]{0}', space=vmem, size = 0x10000, scoped, tag = 'input window, operand 3, single buffered']
    #allocation14 [shape = 'u8[65536]{0}', space=vmem, size = 0x10000, scoped, tag = 'input window, operand 4, single buffered']
    #allocation15 [shape = 's32[1]{0}', space=sflag, size = 0x4, scoped, tag = 'scoped memory for tpu_custom_call.1']
    #allocation16 [shape = 'u8[65536]{0}', space=vmem, size = 0x10000, scoped, tag = 'input window, operand 8, single buffered']
    #allocation17 [shape = 'u8[65536]{0}', space=vmem, size = 0x10000, scoped, tag = 'input window, operand 9, single buffered']
    #allocation18 [shape = 's32[1]{0}', space=sflag, size = 0x4, scoped, tag = 'scoped memory for tpu_custom_call.1']
    #allocation19 [shape = 'u8[65536]{0}', space=vmem, size = 0x10000, scoped, tag = 'input window, operand 10, single buffered']
    #allocation20 [shape = 'u8[65536]{0}', space=vmem, size = 0x10000, scoped, tag = 'input window, operand 14, single buffered']
    #allocation21 [shape = 's32[1]{0}', space=sflag, size = 0x4, scoped, tag = 'scoped memory for tpu_custom_call.1']
    #allocation22 [shape = 'u8[65536]{0}', space=vmem, size = 0x10000, scoped, tag = 'input window, operand 15, single buffered']
    #allocation23 [shape = 'u8[65536]{0}', space=vmem, size = 0x10000, scoped, tag = 'input window, operand 16, single buffered']
    #allocation24 [shape = 's32[1]{0}', space=sflag, size = 0x4, scoped, tag = 'scoped memory for tpu_custom_call.1']
    #allocation25 [shape = 'u8[49152]{0}', space=vmem, size = 0xc000, scoped, tag = 'output window, operand 0']
    #allocation26 [shape = 'u8[131072]{0}', space=vmem, size = 0x20000, scoped, tag = 'output window, operand 1']
    #allocation27 [shape = 's32[2]{0}', space=sflag, size = 0x8, scoped, tag = 'scoped memory for tpu_custom_call.1']
    #allocation28 [shape = 'u8[131072]{0}', space=vmem, size = 0x20000, scoped, tag = 'output window, operand 2']
    #allocation29 [shape = 'u8[131072]{0}', space=vmem, size = 0x20000, scoped, tag = 'output window, operand 3']
    #allocation30 [shape = 's32[2]{0}', space=sflag, size = 0x8, scoped, tag = 'scoped memory for tpu_custom_call.1']
    #allocation31 [shape = 'u8[1024]{0}', space=vmem, size = 0x400, scoped, tag = 'output window, operand 4']
    #allocation32 [shape = 'u8[1024]{0}', space=vmem, size = 0x400, scoped, tag = 'output window, operand 5']
    #allocation33 [shape = 's32[2]{0}', space=sflag, size = 0x8, scoped, tag = 'scoped memory for tpu_custom_call.1']
    #allocation34 [shape = 'u8[1024]{0}', space=vmem, size = 0x400, scoped, tag = 'output window, operand 6']
    %32 = vsyncpa [#allocation9], 0
    %33 = vsyncpa [#allocation12], 0
    %34 = vsyncpa [#allocation15], 0
    %35 = vsyncpa [#allocation18], 0
    %36 = vsyncpa [#allocation21], 0
    %37 = vsyncpa [#allocation24], 0
    %38 = vsyncpa [#allocation10], 0
    %s39 = scalar_lea.sflag [#allocation10], 1
    %40 = vsyncpa %s39, 0
    %41 = vsyncpa [#allocation27], 0
    %s42 = scalar_lea.sflag [#allocation27], 1
    %43 = vsyncpa %s42, 0
    %44 = vsyncpa [#allocation30], 0
    %s45 = scalar_lea.sflag [#allocation30], 1
    %46 = vsyncpa %s45, 0
    %47 = vsyncpa [#allocation33], 0
    %s48 = scalar_lea.sflag [#allocation33], 1
    %49 = vsyncpa %s48, 0
    loop: start=0, step=1, limit=4
    $region2: #{tpu_custom_call.1} parent=1 // loop_pre_header
      _
    $region3: #{tpu_custom_call.1} parent=1 // loop_header
      %s51 = sphi 0, %s55
      %p52 = scmp.ge.s32.totalorder %s51, 4
      %s58 = sphi 0, %s70
      %s59 = sphi 0, %s66
      %s60 = sphi 0, %s58
      %s61 = sphi 0, %s59
      %s62 = sphi 0, %s60
      %s63 = sphi 0, %s61
      %s73 = sphi 0, %s75
      %s76 = sphi 0, %s73
      %s77 = sphi 0, %s76
      %s93 = sphi 0, %s77
      %s97 = sphi 0, %s97
      %s99 = sphi 0, %s97
      %s100 = sphi 0, %s99
      %s114 = sphi 0, %s100
      %s118 = sphi 0, %s118
      %s120 = sphi 0, %s118
      %s121 = sphi 0, %s120
      %s135 = sphi 0, %s121
      %s139 = sphi 0, %s139
      %s141 = sphi 0, %s139
      %s142 = sphi 0, %s141
      %s156 = sphi 0, %s142
      %s162 = sphi 0, %s164
      %s165 = sphi 0, %s162
      %s166 = sphi 0, %s165
      %s182 = sphi 0, %s166
      %s186 = sphi 0, %s186
      %s188 = sphi 0, %s186
      %s189 = sphi 0, %s188
      %s203 = sphi 0, %s189
      %s207 = sphi 0, %s207
      %s209 = sphi 0, %s207
      %s210 = sphi 0, %s209
      %s224 = sphi 0, %s210
      %s230 = sphi 0, %s232
      %s233 = sphi 0, %s230
      %s234 = sphi 0, %s233
      %s250 = sphi 0, %s234
      %s254 = sphi 0, %s254
      %s256 = sphi 0, %s254
      %s257 = sphi 0, %s256
      %s271 = sphi 0, %s257
      %s275 = sphi 0, %s275
      %s277 = sphi 0, %s275
      %s278 = sphi 0, %s277
      %s292 = sphi 0, %s278
      %s298 = sphi 0, %s300
      %s301 = sphi 0, %s298
      %s302 = sphi 0, %s301
      %s318 = sphi 0, %s302
      %s322 = sphi 0, %s322
      %s324 = sphi 0, %s322
      %s325 = sphi 0, %s324
      %s339 = sphi 0, %s325
      %s343 = sphi 0, %s343
      %s345 = sphi 0, %s343
      %s346 = sphi 0, %s345
      %s360 = sphi 0, %s346
      %s366 = sphi 0, %s368
      %s369 = sphi 0, %s366
      %s370 = sphi 0, %s369
      %s386 = sphi 0, %s370
      %s390 = sphi 0, %s390
      %s392 = sphi 0, %s390
      %s393 = sphi 0, %s392
      %s407 = sphi 0, %s393
      %s411 = sphi 0, %s411
      %s413 = sphi 0, %s411
      %s414 = sphi 0, %s413
      %s428 = sphi 0, %s414
      %s434 = sphi 0, %s436
      %s437 = sphi 0, %s434
      %s438 = sphi 0, %s437
      %s454 = sphi 0, %s438
      %s458 = sphi 0, %s458
      %s460 = sphi 0, %s458
      %s461 = sphi 0, %s460
      %s475 = sphi 0, %s461
      %s479 = sphi 0, %s479
      %s481 = sphi 0, %s479
      %s482 = sphi 0, %s481
      %s496 = sphi 0, %s482
      %s502 = sphi 0, %s504
      %s505 = sphi 0, %s502
      %s506 = sphi 0, %s505
      %s522 = sphi 0, %s506
      %s530 = sphi 0, %s532
      %s533 = sphi 0, %s530
      %s534 = sphi 0, %s533
      %s550 = sphi 0, %s534
      %s556 = sphi 0, %s558
      %s559 = sphi 0, %s556
      %s560 = sphi 0, %s559
      %s576 = sphi 0, %s560
      %s582 = sphi 0, %s584
      %s585 = sphi 0, %s582
      %s586 = sphi 0, %s585
      %s602 = sphi 0, %s586
      %s608 = sphi 0, %s610
      %s611 = sphi 0, %s608
      %s612 = sphi 0, %s611
      %s628 = sphi 0, %s612
      %s634 = sphi 0, %s636
      %s637 = sphi 0, %s634
      %s638 = sphi 0, %s637
      %s654 = sphi 0, %s638
      %s660 = sphi 0, %s662
      %s663 = sphi 0, %s660
      %s664 = sphi 0, %s663
      %s680 = sphi 0, %s664
      %s686 = sphi 0, %s688
      %s689 = sphi 0, %s686
      %s690 = sphi 0, %s689
      %s706 = sphi 0, %s690
    $region4: #{tpu_custom_call.1} parent=1 // loop_header_branch
      %54 = sbr.rel (%p52) target = $region8
    $region5: #{tpu_custom_call.1} parent=1 // loop_body
      %s56 = ssub.s32 %s51, 1
      %s57 = ssub.s32 %s51, 2
      %s64 = sadd.s32 1, %s59
      %p65 = scmp.ge.s32.totalorder %s64, 1
      %s66 = scalar_select %p65, 0, %s64
      %s67 = sadd.s32 1, %s58
      %s68 = scalar_select %p65, %s67, %s58
      %p69 = scmp.ge.s32.totalorder %s68, 2
      %s70 = scalar_select %p69, 0, %s68
      %s71 = ssub.s32 %s59, %s66
      %p72 = scmp.eq.s32.totalorder %s71, 0
      %s74 = sadd.s32 %s73, 1
      %s75 = scalar_select %p72, %s73, %s74
      %p78 = pneg %p72
      %p79 = scmp.eq.s32.totalorder %s51, 1
      %p80 = por %p78, %p79
      %p81 = scmp.ne.s32.totalorder %s73, %s76
      %p82 = scmp.eq.s32.totalorder %s51, 0
      %p83 = por %p81, %p82
      %p84 = scmp.ne.s32.totalorder %s73, %s76
      %p85 = scmp.eq.s32.totalorder %s56, 1
      %p86 = por %p84, %p85
      %p87 = scmp.ne.s32.totalorder %s76, %s77
      %p88 = scmp.eq.s32.totalorder %s56, 0
      %p89 = por %p87, %p88
      %p90 = scmp.ne.s32.totalorder %s76, %s77
      %p91 = scmp.eq.s32.totalorder %s57, 1
      %p92 = por %p90, %p91
      %p94 = scmp.ne.s32.totalorder %s77, %s93
      %p95 = scmp.eq.s32.totalorder %s57, 0
      %p96 = por %p94, %p95
      %s98 = sadd.s32 %s97, 1
      %p101 = scmp.eq.s32.totalorder %s51, 1
      %p102 = scmp.ne.s32.totalorder %s97, %s99
      %p103 = scmp.eq.s32.totalorder %s51, 0
      %p104 = por %p102, %p103
      %p105 = scmp.ne.s32.totalorder %s97, %s99
      %p106 = scmp.eq.s32.totalorder %s56, 1
      %p107 = por %p105, %p106
      %p108 = scmp.ne.s32.totalorder %s99, %s100
      %p109 = scmp.eq.s32.totalorder %s56, 0
      %p110 = por %p108, %p109
      %p111 = scmp.ne.s32.totalorder %s99, %s100
      %p112 = scmp.eq.s32.totalorder %s57, 1
      %p113 = por %p111, %p112
      %p115 = scmp.ne.s32.totalorder %s100, %s114
      %p116 = scmp.eq.s32.totalorder %s57, 0
      %p117 = por %p115, %p116
      %s119 = sadd.s32 %s118, 1
      %p122 = scmp.eq.s32.totalorder %s51, 1
      %p123 = scmp.ne.s32.totalorder %s118, %s120
      %p124 = scmp.eq.s32.totalorder %s51, 0
      %p125 = por %p123, %p124
      %p126 = scmp.ne.s32.totalorder %s118, %s120
      %p127 = scmp.eq.s32.totalorder %s56, 1
      %p128 = por %p126, %p127
      %p129 = scmp.ne.s32.totalorder %s120, %s121
      %p130 = scmp.eq.s32.totalorder %s56, 0
      %p131 = por %p129, %p130
      %p132 = scmp.ne.s32.totalorder %s120, %s121
      %p133 = scmp.eq.s32.totalorder %s57, 1
      %p134 = por %p132, %p133
      %p136 = scmp.ne.s32.totalorder %s121, %s135
      %p137 = scmp.eq.s32.totalorder %s57, 0
      %p138 = por %p136, %p137
      %s140 = sadd.s32 %s139, 1
      %p143 = scmp.eq.s32.totalorder %s51, 1
      %p144 = scmp.ne.s32.totalorder %s139, %s141
      %p145 = scmp.eq.s32.totalorder %s51, 0
      %p146 = por %p144, %p145
      %p147 = scmp.ne.s32.totalorder %s139, %s141
      %p148 = scmp.eq.s32.totalorder %s56, 1
      %p149 = por %p147, %p148
      %p150 = scmp.ne.s32.totalorder %s141, %s142
      %p151 = scmp.eq.s32.totalorder %s56, 0
      %p152 = por %p150, %p151
      %p153 = scmp.ne.s32.totalorder %s141, %s142
      %p154 = scmp.eq.s32.totalorder %s57, 1
      %p155 = por %p153, %p154
      %p157 = scmp.ne.s32.totalorder %s142, %s156
      %p158 = scmp.eq.s32.totalorder %s57, 0
      %p159 = por %p157, %p158
      %s160 = ssub.s32 %s58, %s70
      %p161 = scmp.eq.s32.totalorder %s160, 0
      %s163 = sadd.s32 %s162, 1
      %s164 = scalar_select %p161, %s162, %s163
      %p167 = pneg %p161
      %p168 = scmp.eq.s32.totalorder %s51, 1
      %p169 = por %p167, %p168
      %p170 = scmp.ne.s32.totalorder %s162, %s165
      %p171 = scmp.eq.s32.totalorder %s51, 0
      %p172 = por %p170, %p171
      %p173 = scmp.ne.s32.totalorder %s162, %s165
      %p174 = scmp.eq.s32.totalorder %s56, 1
      %p175 = por %p173, %p174
      %p176 = scmp.ne.s32.totalorder %s165, %s166
      %p177 = scmp.eq.s32.totalorder %s56, 0
      %p178 = por %p176, %p177
      %p179 = scmp.ne.s32.totalorder %s165, %s166
      %p180 = scmp.eq.s32.totalorder %s57, 1
      %p181 = por %p179, %p180
      %p183 = scmp.ne.s32.totalorder %s166, %s182
      %p184 = scmp.eq.s32.totalorder %s57, 0
      %p185 = por %p183, %p184
      %s187 = sadd.s32 %s186, 1
      %p190 = scmp.eq.s32.totalorder %s51, 1
      %p191 = scmp.ne.s32.totalorder %s186, %s188
      %p192 = scmp.eq.s32.totalorder %s51, 0
      %p193 = por %p191, %p192
      %p194 = scmp.ne.s32.totalorder %s186, %s188
      %p195 = scmp.eq.s32.totalorder %s56, 1
      %p196 = por %p194, %p195
      %p197 = scmp.ne.s32.totalorder %s188, %s189
      %p198 = scmp.eq.s32.totalorder %s56, 0
      %p199 = por %p197, %p198
      %p200 = scmp.ne.s32.totalorder %s188, %s189
      %p201 = scmp.eq.s32.totalorder %s57, 1
      %p202 = por %p200, %p201
      %p204 = scmp.ne.s32.totalorder %s189, %s203
      %p205 = scmp.eq.s32.totalorder %s57, 0
      %p206 = por %p204, %p205
      %s208 = sadd.s32 %s207, 1
      %p211 = scmp.eq.s32.totalorder %s51, 1
      %p212 = scmp.ne.s32.totalorder %s207, %s209
      %p213 = scmp.eq.s32.totalorder %s51, 0
      %p214 = por %p212, %p213
      %p215 = scmp.ne.s32.totalorder %s207, %s209
      %p216 = scmp.eq.s32.totalorder %s56, 1
      %p217 = por %p215, %p216
      %p218 = scmp.ne.s32.totalorder %s209, %s210
      %p219 = scmp.eq.s32.totalorder %s56, 0
      %p220 = por %p218, %p219
      %p221 = scmp.ne.s32.totalorder %s209, %s210
      %p222 = scmp.eq.s32.totalorder %s57, 1
      %p223 = por %p221, %p222
      %p225 = scmp.ne.s32.totalorder %s210, %s224
      %p226 = scmp.eq.s32.totalorder %s57, 0
      %p227 = por %p225, %p226
      %s228 = ssub.s32 %s58, %s70
      %p229 = scmp.eq.s32.totalorder %s228, 0
      %s231 = sadd.s32 %s230, 1
      %s232 = scalar_select %p229, %s230, %s231
      %p235 = pneg %p229
      %p236 = scmp.eq.s32.totalorder %s51, 1
      %p237 = por %p235, %p236
      %p238 = scmp.ne.s32.totalorder %s230, %s233
      %p239 = scmp.eq.s32.totalorder %s51, 0
      %p240 = por %p238, %p239
      %p241 = scmp.ne.s32.totalorder %s230, %s233
      %p242 = scmp.eq.s32.totalorder %s56, 1
      %p243 = por %p241, %p242
      %p244 = scmp.ne.s32.totalorder %s233, %s234
      %p245 = scmp.eq.s32.totalorder %s56, 0
      %p246 = por %p244, %p245
      %p247 = scmp.ne.s32.totalorder %s233, %s234
      %p248 = scmp.eq.s32.totalorder %s57, 1
      %p249 = por %p247, %p248
      %p251 = scmp.ne.s32.totalorder %s234, %s250
      %p252 = scmp.eq.s32.totalorder %s57, 0
      %p253 = por %p251, %p252
      %s255 = sadd.s32 %s254, 1
      %p258 = scmp.eq.s32.totalorder %s51, 1
      %p259 = scmp.ne.s32.totalorder %s254, %s256
      %p260 = scmp.eq.s32.totalorder %s51, 0
      %p261 = por %p259, %p260
      %p262 = scmp.ne.s32.totalorder %s254, %s256
      %p263 = scmp.eq.s32.totalorder %s56, 1
      %p264 = por %p262, %p263
      %p265 = scmp.ne.s32.totalorder %s256, %s257
      %p266 = scmp.eq.s32.totalorder %s56, 0
      %p267 = por %p265, %p266
      %p268 = scmp.ne.s32.totalorder %s256, %s257
      %p269 = scmp.eq.s32.totalorder %s57, 1
      %p270 = por %p268, %p269
      %p272 = scmp.ne.s32.totalorder %s257, %s271
      %p273 = scmp.eq.s32.totalorder %s57, 0
      %p274 = por %p272, %p273
      %s276 = sadd.s32 %s275, 1
      %p279 = scmp.eq.s32.totalorder %s51, 1
      %p280 = scmp.ne.s32.totalorder %s275, %s277
      %p281 = scmp.eq.s32.totalorder %s51, 0
      %p282 = por %p280, %p281
      %p283 = scmp.ne.s32.totalorder %s275, %s277
      %p284 = scmp.eq.s32.totalorder %s56, 1
      %p285 = por %p283, %p284
      %p286 = scmp.ne.s32.totalorder %s277, %s278
      %p287 = scmp.eq.s32.totalorder %s56, 0
      %p288 = por %p286, %p287
      %p289 = scmp.ne.s32.totalorder %s277, %s278
      %p290 = scmp.eq.s32.totalorder %s57, 1
      %p291 = por %p289, %p290
      %p293 = scmp.ne.s32.totalorder %s278, %s292
      %p294 = scmp.eq.s32.totalorder %s57, 0
      %p295 = por %p293, %p294
      %s296 = ssub.s32 %s58, %s70
      %p297 = scmp.eq.s32.totalorder %s296, 0
      %s299 = sadd.s32 %s298, 1
      %s300 = scalar_select %p297, %s298, %s299
      %p303 = pneg %p297
      %p304 = scmp.eq.s32.totalorder %s51, 1
      %p305 = por %p303, %p304
      %p306 = scmp.ne.s32.totalorder %s298, %s301
      %p307 = scmp.eq.s32.totalorder %s51, 0
      %p308 = por %p306, %p307
      %p309 = scmp.ne.s32.totalorder %s298, %s301
      %p310 = scmp.eq.s32.totalorder %s56, 1
      %p311 = por %p309, %p310
      %p312 = scmp.ne.s32.totalorder %s301, %s302
      %p313 = scmp.eq.s32.totalorder %s56, 0
      %p314 = por %p312, %p313
      %p315 = scmp.ne.s32.totalorder %s301, %s302
      %p316 = scmp.eq.s32.totalorder %s57, 1
      %p317 = por %p315, %p316
      %p319 = scmp.ne.s32.totalorder %s302, %s318
      %p320 = scmp.eq.s32.totalorder %s57, 0
      %p321 = por %p319, %p320
      %s323 = sadd.s32 %s322, 1
      %p326 = scmp.eq.s32.totalorder %s51, 1
      %p327 = scmp.ne.s32.totalorder %s322, %s324
      %p328 = scmp.eq.s32.totalorder %s51, 0
      %p329 = por %p327, %p328
      %p330 = scmp.ne.s32.totalorder %s322, %s324
      %p331 = scmp.eq.s32.totalorder %s56, 1
      %p332 = por %p330, %p331
      %p333 = scmp.ne.s32.totalorder %s324, %s325
      %p334 = scmp.eq.s32.totalorder %s56, 0
      %p335 = por %p333, %p334
      %p336 = scmp.ne.s32.totalorder %s324, %s325
      %p337 = scmp.eq.s32.totalorder %s57, 1
      %p338 = por %p336, %p337
      %p340 = scmp.ne.s32.totalorder %s325, %s339
      %p341 = scmp.eq.s32.totalorder %s57, 0
      %p342 = por %p340, %p341
      %s344 = sadd.s32 %s343, 1
      %p347 = scmp.eq.s32.totalorder %s51, 1
      %p348 = scmp.ne.s32.totalorder %s343, %s345
      %p349 = scmp.eq.s32.totalorder %s51, 0
      %p350 = por %p348, %p349
      %p351 = scmp.ne.s32.totalorder %s343, %s345
      %p352 = scmp.eq.s32.totalorder %s56, 1
      %p353 = por %p351, %p352
      %p354 = scmp.ne.s32.totalorder %s345, %s346
      %p355 = scmp.eq.s32.totalorder %s56, 0
      %p356 = por %p354, %p355
      %p357 = scmp.ne.s32.totalorder %s345, %s346
      %p358 = scmp.eq.s32.totalorder %s57, 1
      %p359 = por %p357, %p358
      %p361 = scmp.ne.s32.totalorder %s346, %s360
      %p362 = scmp.eq.s32.totalorder %s57, 0
      %p363 = por %p361, %p362
      %s364 = ssub.s32 %s58, %s70
      %p365 = scmp.eq.s32.totalorder %s364, 0
      %s367 = sadd.s32 %s366, 1
      %s368 = scalar_select %p365, %s366, %s367
      %p371 = pneg %p365
      %p372 = scmp.eq.s32.totalorder %s51, 1
      %p373 = por %p371, %p372
      %p374 = scmp.ne.s32.totalorder %s366, %s369
      %p375 = scmp.eq.s32.totalorder %s51, 0
      %p376 = por %p374, %p375
      %p377 = scmp.ne.s32.totalorder %s366, %s369
      %p378 = scmp.eq.s32.totalorder %s56, 1
      %p379 = por %p377, %p378
      %p380 = scmp.ne.s32.totalorder %s369, %s370
      %p381 = scmp.eq.s32.totalorder %s56, 0
      %p382 = por %p380, %p381
      %p383 = scmp.ne.s32.totalorder %s369, %s370
      %p384 = scmp.eq.s32.totalorder %s57, 1
      %p385 = por %p383, %p384
      %p387 = scmp.ne.s32.totalorder %s370, %s386
      %p388 = scmp.eq.s32.totalorder %s57, 0
      %p389 = por %p387, %p388
      %s391 = sadd.s32 %s390, 1
      %p394 = scmp.eq.s32.totalorder %s51, 1
      %p395 = scmp.ne.s32.totalorder %s390, %s392
      %p396 = scmp.eq.s32.totalorder %s51, 0
      %p397 = por %p395, %p396
      %p398 = scmp.ne.s32.totalorder %s390, %s392
      %p399 = scmp.eq.s32.totalorder %s56, 1
      %p400 = por %p398, %p399
      %p401 = scmp.ne.s32.totalorder %s392, %s393
      %p402 = scmp.eq.s32.totalorder %s56, 0
      %p403 = por %p401, %p402
      %p404 = scmp.ne.s32.totalorder %s392, %s393
      %p405 = scmp.eq.s32.totalorder %s57, 1
      %p406 = por %p404, %p405
      %p408 = scmp.ne.s32.totalorder %s393, %s407
      %p409 = scmp.eq.s32.totalorder %s57, 0
      %p410 = por %p408, %p409
      %s412 = sadd.s32 %s411, 1
      %p415 = scmp.eq.s32.totalorder %s51, 1
      %p416 = scmp.ne.s32.totalorder %s411, %s413
      %p417 = scmp.eq.s32.totalorder %s51, 0
      %p418 = por %p416, %p417
      %p419 = scmp.ne.s32.totalorder %s411, %s413
      %p420 = scmp.eq.s32.totalorder %s56, 1
      %p421 = por %p419, %p420
      %p422 = scmp.ne.s32.totalorder %s413, %s414
      %p423 = scmp.eq.s32.totalorder %s56, 0
      %p424 = por %p422, %p423
      %p425 = scmp.ne.s32.totalorder %s413, %s414
      %p426 = scmp.eq.s32.totalorder %s57, 1
      %p427 = por %p425, %p426
      %p429 = scmp.ne.s32.totalorder %s414, %s428
      %p430 = scmp.eq.s32.totalorder %s57, 0
      %p431 = por %p429, %p430
      %s432 = ssub.s32 %s58, %s70
      %p433 = scmp.eq.s32.totalorder %s432, 0
      %s435 = sadd.s32 %s434, 1
      %s436 = scalar_select %p433, %s434, %s435
      %p439 = pneg %p433
      %p440 = scmp.eq.s32.totalorder %s51, 1
      %p441 = por %p439, %p440
      %p442 = scmp.ne.s32.totalorder %s434, %s437
      %p443 = scmp.eq.s32.totalorder %s51, 0
      %p444 = por %p442, %p443
      %p445 = scmp.ne.s32.totalorder %s434, %s437
      %p446 = scmp.eq.s32.totalorder %s56, 1
      %p447 = por %p445, %p446
      %p448 = scmp.ne.s32.totalorder %s437, %s438
      %p449 = scmp.eq.s32.totalorder %s56, 0
      %p450 = por %p448, %p449
      %p451 = scmp.ne.s32.totalorder %s437, %s438
      %p452 = scmp.eq.s32.totalorder %s57, 1
      %p453 = por %p451, %p452
      %p455 = scmp.ne.s32.totalorder %s438, %s454
      %p456 = scmp.eq.s32.totalorder %s57, 0
      %p457 = por %p455, %p456
      %s459 = sadd.s32 %s458, 1
      %p462 = scmp.eq.s32.totalorder %s51, 1
      %p463 = scmp.ne.s32.totalorder %s458, %s460
      %p464 = scmp.eq.s32.totalorder %s51, 0
      %p465 = por %p463, %p464
      %p466 = scmp.ne.s32.totalorder %s458, %s460
      %p467 = scmp.eq.s32.totalorder %s56, 1
      %p468 = por %p466, %p467
      %p469 = scmp.ne.s32.totalorder %s460, %s461
      %p470 = scmp.eq.s32.totalorder %s56, 0
      %p471 = por %p469, %p470
      %p472 = scmp.ne.s32.totalorder %s460, %s461
      %p473 = scmp.eq.s32.totalorder %s57, 1
      %p474 = por %p472, %p473
      %p476 = scmp.ne.s32.totalorder %s461, %s475
      %p477 = scmp.eq.s32.totalorder %s57, 0
      %p478 = por %p476, %p477
      %s480 = sadd.s32 %s479, 1
      %p483 = scmp.eq.s32.totalorder %s51, 1
      %p484 = scmp.ne.s32.totalorder %s479, %s481
      %p485 = scmp.eq.s32.totalorder %s51, 0
      %p486 = por %p484, %p485
      %p487 = scmp.ne.s32.totalorder %s479, %s481
      %p488 = scmp.eq.s32.totalorder %s56, 1
      %p489 = por %p487, %p488
      %p490 = scmp.ne.s32.totalorder %s481, %s482
      %p491 = scmp.eq.s32.totalorder %s56, 0
      %p492 = por %p490, %p491
      %p493 = scmp.ne.s32.totalorder %s481, %s482
      %p494 = scmp.eq.s32.totalorder %s57, 1
      %p495 = por %p493, %p494
      %p497 = scmp.ne.s32.totalorder %s482, %s496
      %p498 = scmp.eq.s32.totalorder %s57, 0
      %p499 = por %p497, %p498
      %s500 = ssub.s32 %s58, %s70
      %p501 = scmp.eq.s32.totalorder %s500, 0
      %s503 = sadd.s32 %s502, 1
      %s504 = scalar_select %p501, %s502, %s503
      %p507 = pneg %p501
      %p508 = scmp.eq.s32.totalorder %s51, 1
      %p509 = por %p507, %p508
      %p510 = scmp.ne.s32.totalorder %s502, %s505
      %p511 = scmp.eq.s32.totalorder %s51, 0
      %p512 = por %p510, %p511
      %p513 = scmp.ne.s32.totalorder %s502, %s505
      %p514 = scmp.eq.s32.totalorder %s56, 1
      %p515 = por %p513, %p514
      %p516 = scmp.ne.s32.totalorder %s505, %s506
      %p517 = scmp.eq.s32.totalorder %s56, 0
      %p518 = por %p516, %p517
      %p519 = scmp.ne.s32.totalorder %s505, %s506
      %p520 = scmp.eq.s32.totalorder %s57, 1
      %p521 = por %p519, %p520
      %p523 = scmp.ne.s32.totalorder %s506, %s522
      %p524 = scmp.eq.s32.totalorder %s57, 0
      %p525 = por %p523, %p524
      %s526 = ssub.s32 %s58, %s70
      %s527 = ssub.s32 %s59, %s66
      %s528 = sor.u32 %s526, %s527
      %p529 = scmp.eq.s32.totalorder %s528, 0
      %s531 = sadd.s32 %s530, 1
      %s532 = scalar_select %p529, %s530, %s531
      %p535 = pneg %p529
      %p536 = scmp.eq.s32.totalorder %s51, 1
      %p537 = por %p535, %p536
      %p538 = scmp.ne.s32.totalorder %s530, %s533
      %p539 = scmp.eq.s32.totalorder %s51, 0
      %p540 = por %p538, %p539
      %p541 = scmp.ne.s32.totalorder %s530, %s533
      %p542 = scmp.eq.s32.totalorder %s56, 1
      %p543 = por %p541, %p542
      %p544 = scmp.ne.s32.totalorder %s533, %s534
      %p545 = scmp.eq.s32.totalorder %s56, 0
      %p546 = por %p544, %p545
      %p547 = scmp.ne.s32.totalorder %s533, %s534
      %p548 = scmp.eq.s32.totalorder %s57, 1
      %p549 = por %p547, %p548
      %p551 = scmp.ne.s32.totalorder %s534, %s550
      %p552 = scmp.eq.s32.totalorder %s57, 0
      %p553 = por %p551, %p552
      %s554 = ssub.s32 %s58, %s70
      %p555 = scmp.eq.s32.totalorder %s554, 0
      %s557 = sadd.s32 %s556, 1
      %s558 = scalar_select %p555, %s556, %s557
      %p561 = pneg %p555
      %p562 = scmp.eq.s32.totalorder %s51, 1
      %p563 = por %p561, %p562
      %p564 = scmp.ne.s32.totalorder %s556, %s559
      %p565 = scmp.eq.s32.totalorder %s51, 0
      %p566 = por %p564, %p565
      %p567 = scmp.ne.s32.totalorder %s556, %s559
      %p568 = scmp.eq.s32.totalorder %s56, 1
      %p569 = por %p567, %p568
      %p570 = scmp.ne.s32.totalorder %s559, %s560
      %p571 = scmp.eq.s32.totalorder %s56, 0
      %p572 = por %p570, %p571
      %p573 = scmp.ne.s32.totalorder %s559, %s560
      %p574 = scmp.eq.s32.totalorder %s57, 1
      %p575 = por %p573, %p574
      %p577 = scmp.ne.s32.totalorder %s560, %s576
      %p578 = scmp.eq.s32.totalorder %s57, 0
      %p579 = por %p577, %p578
      %s580 = ssub.s32 %s58, %s70
      %p581 = scmp.eq.s32.totalorder %s580, 0
      %s583 = sadd.s32 %s582, 1
      %s584 = scalar_select %p581, %s582, %s583
      %p587 = pneg %p581
      %p588 = scmp.eq.s32.totalorder %s51, 1
      %p589 = por %p587, %p588
      %p590 = scmp.ne.s32.totalorder %s582, %s585
      %p591 = scmp.eq.s32.totalorder %s51, 0
      %p592 = por %p590, %p591
      %p593 = scmp.ne.s32.totalorder %s582, %s585
      %p594 = scmp.eq.s32.totalorder %s56, 1
      %p595 = por %p593, %p594
      %p596 = scmp.ne.s32.totalorder %s585, %s586
      %p597 = scmp.eq.s32.totalorder %s56, 0
      %p598 = por %p596, %p597
      %p599 = scmp.ne.s32.totalorder %s585, %s586
      %p600 = scmp.eq.s32.totalorder %s57, 1
      %p601 = por %p599, %p600
      %p603 = scmp.ne.s32.totalorder %s586, %s602
      %p604 = scmp.eq.s32.totalorder %s57, 0
      %p605 = por %p603, %p604
      %s606 = ssub.s32 %s58, %s70
      %p607 = scmp.eq.s32.totalorder %s606, 0
      %s609 = sadd.s32 %s608, 1
      %s610 = scalar_select %p607, %s608, %s609
      %p613 = pneg %p607
      %p614 = scmp.eq.s32.totalorder %s51, 1
      %p615 = por %p613, %p614
      %p616 = scmp.ne.s32.totalorder %s608, %s611
      %p617 = scmp.eq.s32.totalorder %s51, 0
      %p618 = por %p616, %p617
      %p619 = scmp.ne.s32.totalorder %s608, %s611
      %p620 = scmp.eq.s32.totalorder %s56, 1
      %p621 = por %p619, %p620
      %p622 = scmp.ne.s32.totalorder %s611, %s612
      %p623 = scmp.eq.s32.totalorder %s56, 0
      %p624 = por %p622, %p623
      %p625 = scmp.ne.s32.totalorder %s611, %s612
      %p626 = scmp.eq.s32.totalorder %s57, 1
      %p627 = por %p625, %p626
      %p629 = scmp.ne.s32.totalorder %s612, %s628
      %p630 = scmp.eq.s32.totalorder %s57, 0
      %p631 = por %p629, %p630
      %s632 = ssub.s32 %s58, %s70
      %p633 = scmp.eq.s32.totalorder %s632, 0
      %s635 = sadd.s32 %s634, 1
      %s636 = scalar_select %p633, %s634, %s635
      %p639 = pneg %p633
      %p640 = scmp.eq.s32.totalorder %s51, 1
      %p641 = por %p639, %p640
      %p642 = scmp.ne.s32.totalorder %s634, %s637
      %p643 = scmp.eq.s32.totalorder %s51, 0
      %p644 = por %p642, %p643
      %p645 = scmp.ne.s32.totalorder %s634, %s637
      %p646 = scmp.eq.s32.totalorder %s56, 1
      %p647 = por %p645, %p646
      %p648 = scmp.ne.s32.totalorder %s637, %s638
      %p649 = scmp.eq.s32.totalorder %s56, 0
      %p650 = por %p648, %p649
      %p651 = scmp.ne.s32.totalorder %s637, %s638
      %p652 = scmp.eq.s32.totalorder %s57, 1
      %p653 = por %p651, %p652
      %p655 = scmp.ne.s32.totalorder %s638, %s654
      %p656 = scmp.eq.s32.totalorder %s57, 0
      %p657 = por %p655, %p656
      %s658 = ssub.s32 %s58, %s70
      %p659 = scmp.eq.s32.totalorder %s658, 0
      %s661 = sadd.s32 %s660, 1
      %s662 = scalar_select %p659, %s660, %s661
      %p665 = pneg %p659
      %p666 = scmp.eq.s32.totalorder %s51, 1
      %p667 = por %p665, %p666
      %p668 = scmp.ne.s32.totalorder %s660, %s663
      %p669 = scmp.eq.s32.totalorder %s51, 0
      %p670 = por %p668, %p669
      %p671 = scmp.ne.s32.totalorder %s660, %s663
      %p672 = scmp.eq.s32.totalorder %s56, 1
      %p673 = por %p671, %p672
      %p674 = scmp.ne.s32.totalorder %s663, %s664
      %p675 = scmp.eq.s32.totalorder %s56, 0
      %p676 = por %p674, %p675
      %p677 = scmp.ne.s32.totalorder %s663, %s664
      %p678 = scmp.eq.s32.totalorder %s57, 1
      %p679 = por %p677, %p678
      %p681 = scmp.ne.s32.totalorder %s664, %s680
      %p682 = scmp.eq.s32.totalorder %s57, 0
      %p683 = por %p681, %p682
      %s684 = ssub.s32 %s58, %s70
      %p685 = scmp.eq.s32.totalorder %s684, 0
      %s687 = sadd.s32 %s686, 1
      %s688 = scalar_select %p685, %s686, %s687
      %p691 = pneg %p685
      %p692 = scmp.eq.s32.totalorder %s51, 1
      %p693 = por %p691, %p692
      %p694 = scmp.ne.s32.totalorder %s686, %s689
      %p695 = scmp.eq.s32.totalorder %s51, 0
      %p696 = por %p694, %p695
      %p697 = scmp.ne.s32.totalorder %s686, %s689
      %p698 = scmp.eq.s32.totalorder %s56, 1
      %p699 = por %p697, %p698
      %p700 = scmp.ne.s32.totalorder %s689, %s690
      %p701 = scmp.eq.s32.totalorder %s56, 0
      %p702 = por %p700, %p701
      %p703 = scmp.ne.s32.totalorder %s689, %s690
      %p704 = scmp.eq.s32.totalorder %s57, 1
      %p705 = por %p703, %p704
      %p707 = scmp.ne.s32.totalorder %s690, %s706
      %p708 = scmp.eq.s32.totalorder %s57, 0
      %p709 = por %p707, %p708
      %p710 = scmp.le.s32.totalorder 1, %s51
      %p711 = scmp.lt.s32.totalorder %s51, 3
      %p712 = pnand %p710, %p711
      %p713 = pneg %p712
      // Predicated region
      $region9: #{tpu_custom_call.1} parent=5 // pred_check
        _
      $region10: #{tpu_custom_call.1} parent=5 // pred_check_branch
        %715 = sbr.rel (%p712) target = $region12
      $region11: #{tpu_custom_call.1} parent=5 // pred_region
        %s716 = ssub.s32 %s51, 1
        // Predicated region
        $region13: #{tpu_custom_call.1} parent=11 // pred_check
          %p717 = pneg %p89
        $region14: #{tpu_custom_call.1} parent=11 // pred_check_branch
          %719 = sbr.rel (%p717) target = $region16
        $region15: #{tpu_custom_call.1} parent=11 // pred_region
          %s720 = smul.u32 6, %s61
          %s722 = ssub.s32 768, 768
          %723 = vsyncadd [#allocation9], %s722
          %s724 = smul.addr %s720, 128
          %s725 = scalar_lea.hbm %s0, %s724
          %s726 = sshll.u32 [#allocation8], 4
          %s727 = int_to_ptr.vmem [resolvable:$true] %s726
          %732 = dma.hbm_to_vmem [thread:$0]  %s725, 768, %s727, [#allocation9], 128, 128, 8
        $region16: #{tpu_custom_call.1} parent=11 // pred_fallthru
          _
        // Predicated region
        $region17: #{tpu_custom_call.1} parent=11 // pred_check
          %p733 = pneg %p110
        $region18: #{tpu_custom_call.1} parent=11 // pred_check_branch
          %735 = sbr.rel (%p733) target = $region20
        $region19: #{tpu_custom_call.1} parent=11 // pred_region
          _
        $region20: #{tpu_custom_call.1} parent=11 // pred_fallthru
          _
        // Predicated region
        $region21: #{tpu_custom_call.1} parent=11 // pred_check
          %p736 = pneg %p131
        $region22: #{tpu_custom_call.1} parent=11 // pred_check_branch
          %738 = sbr.rel (%p736) target = $region24
        $region23: #{tpu_custom_call.1} parent=11 // pred_region
          %s740 = ssub.s32 2048, 2048
          %741 = vsyncadd [#allocation12], %s740
          %s742 = sshll.u32 [#allocation11], 4
          %s743 = int_to_ptr.vmem [resolvable:$true] %s742
          %748 = dma.hbm_to_vmem [thread:$0]  %s2, 2048, %s743, [#allocation12], 128, 128, 8
        $region24: #{tpu_custom_call.1} parent=11 // pred_fallthru
          _
        // Predicated region
        $region25: #{tpu_custom_call.1} parent=11 // pred_check
          %p749 = pneg %p152
        $region26: #{tpu_custom_call.1} parent=11 // pred_check_branch
          %751 = sbr.rel (%p749) target = $region28
        $region27: #{tpu_custom_call.1} parent=11 // pred_region
          %s753 = ssub.s32 2048, 2048
          %754 = vsyncadd [#allocation12], %s753
          %s755 = sshll.u32 [#allocation13], 4
          %s756 = int_to_ptr.vmem [resolvable:$true] %s755
          %761 = dma.hbm_to_vmem [thread:$0]  %s3, 2048, %s756, [#allocation12], 128, 128, 8
        $region28: #{tpu_custom_call.1} parent=11 // pred_fallthru
          _
        // Predicated region
        $region29: #{tpu_custom_call.1} parent=11 // pred_check
          %p762 = pneg %p178
        $region30: #{tpu_custom_call.1} parent=11 // pred_check_branch
          %764 = sbr.rel (%p762) target = $region32
        $region31: #{tpu_custom_call.1} parent=11 // pred_region
          %s766 = ssub.s32 2048, 2048
          %767 = vsyncadd [#allocation15], %s766
          %s768 = smul.addr %s60, 16
          %s769 = smul.addr %s768, 128
          %s770 = scalar_lea.hbm %s4, %s769
          %s771 = sshll.u32 [#allocation14], 4
          %s772 = int_to_ptr.vmem [resolvable:$true] %s771
          %777 = dma.hbm_to_vmem [thread:$0]  %s770, 2048, %s772, [#allocation15], 128, 128, 8
        $region32: #{tpu_custom_call.1} parent=11 // pred_fallthru
          _
        // Predicated region
        $region33: #{tpu_custom_call.1} parent=11 // pred_check
          %p778 = pneg %p199
        $region34: #{tpu_custom_call.1} parent=11 // pred_check_branch
          %780 = sbr.rel (%p778) target = $region36
        $region35: #{tpu_custom_call.1} parent=11 // pred_region
          _
        $region36: #{tpu_custom_call.1} parent=11 // pred_fallthru
          _
        // Predicated region
        $region37: #{tpu_custom_call.1} parent=11 // pred_check
          %p781 = pneg %p220
        $region38: #{tpu_custom_call.1} parent=11 // pred_check_branch
          %783 = sbr.rel (%p781) target = $region40
        $region39: #{tpu_custom_call.1} parent=11 // pred_region
          _
        $region40: #{tpu_custom_call.1} parent=11 // pred_fallthru
          _
        // Predicated region
        $region41: #{tpu_custom_call.1} parent=11 // pred_check
          %p784 = pneg %p246
        $region42: #{tpu_custom_call.1} parent=11 // pred_check_branch
          %786 = sbr.rel (%p784) target = $region44
        $region43: #{tpu_custom_call.1} parent=11 // pred_region
          %p787 = scmp.lt.s32.totalorder %s60, 1
          %s788 = scalar_select %p787, %s60, 1
          %s789 = scalar_lea.vmem %s7, %s788
        $region44: #{tpu_custom_call.1} parent=11 // pred_fallthru
          _
        // Predicated region
        $region45: #{tpu_custom_call.1} parent=11 // pred_check
          %p790 = pneg %p267
        $region46: #{tpu_custom_call.1} parent=11 // pred_check_branch
          %792 = sbr.rel (%p790) target = $region48
        $region47: #{tpu_custom_call.1} parent=11 // pred_region
          %s794 = ssub.s32 2048, 2048
          %795 = vsyncadd [#allocation15], %s794
          %s796 = sshll.u32 [#allocation16], 4
          %s797 = int_to_ptr.vmem [resolvable:$true] %s796
          %802 = dma.hbm_to_vmem [thread:$0]  %s8, 2048, %s797, [#allocation15], 128, 128, 8
        $region48: #{tpu_custom_call.1} parent=11 // pred_fallthru
          _
        // Predicated region
        $region49: #{tpu_custom_call.1} parent=11 // pred_check
          %p803 = pneg %p288
        $region50: #{tpu_custom_call.1} parent=11 // pred_check_branch
          %805 = sbr.rel (%p803) target = $region52
        $region51: #{tpu_custom_call.1} parent=11 // pred_region
          %s807 = ssub.s32 2048, 2048
          %808 = vsyncadd [#allocation18], %s807
          %s809 = sshll.u32 [#allocation17], 4
          %s810 = int_to_ptr.vmem [resolvable:$true] %s809
          %815 = dma.hbm_to_vmem [thread:$0]  %s9, 2048, %s810, [#allocation18], 128, 128, 8
        $region52: #{tpu_custom_call.1} parent=11 // pred_fallthru
          _
        // Predicated region
        $region53: #{tpu_custom_call.1} parent=11 // pred_check
          %p816 = pneg %p314
        $region54: #{tpu_custom_call.1} parent=11 // pred_check_branch
          %818 = sbr.rel (%p816) target = $region56
        $region55: #{tpu_custom_call.1} parent=11 // pred_region
          %s820 = ssub.s32 2048, 2048
          %821 = vsyncadd [#allocation18], %s820
          %s822 = smul.addr %s60, 16
          %s823 = smul.addr %s822, 128
          %s824 = scalar_lea.hbm %s10, %s823
          %s825 = sshll.u32 [#allocation19], 4
          %s826 = int_to_ptr.vmem [resolvable:$true] %s825
          %831 = dma.hbm_to_vmem [thread:$0]  %s824, 2048, %s826, [#allocation18], 128, 128, 8
        $region56: #{tpu_custom_call.1} parent=11 // pred_fallthru
          _
        // Predicated region
        $region57: #{tpu_custom_call.1} parent=11 // pred_check
          %p832 = pneg %p335
        $region58: #{tpu_custom_call.1} parent=11 // pred_check_branch
          %834 = sbr.rel (%p832) target = $region60
        $region59: #{tpu_custom_call.1} parent=11 // pred_region
          _
        $region60: #{tpu_custom_call.1} parent=11 // pred_fallthru
          _
        // Predicated region
        $region61: #{tpu_custom_call.1} parent=11 // pred_check
          %p835 = pneg %p356
        $region62: #{tpu_custom_call.1} parent=11 // pred_check_branch
          %837 = sbr.rel (%p835) target = $region64
        $region63: #{tpu_custom_call.1} parent=11 // pred_region
          _
        $region64: #{tpu_custom_call.1} parent=11 // pred_fallthru
          _
        // Predicated region
        $region65: #{tpu_custom_call.1} parent=11 // pred_check
          %p838 = pneg %p382
        $region66: #{tpu_custom_call.1} parent=11 // pred_check_branch
          %840 = sbr.rel (%p838) target = $region68
        $region67: #{tpu_custom_call.1} parent=11 // pred_region
          %p841 = scmp.lt.s32.totalorder %s60, 1
          %s842 = scalar_select %p841, %s60, 1
          %s843 = scalar_lea.vmem %s13, %s842
        $region68: #{tpu_custom_call.1} parent=11 // pred_fallthru
          _
        // Predicated region
        $region69: #{tpu_custom_call.1} parent=11 // pred_check
          %p844 = pneg %p403
        $region70: #{tpu_custom_call.1} parent=11 // pred_check_branch
          %846 = sbr.rel (%p844) target = $region72
        $region71: #{tpu_custom_call.1} parent=11 // pred_region
          %s848 = ssub.s32 2048, 2048
          %849 = vsyncadd [#allocation21], %s848
          %s850 = sshll.u32 [#allocation20], 4
          %s851 = int_to_ptr.vmem [resolvable:$true] %s850
          %856 = dma.hbm_to_vmem [thread:$0]  %s14, 2048, %s851, [#allocation21], 128, 128, 8
        $region72: #{tpu_custom_call.1} parent=11 // pred_fallthru
          _
        // Predicated region
        $region73: #{tpu_custom_call.1} parent=11 // pred_check
          %p857 = pneg %p424
        $region74: #{tpu_custom_call.1} parent=11 // pred_check_branch
          %859 = sbr.rel (%p857) target = $region76
        $region75: #{tpu_custom_call.1} parent=11 // pred_region
          %s861 = ssub.s32 2048, 2048
          %862 = vsyncadd [#allocation21], %s861
          %s863 = sshll.u32 [#allocation22], 4
          %s864 = int_to_ptr.vmem [resolvable:$true] %s863
          %869 = dma.hbm_to_vmem [thread:$0]  %s15, 2048, %s864, [#allocation21], 128, 128, 8
        $region76: #{tpu_custom_call.1} parent=11 // pred_fallthru
          _
        // Predicated region
        $region77: #{tpu_custom_call.1} parent=11 // pred_check
          %p870 = pneg %p450
        $region78: #{tpu_custom_call.1} parent=11 // pred_check_branch
          %872 = sbr.rel (%p870) target = $region80
        $region79: #{tpu_custom_call.1} parent=11 // pred_region
          %s874 = ssub.s32 2048, 2048
          %875 = vsyncadd [#allocation24], %s874
          %s876 = smul.addr %s60, 16
          %s877 = smul.addr %s876, 128
          %s878 = scalar_lea.hbm %s16, %s877
          %s879 = sshll.u32 [#allocation23], 4
          %s880 = int_to_ptr.vmem [resolvable:$true] %s879
          %885 = dma.hbm_to_vmem [thread:$0]  %s878, 2048, %s880, [#allocation24], 128, 128, 8
        $region80: #{tpu_custom_call.1} parent=11 // pred_fallthru
          _
        // Predicated region
        $region81: #{tpu_custom_call.1} parent=11 // pred_check
          %p886 = pneg %p471
        $region82: #{tpu_custom_call.1} parent=11 // pred_check_branch
          %888 = sbr.rel (%p886) target = $region84
        $region83: #{tpu_custom_call.1} parent=11 // pred_region
          _
        $region84: #{tpu_custom_call.1} parent=11 // pred_fallthru
          _
        // Predicated region
        $region85: #{tpu_custom_call.1} parent=11 // pred_check
          %p889 = pneg %p492
        $region86: #{tpu_custom_call.1} parent=11 // pred_check_branch
          %891 = sbr.rel (%p889) target = $region88
        $region87: #{tpu_custom_call.1} parent=11 // pred_region
          _
        $region88: #{tpu_custom_call.1} parent=11 // pred_fallthru
          _
        // Predicated region
        $region89: #{tpu_custom_call.1} parent=11 // pred_check
          %p892 = pneg %p518
        $region90: #{tpu_custom_call.1} parent=11 // pred_check_branch
          %894 = sbr.rel (%p892) target = $region92
        $region91: #{tpu_custom_call.1} parent=11 // pred_region
          %p895 = scmp.lt.s32.totalorder %s60, 1
          %s896 = scalar_select %p895, %s60, 1
          %s897 = scalar_lea.vmem %s19, %s896
        $region92: #{tpu_custom_call.1} parent=11 // pred_fallthru
          _
      $region12: #{tpu_custom_call.1} parent=5 // pred_fallthru
        _
      %p898 = scmp.lt.s32.totalorder %s51, 2
      // Predicated region
      $region93: #{tpu_custom_call.1} parent=5 // pred_check
        %p899 = pneg %p898
      $region94: #{tpu_custom_call.1} parent=5 // pred_check_branch
        %901 = sbr.rel (%p899) target = $region96
      $region95: #{tpu_custom_call.1} parent=5 // pred_region
        _
      $region96: #{tpu_custom_call.1} parent=5 // pred_fallthru
        _
      %p902 = scmp.le.s32.totalorder 1, %s51
      %p903 = scmp.lt.s32.totalorder %s51, 3
      %p904 = pnand %p902, %p903
      %p905 = pneg %p904
      // Predicated region
      $region97: #{tpu_custom_call.1} parent=5 // pred_check
        _
      $region98: #{tpu_custom_call.1} parent=5 // pred_check_branch
        %907 = sbr.rel (%p904) target = $region100
      $region99: #{tpu_custom_call.1} parent=5 // pred_region
        %s908 = ssub.s32 %s51, 1
        // Predicated region
        $region101: #{tpu_custom_call.1} parent=99 // pred_check
          %p909 = pneg %p89
        $region102: #{tpu_custom_call.1} parent=99 // pred_check_branch
          %911 = sbr.rel (%p909) target = $region104
        $region103: #{tpu_custom_call.1} parent=99 // pred_region
          %912 = dma.done [#allocation9], 768
        $region104: #{tpu_custom_call.1} parent=99 // pred_fallthru
          _
        // Predicated region
        $region105: #{tpu_custom_call.1} parent=99 // pred_check
          %p913 = pneg %p131
        $region106: #{tpu_custom_call.1} parent=99 // pred_check_branch
          %915 = sbr.rel (%p913) target = $region108
        $region107: #{tpu_custom_call.1} parent=99 // pred_region
          %916 = dma.done [#allocation12], 2048
        $region108: #{tpu_custom_call.1} parent=99 // pred_fallthru
          _
        // Predicated region
        $region109: #{tpu_custom_call.1} parent=99 // pred_check
          %p917 = pneg %p152
        $region110: #{tpu_custom_call.1} parent=99 // pred_check_branch
          %919 = sbr.rel (%p917) target = $region112
        $region111: #{tpu_custom_call.1} parent=99 // pred_region
          %920 = dma.done [#allocation12], 2048
        $region112: #{tpu_custom_call.1} parent=99 // pred_fallthru
          _
        // Predicated region
        $region113: #{tpu_custom_call.1} parent=99 // pred_check
          %p921 = pneg %p178
        $region114: #{tpu_custom_call.1} parent=99 // pred_check_branch
          %923 = sbr.rel (%p921) target = $region116
        $region115: #{tpu_custom_call.1} parent=99 // pred_region
          %924 = dma.done [#allocation15], 2048
        $region116: #{tpu_custom_call.1} parent=99 // pred_fallthru
          _
        // Predicated region
        $region117: #{tpu_custom_call.1} parent=99 // pred_check
          %p925 = pneg %p267
        $region118: #{tpu_custom_call.1} parent=99 // pred_check_branch
          %927 = sbr.rel (%p925) target = $region120
        $region119: #{tpu_custom_call.1} parent=99 // pred_region
          %928 = dma.done [#allocation15], 2048
        $region120: #{tpu_custom_call.1} parent=99 // pred_fallthru
          _
        // Predicated region
        $region121: #{tpu_custom_call.1} parent=99 // pred_check
          %p929 = pneg %p288
        $region122: #{tpu_custom_call.1} parent=99 // pred_check_branch
          %931 = sbr.rel (%p929) target = $region124
        $region123: #{tpu_custom_call.1} parent=99 // pred_region
          %932 = dma.done [#allocation18], 2048
        $region124: #{tpu_custom_call.1} parent=99 // pred_fallthru
          _
        // Predicated region
        $region125: #{tpu_custom_call.1} parent=99 // pred_check
          %p933 = pneg %p314
        $region126: #{tpu_custom_call.1} parent=99 // pred_check_branch
          %935 = sbr.rel (%p933) target = $region128
        $region127: #{tpu_custom_call.1} parent=99 // pred_region
          %936 = dma.done [#allocation18], 2048
        $region128: #{tpu_custom_call.1} parent=99 // pred_fallthru
          _
        // Predicated region
        $region129: #{tpu_custom_call.1} parent=99 // pred_check
          %p937 = pneg %p403
        $region130: #{tpu_custom_call.1} parent=99 // pred_check_branch
          %939 = sbr.rel (%p937) target = $region132
        $region131: #{tpu_custom_call.1} parent=99 // pred_region
          %940 = dma.done [#allocation21], 2048
        $region132: #{tpu_custom_call.1} parent=99 // pred_fallthru
          _
        // Predicated region
        $region133: #{tpu_custom_call.1} parent=99 // pred_check
          %p941 = pneg %p424
        $region134: #{tpu_custom_call.1} parent=99 // pred_check_branch
          %943 = sbr.rel (%p941) target = $region136
        $region135: #{tpu_custom_call.1} parent=99 // pred_region
          %944 = dma.done [#allocation21], 2048
        $region136: #{tpu_custom_call.1} parent=99 // pred_fallthru
          _
        // Predicated region
        $region137: #{tpu_custom_call.1} parent=99 // pred_check
          %p945 = pneg %p450
        $region138: #{tpu_custom_call.1} parent=99 // pred_check_branch
          %947 = sbr.rel (%p945) target = $region140
        $region139: #{tpu_custom_call.1} parent=99 // pred_region
          %948 = dma.done [#allocation24], 2048
        $region140: #{tpu_custom_call.1} parent=99 // pred_fallthru
          _
        %p949 = pneg %p89
        %p950 = pneg %p86
        %p951 = pneg %p110
        %p952 = pneg %p107
        %p953 = pneg %p131
        %p954 = pneg %p128
        %p955 = pneg %p152
        %p956 = pneg %p149
        %p957 = pneg %p178
        %p958 = pneg %p175
        %p959 = pneg %p199
        %p960 = pneg %p196
        %p961 = pneg %p220
        %p962 = pneg %p217
        %p963 = scmp.lt.s32.totalorder %s60, 1
        %s964 = scalar_select %p963, %s60, 1
        %s965 = scalar_lea.vmem %s7, %s964
        %p966 = pneg %p246
        %p967 = pneg %p243
        %p968 = pneg %p267
        %p969 = pneg %p264
        %p970 = pneg %p288
        %p971 = pneg %p285
        %p972 = pneg %p314
        %p973 = pneg %p311
        %p974 = pneg %p335
        %p975 = pneg %p332
        %p976 = pneg %p356
        %p977 = pneg %p353
        %p978 = scmp.lt.s32.totalorder %s60, 1
        %s979 = scalar_select %p978, %s60, 1
        %s980 = scalar_lea.vmem %s13, %s979
        %p981 = pneg %p382
        %p982 = pneg %p379
        %p983 = pneg %p403
        %p984 = pneg %p400
        %p985 = pneg %p424
        %p986 = pneg %p421
        %p987 = pneg %p450
        %p988 = pneg %p447
        %p989 = pneg %p471
        %p990 = pneg %p468
        %p991 = pneg %p492
        %p992 = pneg %p489
        %p993 = scmp.lt.s32.totalorder %s60, 1
        %s994 = scalar_select %p993, %s60, 1
        %s995 = scalar_lea.vmem %s19, %s994
        %p996 = pneg %p518
        %p997 = pneg %p515
        %p998 = pneg %p546
        %p999 = pneg %p543
        %s1000 = sand.u32 %s533, 1
        %s1001 = scalar_lea.sflag [#allocation10], %s1000
        %s1002 = sand.u32 %s533, 1
        %s1003 = smul.addr %s1002, 48
        %s1004 = scalar_lea.vmem [#allocation25], %s1003
        %p1005 = pneg %p572
        %p1006 = pneg %p569
        %s1007 = sand.u32 %s56, 1
        %s1008 = scalar_lea.sflag [#allocation27], %s1007
        %s1009 = sand.u32 %s559, 1
        %s1010 = smul.addr %s1009, 128
        %s1011 = scalar_lea.vmem [#allocation26], %s1010
        %p1012 = pneg %p598
        %p1013 = pneg %p595
        %s1014 = sand.u32 %s56, 1
        %s1015 = scalar_lea.sflag [#allocation27], %s1014
        %s1016 = sand.u32 %s585, 1
        %s1017 = smul.addr %s1016, 128
        %s1018 = scalar_lea.vmem [#allocation28], %s1017
        %p1019 = pneg %p624
        %p1020 = pneg %p621
        %s1021 = sand.u32 %s56, 1
        %s1022 = scalar_lea.sflag [#allocation30], %s1021
        %s1023 = sand.u32 %s611, 1
        %s1024 = smul.addr %s1023, 128
        %s1025 = scalar_lea.vmem [#allocation29], %s1024
        %p1026 = pneg %p650
        %p1027 = pneg %p647
        %s1028 = sand.u32 %s56, 1
        %s1029 = scalar_lea.sflag [#allocation30], %s1028
        %s1030 = sand.u32 %s637, 1
        %s1031 = scalar_lea.vmem [#allocation31], %s1030
        %p1032 = pneg %p676
        %p1033 = pneg %p673
        %s1034 = sand.u32 %s56, 1
        %s1035 = scalar_lea.sflag [#allocation33], %s1034
        %s1036 = sand.u32 %s663, 1
        %s1037 = scalar_lea.vmem [#allocation32], %s1036
        %p1038 = pneg %p702
        %p1039 = pneg %p699
        %s1040 = sand.u32 %s56, 1
        %s1041 = scalar_lea.sflag [#allocation33], %s1040
        %s1042 = sand.u32 %s689, 1
        %s1043 = scalar_lea.vmem [#allocation34], %s1042
        %s1044 = smul.u32 6, %s61
        %p1045 = scmp.lt.s32.totalorder %s60, 1
        %s1046 = scalar_select %p1045, %s60, 1
        %s1047 = scalar_lea.vmem %s7, %s1046
        %p1048 = scmp.lt.s32.totalorder %s60, 1
        %s1049 = scalar_select %p1048, %s60, 1
        %s1050 = scalar_lea.vmem %s13, %s1049
        %p1051 = scmp.lt.s32.totalorder %s60, 1
        %s1052 = scalar_select %p1051, %s60, 1
        %s1053 = scalar_lea.vmem %s19, %s1052
        %s1054 = smul.u32 6, %s61
        %p1055 = scmp.eq.s32.totalorder %s61, 0
        // Predicated region
        $region141: #{tpu_custom_call.1} parent=99 // pred_check
          %p1056 = pneg %p1055
        $region142: #{tpu_custom_call.1} parent=99 // pred_check_branch
          %1058 = sbr.rel (%p1056) target = $region144
        $region143: #{tpu_custom_call.1} parent=99 // pred_region
          %v1059 = vld [vmem:[#allocation11] sm:$0xff]
          %v1060 = vld [vmem:[#allocation11 + $0x8] sm:$0xff]
          %v1061 = vld [vmem:[#allocation11 + $0x10] sm:$0xff]
          %v1062 = vld [vmem:[#allocation11 + $0x18] sm:$0xff]
          %v1063 = vld [vmem:[#allocation11 + $0x20] sm:$0xff]
          %v1064 = vld [vmem:[#allocation11 + $0x28] sm:$0xff]
          %v1065 = vld [vmem:[#allocation11 + $0x30] sm:$0xff]
          %v1066 = vld [vmem:[#allocation11 + $0x38] sm:$0xff]
          %v1067 = vld [vmem:[#allocation11 + $0x40] sm:$0xff]
          %v1068 = vld [vmem:[#allocation11 + $0x48] sm:$0xff]
          %v1069 = vld [vmem:[#allocation11 + $0x50] sm:$0xff]
          %v1070 = vld [vmem:[#allocation11 + $0x58] sm:$0xff]
          %v1071 = vld [vmem:[#allocation11 + $0x60] sm:$0xff]
          %v1072 = vld [vmem:[#allocation11 + $0x68] sm:$0xff]
          %v1073 = vld [vmem:[#allocation11 + $0x70] sm:$0xff]
          %v1074 = vld [vmem:[#allocation11 + $0x78] sm:$0xff]
          %v1075 = vld [vmem:[#allocation13] sm:$0xff]
          %v1076 = vld [vmem:[#allocation13 + $0x8] sm:$0xff]
          %v1077 = vld [vmem:[#allocation13 + $0x10] sm:$0xff]
          %v1078 = vld [vmem:[#allocation13 + $0x18] sm:$0xff]
          %v1079 = vld [vmem:[#allocation13 + $0x20] sm:$0xff]
          %v1080 = vld [vmem:[#allocation13 + $0x28] sm:$0xff]
          %v1081 = vld [vmem:[#allocation13 + $0x30] sm:$0xff]
          %v1082 = vld [vmem:[#allocation13 + $0x38] sm:$0xff]
          %v1083 = vld [vmem:[#allocation13 + $0x40] sm:$0xff]
          %v1084 = vld [vmem:[#allocation13 + $0x48] sm:$0xff]
          %v1085 = vld [vmem:[#allocation13 + $0x50] sm:$0xff]
          %v1086 = vld [vmem:[#allocation13 + $0x58] sm:$0xff]
          %v1087 = vld [vmem:[#allocation13 + $0x60] sm:$0xff]
          %v1088 = vld [vmem:[#allocation13 + $0x68] sm:$0xff]
          %v1089 = vld [vmem:[#allocation13 + $0x70] sm:$0xff]
          %v1090 = vld [vmem:[#allocation13 + $0x78] sm:$0xff]
          %v1091 = vmax.f32 %v1075, 0.0
          %v1092 = vmax.f32 %v1076, 0.0
          %v1093 = vmax.f32 %v1077, 0.0
          %v1094 = vmax.f32 %v1078, 0.0
          %v1095 = vmax.f32 %v1079, 0.0
          %v1096 = vmax.f32 %v1080, 0.0
          %v1097 = vmax.f32 %v1081, 0.0
          %v1098 = vmax.f32 %v1082, 0.0
          %v1099 = vmax.f32 %v1083, 0.0
          %v1100 = vmax.f32 %v1084, 0.0
          %v1101 = vmax.f32 %v1085, 0.0
          %v1102 = vmax.f32 %v1086, 0.0
          %v1103 = vmax.f32 %v1087, 0.0
          %v1104 = vmax.f32 %v1088, 0.0
          %v1105 = vmax.f32 %v1089, 0.0
          %v1106 = vmax.f32 %v1090, 0.0
          %v1107 = vand.u32 2147483647, %v1075
          %v1108 = vand.u32 2147483647, %v1076
          %v1109 = vand.u32 2147483647, %v1077
          %v1110 = vand.u32 2147483647, %v1078
          %v1111 = vand.u32 2147483647, %v1079
          %v1112 = vand.u32 2147483647, %v1080
          %v1113 = vand.u32 2147483647, %v1081
          %v1114 = vand.u32 2147483647, %v1082
          %v1115 = vand.u32 2147483647, %v1083
          %v1116 = vand.u32 2147483647, %v1084
          %v1117 = vand.u32 2147483647, %v1085
          %v1118 = vand.u32 2147483647, %v1086
          %v1119 = vand.u32 2147483647, %v1087
          %v1120 = vand.u32 2147483647, %v1088
          %v1121 = vand.u32 2147483647, %v1089
          %v1122 = vand.u32 2147483647, %v1090
          %v1123 = vsub.f32 0.0, %v1107
          %v1124 = vsub.f32 0.0, %v1108
          %v1125 = vsub.f32 0.0, %v1109
          %v1126 = vsub.f32 0.0, %v1110
          %v1127 = vsub.f32 0.0, %v1111
          %v1128 = vsub.f32 0.0, %v1112
          %v1129 = vsub.f32 0.0, %v1113
          %v1130 = vsub.f32 0.0, %v1114
          %v1131 = vsub.f32 0.0, %v1115
          %v1132 = vsub.f32 0.0, %v1116
          %v1133 = vsub.f32 0.0, %v1117
          %v1134 = vsub.f32 0.0, %v1118
          %v1135 = vsub.f32 0.0, %v1119
          %v1136 = vsub.f32 0.0, %v1120
          %v1137 = vsub.f32 0.0, %v1121
          %v1138 = vsub.f32 0.0, %v1122
          %v1139 = vmul.f32 %v1123, 1.442695
          %v1140 = vpow.pop %v1139
          %v1141 = vmul.f32 %v1124, 1.442695
          %v1142 = vpow.pop %v1141
          %v1143 = vmul.f32 %v1125, 1.442695
          %v1144 = vpow.pop %v1143
          %v1145 = vmul.f32 %v1126, 1.442695
          %v1146 = vpow.pop %v1145
          %v1147 = vmul.f32 %v1127, 1.442695
          %v1148 = vpow.pop %v1147
          %v1149 = vmul.f32 %v1128, 1.442695
          %v1150 = vpow.pop %v1149
          %v1151 = vmul.f32 %v1129, 1.442695
          %v1152 = vpow.pop %v1151
          %v1153 = vmul.f32 %v1130, 1.442695
          %v1154 = vpow.pop %v1153
          %v1155 = vmul.f32 %v1131, 1.442695
          %v1156 = vpow.pop %v1155
          %v1157 = vmul.f32 %v1132, 1.442695
          %v1158 = vpow.pop %v1157
          %v1159 = vmul.f32 %v1133, 1.442695
          %v1160 = vpow.pop %v1159
          %v1161 = vmul.f32 %v1134, 1.442695
          %v1162 = vpow.pop %v1161
          %v1163 = vmul.f32 %v1135, 1.442695
          %v1164 = vpow.pop %v1163
          %v1165 = vmul.f32 %v1136, 1.442695
          %v1166 = vpow.pop %v1165
          %v1167 = vmul.f32 %v1137, 1.442695
          %v1168 = vpow.pop %v1167
          %v1169 = vmul.f32 %v1138, 1.442695
          %v1170 = vpow.pop %v1169
          %v1171 = vadd.f32 %v1140, 1.0
          %v1172 = vlog2.pop %v1171
          %v1173 = vmul.f32 %v1172, 0.6931472
          %v1174 = vmul.f32 -0.5, %v1140
          %v1175 = vadd.f32 %v1174, 1.0
          %v1176 = vmul.f32 %v1175, %v1140
          %v1177 = vand.u32 2147483647, %v1140
          %vm1178 = vcmp.lt.f32.partialorder %v1177, 0.0004427343
          %v1179 = vsel %vm1178, %v1176, %v1173
          %v1180 = vadd.f32 %v1142, 1.0
          %v1181 = vlog2.pop %v1180
          %v1182 = vmul.f32 %v1181, 0.6931472
          %v1183 = vmul.f32 -0.5, %v1142
          %v1184 = vadd.f32 %v1183, 1.0
          %v1185 = vmul.f32 %v1184, %v1142
          %v1186 = vand.u32 2147483647, %v1142
          %vm1187 = vcmp.lt.f32.partialorder %v1186, 0.0004427343
          %v1188 = vsel %vm1187, %v1185, %v1182
          %v1189 = vadd.f32 %v1144, 1.0
          %v1190 = vlog2.pop %v1189
          %v1191 = vmul.f32 %v1190, 0.6931472
          %v1192 = vmul.f32 -0.5, %v1144
          %v1193 = vadd.f32 %v1192, 1.0
          %v1194 = vmul.f32 %v1193, %v1144
          %v1195 = vand.u32 2147483647, %v1144
          %vm1196 = vcmp.lt.f32.partialorder %v1195, 0.0004427343
          %v1197 = vsel %vm1196, %v1194, %v1191
          %v1198 = vadd.f32 %v1146, 1.0
          %v1199 = vlog2.pop %v1198
          %v1200 = vmul.f32 %v1199, 0.6931472
          %v1201 = vmul.f32 -0.5, %v1146
          %v1202 = vadd.f32 %v1201, 1.0
          %v1203 = vmul.f32 %v1202, %v1146
          %v1204 = vand.u32 2147483647, %v1146
          %vm1205 = vcmp.lt.f32.partialorder %v1204, 0.0004427343
          %v1206 = vsel %vm1205, %v1203, %v1200
          %v1207 = vadd.f32 %v1148, 1.0
          %v1208 = vlog2.pop %v1207
          %v1209 = vmul.f32 %v1208, 0.6931472
          %v1210 = vmul.f32 -0.5, %v1148
          %v1211 = vadd.f32 %v1210, 1.0
          %v1212 = vmul.f32 %v1211, %v1148
          %v1213 = vand.u32 2147483647, %v1148
          %vm1214 = vcmp.lt.f32.partialorder %v1213, 0.0004427343
          %v1215 = vsel %vm1214, %v1212, %v1209
          %v1216 = vadd.f32 %v1150, 1.0
          %v1217 = vlog2.pop %v1216
          %v1218 = vmul.f32 %v1217, 0.6931472
          %v1219 = vmul.f32 -0.5, %v1150
          %v1220 = vadd.f32 %v1219, 1.0
          %v1221 = vmul.f32 %v1220, %v1150
          %v1222 = vand.u32 2147483647, %v1150
          %vm1223 = vcmp.lt.f32.partialorder %v1222, 0.0004427343
          %v1224 = vsel %vm1223, %v1221, %v1218
          %v1225 = vadd.f32 %v1152, 1.0
          %v1226 = vlog2.pop %v1225
          %v1227 = vmul.f32 %v1226, 0.6931472
          %v1228 = vmul.f32 -0.5, %v1152
          %v1229 = vadd.f32 %v1228, 1.0
          %v1230 = vmul.f32 %v1229, %v1152
          %v1231 = vand.u32 2147483647, %v1152
          %vm1232 = vcmp.lt.f32.partialorder %v1231, 0.0004427343
          %v1233 = vsel %vm1232, %v1230, %v1227
          %v1234 = vadd.f32 %v1154, 1.0
          %v1235 = vlog2.pop %v1234
          %v1236 = vmul.f32 %v1235, 0.6931472
          %v1237 = vmul.f32 -0.5, %v1154
          %v1238 = vadd.f32 %v1237, 1.0
          %v1239 = vmul.f32 %v1238, %v1154
          %v1240 = vand.u32 2147483647, %v1154
          %vm1241 = vcmp.lt.f32.partialorder %v1240, 0.0004427343
          %v1242 = vsel %vm1241, %v1239, %v1236
          %v1243 = vadd.f32 %v1156, 1.0
          %v1244 = vlog2.pop %v1243
          %v1245 = vmul.f32 %v1244, 0.6931472
          %v1246 = vmul.f32 -0.5, %v1156
          %v1247 = vadd.f32 %v1246, 1.0
          %v1248 = vmul.f32 %v1247, %v1156
          %v1249 = vand.u32 2147483647, %v1156
          %vm1250 = vcmp.lt.f32.partialorder %v1249, 0.0004427343
          %v1251 = vsel %vm1250, %v1248, %v1245
          %v1252 = vadd.f32 %v1158, 1.0
          %v1253 = vlog2.pop %v1252
          %v1254 = vmul.f32 %v1253, 0.6931472
          %v1255 = vmul.f32 -0.5, %v1158
          %v1256 = vadd.f32 %v1255, 1.0
          %v1257 = vmul.f32 %v1256, %v1158
          %v1258 = vand.u32 2147483647, %v1158
          %vm1259 = vcmp.lt.f32.partialorder %v1258, 0.0004427343
          %v1260 = vsel %vm1259, %v1257, %v1254
          %v1261 = vadd.f32 %v1160, 1.0
          %v1262 = vlog2.pop %v1261
          %v1263 = vmul.f32 %v1262, 0.6931472
          %v1264 = vmul.f32 -0.5, %v1160
          %v1265 = vadd.f32 %v1264, 1.0
          %v1266 = vmul.f32 %v1265, %v1160
          %v1267 = vand.u32 2147483647, %v1160
          %vm1268 = vcmp.lt.f32.partialorder %v1267, 0.0004427343
          %v1269 = vsel %vm1268, %v1266, %v1263
          %v1270 = vadd.f32 %v1162, 1.0
          %v1271 = vlog2.pop %v1270
          %v1272 = vmul.f32 %v1271, 0.6931472
          %v1273 = vmul.f32 -0.5, %v1162
          %v1274 = vadd.f32 %v1273, 1.0
          %v1275 = vmul.f32 %v1274, %v1162
          %v1276 = vand.u32 2147483647, %v1162
          %vm1277 = vcmp.lt.f32.partialorder %v1276, 0.0004427343
          %v1278 = vsel %vm1277, %v1275, %v1272
          %v1279 = vadd.f32 %v1164, 1.0
          %v1280 = vlog2.pop %v1279
          %v1281 = vmul.f32 %v1280, 0.6931472
          %v1282 = vmul.f32 -0.5, %v1164
          %v1283 = vadd.f32 %v1282, 1.0
          %v1284 = vmul.f32 %v1283, %v1164
          %v1285 = vand.u32 2147483647, %v1164
          %vm1286 = vcmp.lt.f32.partialorder %v1285, 0.0004427343
          %v1287 = vsel %vm1286, %v1284, %v1281
          %v1288 = vadd.f32 %v1166, 1.0
          %v1289 = vlog2.pop %v1288
          %v1290 = vmul.f32 %v1289, 0.6931472
          %v1291 = vmul.f32 -0.5, %v1166
          %v1292 = vadd.f32 %v1291, 1.0
          %v1293 = vmul.f32 %v1292, %v1166
          %v1294 = vand.u32 2147483647, %v1166
          %vm1295 = vcmp.lt.f32.partialorder %v1294, 0.0004427343
          %v1296 = vsel %vm1295, %v1293, %v1290
          %v1297 = vadd.f32 %v1168, 1.0
          %v1298 = vlog2.pop %v1297
          %v1299 = vmul.f32 %v1298, 0.6931472
          %v1300 = vmul.f32 -0.5, %v1168
          %v1301 = vadd.f32 %v1300, 1.0
          %v1302 = vmul.f32 %v1301, %v1168
          %v1303 = vand.u32 2147483647, %v1168
          %vm1304 = vcmp.lt.f32.partialorder %v1303, 0.0004427343
          %v1305 = vsel %vm1304, %v1302, %v1299
          %v1306 = vadd.f32 %v1170, 1.0
          %v1307 = vlog2.pop %v1306
          %v1308 = vmul.f32 %v1307, 0.6931472
          %v1309 = vmul.f32 -0.5, %v1170
          %v1310 = vadd.f32 %v1309, 1.0
          %v1311 = vmul.f32 %v1310, %v1170
          %v1312 = vand.u32 2147483647, %v1170
          %vm1313 = vcmp.lt.f32.partialorder %v1312, 0.0004427343
          %v1314 = vsel %vm1313, %v1311, %v1308
          %v1315 = vadd.f32 %v1091, %v1179
          %v1316 = vadd.f32 %v1092, %v1188
          %v1317 = vadd.f32 %v1093, %v1197
          %v1318 = vadd.f32 %v1094, %v1206
          %v1319 = vadd.f32 %v1095, %v1215
          %v1320 = vadd.f32 %v1096, %v1224
          %v1321 = vadd.f32 %v1097, %v1233
          %v1322 = vadd.f32 %v1098, %v1242
          %v1323 = vadd.f32 %v1099, %v1251
          %v1324 = vadd.f32 %v1100, %v1260
          %v1325 = vadd.f32 %v1101, %v1269
          %v1326 = vadd.f32 %v1102, %v1278
          %v1327 = vadd.f32 %v1103, %v1287
          %v1328 = vadd.f32 %v1104, %v1296
          %v1329 = vadd.f32 %v1105, %v1305
          %v1330 = vadd.f32 %v1106, %v1314
          %v1331 = vld [vmem:[#allocation14] sm:$0xff]
          %v1332 = vld [vmem:[#allocation14 + $0x8] sm:$0xff]
          %v1333 = vld [vmem:[#allocation14 + $0x10] sm:$0xff]
          %v1334 = vld [vmem:[#allocation14 + $0x18] sm:$0xff]
          %v1335 = vld [vmem:[#allocation14 + $0x20] sm:$0xff]
          %v1336 = vld [vmem:[#allocation14 + $0x28] sm:$0xff]
          %v1337 = vld [vmem:[#allocation14 + $0x30] sm:$0xff]
          %v1338 = vld [vmem:[#allocation14 + $0x38] sm:$0xff]
          %v1339 = vld [vmem:[#allocation14 + $0x40] sm:$0xff]
          %v1340 = vld [vmem:[#allocation14 + $0x48] sm:$0xff]
          %v1341 = vld [vmem:[#allocation14 + $0x50] sm:$0xff]
          %v1342 = vld [vmem:[#allocation14 + $0x58] sm:$0xff]
          %v1343 = vld [vmem:[#allocation14 + $0x60] sm:$0xff]
          %v1344 = vld [vmem:[#allocation14 + $0x68] sm:$0xff]
          %v1345 = vld [vmem:[#allocation14 + $0x70] sm:$0xff]
          %v1346 = vld [vmem:[#allocation14 + $0x78] sm:$0xff]
          %v1347 = vmul.f32 %v1315, %v1331
          %v1348 = vmul.f32 %v1316, %v1332
          %v1349 = vmul.f32 %v1317, %v1333
          %v1350 = vmul.f32 %v1318, %v1334
          %v1351 = vmul.f32 %v1319, %v1335
          %v1352 = vmul.f32 %v1320, %v1336
          %v1353 = vmul.f32 %v1321, %v1337
          %v1354 = vmul.f32 %v1322, %v1338
          %v1355 = vmul.f32 %v1323, %v1339
          %v1356 = vmul.f32 %v1324, %v1340
          %v1357 = vmul.f32 %v1325, %v1341
          %v1358 = vmul.f32 %v1326, %v1342
          %v1359 = vmul.f32 %v1327, %v1343
          %v1360 = vmul.f32 %v1328, %v1344
          %v1361 = vmul.f32 %v1329, %v1345
          %v1362 = vmul.f32 %v1330, %v1346
          %v1363 = vadd.f32 %v1059, %v1347
          %v1364 = vadd.f32 %v1060, %v1348
          %v1365 = vadd.f32 %v1061, %v1349
          %v1366 = vadd.f32 %v1062, %v1350
          %v1367 = vadd.f32 %v1063, %v1351
          %v1368 = vadd.f32 %v1064, %v1352
          %v1369 = vadd.f32 %v1065, %v1353
          %v1370 = vadd.f32 %v1066, %v1354
          %v1371 = vadd.f32 %v1067, %v1355
          %v1372 = vadd.f32 %v1068, %v1356
          %v1373 = vadd.f32 %v1069, %v1357
          %v1374 = vadd.f32 %v1070, %v1358
          %v1375 = vadd.f32 %v1071, %v1359
          %v1376 = vadd.f32 %v1072, %v1360
          %v1377 = vadd.f32 %v1073, %v1361
          %v1378 = vadd.f32 %v1074, %v1362
          %1379 = vst [vmem:[#allocation2] sm:$0xff] %v1363
          %1380 = vst [vmem:[#allocation2 + $0x8] sm:$0xff] %v1364
          %1381 = vst [vmem:[#allocation2 + $0x10] sm:$0xff] %v1365
          %1382 = vst [vmem:[#allocation2 + $0x18] sm:$0xff] %v1366
          %1383 = vst [vmem:[#allocation2 + $0x20] sm:$0xff] %v1367
          %1384 = vst [vmem:[#allocation2 + $0x28] sm:$0xff] %v1368
          %1385 = vst [vmem:[#allocation2 + $0x30] sm:$0xff] %v1369
          %1386 = vst [vmem:[#allocation2 + $0x38] sm:$0xff] %v1370
          %1387 = vst [vmem:[#allocation2 + $0x40] sm:$0xff] %v1371
          %1388 = vst [vmem:[#allocation2 + $0x48] sm:$0xff] %v1372
          %1389 = vst [vmem:[#allocation2 + $0x50] sm:$0xff] %v1373
          %1390 = vst [vmem:[#allocation2 + $0x58] sm:$0xff] %v1374
          %1391 = vst [vmem:[#allocation2 + $0x60] sm:$0xff] %v1375
          %1392 = vst [vmem:[#allocation2 + $0x68] sm:$0xff] %v1376
          %1393 = vst [vmem:[#allocation2 + $0x70] sm:$0xff] %v1377
          %1394 = vst [vmem:[#allocation2 + $0x78] sm:$0xff] %v1378
          %v1395 = vld [vmem:[%s5] sm:$0x1]
          %v1396 = vld [vmem:[%s6] sm:$0x1]
          %v1397 = vmax.f32 %v1396, 0.0
          %v1398 = vand.u32 2147483647, %v1396
          %v1399 = vsub.f32 0.0, %v1398
          %v1400 = vmul.f32 %v1399, 1.442695
          %v1401 = vpow.pop %v1400
          %v1402 = vadd.f32 %v1401, 1.0
          %v1403 = vlog2.pop %v1402
          %v1404 = vmul.f32 %v1403, 0.6931472
          %v1405 = vmul.f32 -0.5, %v1401
          %v1406 = vadd.f32 %v1405, 1.0
          %v1407 = vmul.f32 %v1406, %v1401
          %v1408 = vand.u32 2147483647, %v1401
          %vm1409 = vcmp.lt.f32.partialorder %v1408, 0.0004427343
          %v1410 = vsel %vm1409, %v1407, %v1404
          %v1411 = vadd.f32 %v1397, %v1410
          %v1412 = vld [vmem:[%s1047] sm:$0x1]
          %v1413 = vmul.f32 %v1411, %v1412
          %v1414 = vadd.f32 %v1395, %v1413
          %1415 = vst [vmem:[#allocation5] sm:$0x1] %v1414
          %v1416 = vld [vmem:[#allocation16] sm:$0xff]
          %v1417 = vld [vmem:[#allocation16 + $0x8] sm:$0xff]
          %v1418 = vld [vmem:[#allocation16 + $0x10] sm:$0xff]
          %v1419 = vld [vmem:[#allocation16 + $0x18] sm:$0xff]
          %v1420 = vld [vmem:[#allocation16 + $0x20] sm:$0xff]
          %v1421 = vld [vmem:[#allocation16 + $0x28] sm:$0xff]
          %v1422 = vld [vmem:[#allocation16 + $0x30] sm:$0xff]
          %v1423 = vld [vmem:[#allocation16 + $0x38] sm:$0xff]
          %v1424 = vld [vmem:[#allocation16 + $0x40] sm:$0xff]
          %v1425 = vld [vmem:[#allocation16 + $0x48] sm:$0xff]
          %v1426 = vld [vmem:[#allocation16 + $0x50] sm:$0xff]
          %v1427 = vld [vmem:[#allocation16 + $0x58] sm:$0xff]
          %v1428 = vld [vmem:[#allocation16 + $0x60] sm:$0xff]
          %v1429 = vld [vmem:[#allocation16 + $0x68] sm:$0xff]
          %v1430 = vld [vmem:[#allocation16 + $0x70] sm:$0xff]
          %v1431 = vld [vmem:[#allocation16 + $0x78] sm:$0xff]
          %v1432 = vld [vmem:[#allocation17] sm:$0xff]
          %v1433 = vld [vmem:[#allocation17 + $0x8] sm:$0xff]
          %v1434 = vld [vmem:[#allocation17 + $0x10] sm:$0xff]
          %v1435 = vld [vmem:[#allocation17 + $0x18] sm:$0xff]
          %v1436 = vld [vmem:[#allocation17 + $0x20] sm:$0xff]
          %v1437 = vld [vmem:[#allocation17 + $0x28] sm:$0xff]
          %v1438 = vld [vmem:[#allocation17 + $0x30] sm:$0xff]
          %v1439 = vld [vmem:[#allocation17 + $0x38] sm:$0xff]
          %v1440 = vld [vmem:[#allocation17 + $0x40] sm:$0xff]
          %v1441 = vld [vmem:[#allocation17 + $0x48] sm:$0xff]
          %v1442 = vld [vmem:[#allocation17 + $0x50] sm:$0xff]
          %v1443 = vld [vmem:[#allocation17 + $0x58] sm:$0xff]
          %v1444 = vld [vmem:[#allocation17 + $0x60] sm:$0xff]
          %v1445 = vld [vmem:[#allocation17 + $0x68] sm:$0xff]
          %v1446 = vld [vmem:[#allocation17 + $0x70] sm:$0xff]
          %v1447 = vld [vmem:[#allocation17 + $0x78] sm:$0xff]
          %v1448 = vmax.f32 %v1432, 0.0
          %v1449 = vmax.f32 %v1433, 0.0
          %v1450 = vmax.f32 %v1434, 0.0
          %v1451 = vmax.f32 %v1435, 0.0
          %v1452 = vmax.f32 %v1436, 0.0
          %v1453 = vmax.f32 %v1437, 0.0
          %v1454 = vmax.f32 %v1438, 0.0
          %v1455 = vmax.f32 %v1439, 0.0
          %v1456 = vmax.f32 %v1440, 0.0
          %v1457 = vmax.f32 %v1441, 0.0
          %v1458 = vmax.f32 %v1442, 0.0
          %v1459 = vmax.f32 %v1443, 0.0
          %v1460 = vmax.f32 %v1444, 0.0
          %v1461 = vmax.f32 %v1445, 0.0
          %v1462 = vmax.f32 %v1446, 0.0
          %v1463 = vmax.f32 %v1447, 0.0
          %v1464 = vand.u32 2147483647, %v1432
          %v1465 = vand.u32 2147483647, %v1433
          %v1466 = vand.u32 2147483647, %v1434
          %v1467 = vand.u32 2147483647, %v1435
          %v1468 = vand.u32 2147483647, %v1436
          %v1469 = vand.u32 2147483647, %v1437
          %v1470 = vand.u32 2147483647, %v1438
          %v1471 = vand.u32 2147483647, %v1439
          %v1472 = vand.u32 2147483647, %v1440
          %v1473 = vand.u32 2147483647, %v1441
          %v1474 = vand.u32 2147483647, %v1442
          %v1475 = vand.u32 2147483647, %v1443
          %v1476 = vand.u32 2147483647, %v1444
          %v1477 = vand.u32 2147483647, %v1445
          %v1478 = vand.u32 2147483647, %v1446
          %v1479 = vand.u32 2147483647, %v1447
          %v1480 = vsub.f32 0.0, %v1464
          %v1481 = vsub.f32 0.0, %v1465
          %v1482 = vsub.f32 0.0, %v1466
          %v1483 = vsub.f32 0.0, %v1467
          %v1484 = vsub.f32 0.0, %v1468
          %v1485 = vsub.f32 0.0, %v1469
          %v1486 = vsub.f32 0.0, %v1470
          %v1487 = vsub.f32 0.0, %v1471
          %v1488 = vsub.f32 0.0, %v1472
          %v1489 = vsub.f32 0.0, %v1473
          %v1490 = vsub.f32 0.0, %v1474
          %v1491 = vsub.f32 0.0, %v1475
          %v1492 = vsub.f32 0.0, %v1476
          %v1493 = vsub.f32 0.0, %v1477
          %v1494 = vsub.f32 0.0, %v1478
          %v1495 = vsub.f32 0.0, %v1479
          %v1496 = vmul.f32 %v1480, 1.442695
          %v1497 = vpow.pop %v1496
          %v1498 = vmul.f32 %v1481, 1.442695
          %v1499 = vpow.pop %v1498
          %v1500 = vmul.f32 %v1482, 1.442695
          %v1501 = vpow.pop %v1500
          %v1502 = vmul.f32 %v1483, 1.442695
          %v1503 = vpow.pop %v1502
          %v1504 = vmul.f32 %v1484, 1.442695
          %v1505 = vpow.pop %v1504
          %v1506 = vmul.f32 %v1485, 1.442695
          %v1507 = vpow.pop %v1506
          %v1508 = vmul.f32 %v1486, 1.442695
          %v1509 = vpow.pop %v1508
          %v1510 = vmul.f32 %v1487, 1.442695
          %v1511 = vpow.pop %v1510
          %v1512 = vmul.f32 %v1488, 1.442695
          %v1513 = vpow.pop %v1512
          %v1514 = vmul.f32 %v1489, 1.442695
          %v1515 = vpow.pop %v1514
          %v1516 = vmul.f32 %v1490, 1.442695
          %v1517 = vpow.pop %v1516
          %v1518 = vmul.f32 %v1491, 1.442695
          %v1519 = vpow.pop %v1518
          %v1520 = vmul.f32 %v1492, 1.442695
          %v1521 = vpow.pop %v1520
          %v1522 = vmul.f32 %v1493, 1.442695
          %v1523 = vpow.pop %v1522
          %v1524 = vmul.f32 %v1494, 1.442695
          %v1525 = vpow.pop %v1524
          %v1526 = vmul.f32 %v1495, 1.442695
          %v1527 = vpow.pop %v1526
          %v1528 = vadd.f32 %v1497, 1.0
          %v1529 = vlog2.pop %v1528
          %v1530 = vmul.f32 %v1529, 0.6931472
          %v1531 = vmul.f32 -0.5, %v1497
          %v1532 = vadd.f32 %v1531, 1.0
          %v1533 = vmul.f32 %v1532, %v1497
          %v1534 = vand.u32 2147483647, %v1497
          %vm1535 = vcmp.lt.f32.partialorder %v1534, 0.0004427343
          %v1536 = vsel %vm1535, %v1533, %v1530
          %v1537 = vadd.f32 %v1499, 1.0
          %v1538 = vlog2.pop %v1537
          %v1539 = vmul.f32 %v1538, 0.6931472
          %v1540 = vmul.f32 -0.5, %v1499
          %v1541 = vadd.f32 %v1540, 1.0
          %v1542 = vmul.f32 %v1541, %v1499
          %v1543 = vand.u32 2147483647, %v1499
          %vm1544 = vcmp.lt.f32.partialorder %v1543, 0.0004427343
          %v1545 = vsel %vm1544, %v1542, %v1539
          %v1546 = vadd.f32 %v1501, 1.0
          %v1547 = vlog2.pop %v1546
          %v1548 = vmul.f32 %v1547, 0.6931472
          %v1549 = vmul.f32 -0.5, %v1501
          %v1550 = vadd.f32 %v1549, 1.0
          %v1551 = vmul.f32 %v1550, %v1501
          %v1552 = vand.u32 2147483647, %v1501
          %vm1553 = vcmp.lt.f32.partialorder %v1552, 0.0004427343
          %v1554 = vsel %vm1553, %v1551, %v1548
          %v1555 = vadd.f32 %v1503, 1.0
          %v1556 = vlog2.pop %v1555
          %v1557 = vmul.f32 %v1556, 0.6931472
          %v1558 = vmul.f32 -0.5, %v1503
          %v1559 = vadd.f32 %v1558, 1.0
          %v1560 = vmul.f32 %v1559, %v1503
          %v1561 = vand.u32 2147483647, %v1503
          %vm1562 = vcmp.lt.f32.partialorder %v1561, 0.0004427343
          %v1563 = vsel %vm1562, %v1560, %v1557
          %v1564 = vadd.f32 %v1505, 1.0
          %v1565 = vlog2.pop %v1564
          %v1566 = vmul.f32 %v1565, 0.6931472
          %v1567 = vmul.f32 -0.5, %v1505
          %v1568 = vadd.f32 %v1567, 1.0
          %v1569 = vmul.f32 %v1568, %v1505
          %v1570 = vand.u32 2147483647, %v1505
          %vm1571 = vcmp.lt.f32.partialorder %v1570, 0.0004427343
          %v1572 = vsel %vm1571, %v1569, %v1566
          %v1573 = vadd.f32 %v1507, 1.0
          %v1574 = vlog2.pop %v1573
          %v1575 = vmul.f32 %v1574, 0.6931472
          %v1576 = vmul.f32 -0.5, %v1507
          %v1577 = vadd.f32 %v1576, 1.0
          %v1578 = vmul.f32 %v1577, %v1507
          %v1579 = vand.u32 2147483647, %v1507
          %vm1580 = vcmp.lt.f32.partialorder %v1579, 0.0004427343
          %v1581 = vsel %vm1580, %v1578, %v1575
          %v1582 = vadd.f32 %v1509, 1.0
          %v1583 = vlog2.pop %v1582
          %v1584 = vmul.f32 %v1583, 0.6931472
          %v1585 = vmul.f32 -0.5, %v1509
          %v1586 = vadd.f32 %v1585, 1.0
          %v1587 = vmul.f32 %v1586, %v1509
          %v1588 = vand.u32 2147483647, %v1509
          %vm1589 = vcmp.lt.f32.partialorder %v1588, 0.0004427343
          %v1590 = vsel %vm1589, %v1587, %v1584
          %v1591 = vadd.f32 %v1511, 1.0
          %v1592 = vlog2.pop %v1591
          %v1593 = vmul.f32 %v1592, 0.6931472
          %v1594 = vmul.f32 -0.5, %v1511
          %v1595 = vadd.f32 %v1594, 1.0
          %v1596 = vmul.f32 %v1595, %v1511
          %v1597 = vand.u32 2147483647, %v1511
          %vm1598 = vcmp.lt.f32.partialorder %v1597, 0.0004427343
          %v1599 = vsel %vm1598, %v1596, %v1593
          %v1600 = vadd.f32 %v1513, 1.0
          %v1601 = vlog2.pop %v1600
          %v1602 = vmul.f32 %v1601, 0.6931472
          %v1603 = vmul.f32 -0.5, %v1513
          %v1604 = vadd.f32 %v1603, 1.0
          %v1605 = vmul.f32 %v1604, %v1513
          %v1606 = vand.u32 2147483647, %v1513
          %vm1607 = vcmp.lt.f32.partialorder %v1606, 0.0004427343
          %v1608 = vsel %vm1607, %v1605, %v1602
          %v1609 = vadd.f32 %v1515, 1.0
          %v1610 = vlog2.pop %v1609
          %v1611 = vmul.f32 %v1610, 0.6931472
          %v1612 = vmul.f32 -0.5, %v1515
          %v1613 = vadd.f32 %v1612, 1.0
          %v1614 = vmul.f32 %v1613, %v1515
          %v1615 = vand.u32 2147483647, %v1515
          %vm1616 = vcmp.lt.f32.partialorder %v1615, 0.0004427343
          %v1617 = vsel %vm1616, %v1614, %v1611
          %v1618 = vadd.f32 %v1517, 1.0
          %v1619 = vlog2.pop %v1618
          %v1620 = vmul.f32 %v1619, 0.6931472
          %v1621 = vmul.f32 -0.5, %v1517
          %v1622 = vadd.f32 %v1621, 1.0
          %v1623 = vmul.f32 %v1622, %v1517
          %v1624 = vand.u32 2147483647, %v1517
          %vm1625 = vcmp.lt.f32.partialorder %v1624, 0.0004427343
          %v1626 = vsel %vm1625, %v1623, %v1620
          %v1627 = vadd.f32 %v1519, 1.0
          %v1628 = vlog2.pop %v1627
          %v1629 = vmul.f32 %v1628, 0.6931472
          %v1630 = vmul.f32 -0.5, %v1519
          %v1631 = vadd.f32 %v1630, 1.0
          %v1632 = vmul.f32 %v1631, %v1519
          %v1633 = vand.u32 2147483647, %v1519
          %vm1634 = vcmp.lt.f32.partialorder %v1633, 0.0004427343
          %v1635 = vsel %vm1634, %v1632, %v1629
          %v1636 = vadd.f32 %v1521, 1.0
          %v1637 = vlog2.pop %v1636
          %v1638 = vmul.f32 %v1637, 0.6931472
          %v1639 = vmul.f32 -0.5, %v1521
          %v1640 = vadd.f32 %v1639, 1.0
          %v1641 = vmul.f32 %v1640, %v1521
          %v1642 = vand.u32 2147483647, %v1521
          %vm1643 = vcmp.lt.f32.partialorder %v1642, 0.0004427343
          %v1644 = vsel %vm1643, %v1641, %v1638
          %v1645 = vadd.f32 %v1523, 1.0
          %v1646 = vlog2.pop %v1645
          %v1647 = vmul.f32 %v1646, 0.6931472
          %v1648 = vmul.f32 -0.5, %v1523
          %v1649 = vadd.f32 %v1648, 1.0
          %v1650 = vmul.f32 %v1649, %v1523
          %v1651 = vand.u32 2147483647, %v1523
          %vm1652 = vcmp.lt.f32.partialorder %v1651, 0.0004427343
          %v1653 = vsel %vm1652, %v1650, %v1647
          %v1654 = vadd.f32 %v1525, 1.0
          %v1655 = vlog2.pop %v1654
          %v1656 = vmul.f32 %v1655, 0.6931472
          %v1657 = vmul.f32 -0.5, %v1525
          %v1658 = vadd.f32 %v1657, 1.0
          %v1659 = vmul.f32 %v1658, %v1525
          %v1660 = vand.u32 2147483647, %v1525
          %vm1661 = vcmp.lt.f32.partialorder %v1660, 0.0004427343
          %v1662 = vsel %vm1661, %v1659, %v1656
          %v1663 = vadd.f32 %v1527, 1.0
          %v1664 = vlog2.pop %v1663
          %v1665 = vmul.f32 %v1664, 0.6931472
          %v1666 = vmul.f32 -0.5, %v1527
          %v1667 = vadd.f32 %v1666, 1.0
          %v1668 = vmul.f32 %v1667, %v1527
          %v1669 = vand.u32 2147483647, %v1527
          %vm1670 = vcmp.lt.f32.partialorder %v1669, 0.0004427343
          %v1671 = vsel %vm1670, %v1668, %v1665
          %v1672 = vadd.f32 %v1448, %v1536
          %v1673 = vadd.f32 %v1449, %v1545
          %v1674 = vadd.f32 %v1450, %v1554
          %v1675 = vadd.f32 %v1451, %v1563
          %v1676 = vadd.f32 %v1452, %v1572
          %v1677 = vadd.f32 %v1453, %v1581
          %v1678 = vadd.f32 %v1454, %v1590
          %v1679 = vadd.f32 %v1455, %v1599
          %v1680 = vadd.f32 %v1456, %v1608
          %v1681 = vadd.f32 %v1457, %v1617
          %v1682 = vadd.f32 %v1458, %v1626
          %v1683 = vadd.f32 %v1459, %v1635
          %v1684 = vadd.f32 %v1460, %v1644
          %v1685 = vadd.f32 %v1461, %v1653
          %v1686 = vadd.f32 %v1462, %v1662
          %v1687 = vadd.f32 %v1463, %v1671
          %v1688 = vld [vmem:[#allocation19] sm:$0xff]
          %v1689 = vld [vmem:[#allocation19 + $0x8] sm:$0xff]
          %v1690 = vld [vmem:[#allocation19 + $0x10] sm:$0xff]
          %v1691 = vld [vmem:[#allocation19 + $0x18] sm:$0xff]
          %v1692 = vld [vmem:[#allocation19 + $0x20] sm:$0xff]
          %v1693 = vld [vmem:[#allocation19 + $0x28] sm:$0xff]
          %v1694 = vld [vmem:[#allocation19 + $0x30] sm:$0xff]
          %v1695 = vld [vmem:[#allocation19 + $0x38] sm:$0xff]
          %v1696 = vld [vmem:[#allocation19 + $0x40] sm:$0xff]
          %v1697 = vld [vmem:[#allocation19 + $0x48] sm:$0xff]
          %v1698 = vld [vmem:[#allocation19 + $0x50] sm:$0xff]
          %v1699 = vld [vmem:[#allocation19 + $0x58] sm:$0xff]
          %v1700 = vld [vmem:[#allocation19 + $0x60] sm:$0xff]
          %v1701 = vld [vmem:[#allocation19 + $0x68] sm:$0xff]
          %v1702 = vld [vmem:[#allocation19 + $0x70] sm:$0xff]
          %v1703 = vld [vmem:[#allocation19 + $0x78] sm:$0xff]
          %v1704 = vmul.f32 %v1672, %v1688
          %v1705 = vmul.f32 %v1673, %v1689
          %v1706 = vmul.f32 %v1674, %v1690
          %v1707 = vmul.f32 %v1675, %v1691
          %v1708 = vmul.f32 %v1676, %v1692
          %v1709 = vmul.f32 %v1677, %v1693
          %v1710 = vmul.f32 %v1678, %v1694
          %v1711 = vmul.f32 %v1679, %v1695
          %v1712 = vmul.f32 %v1680, %v1696
          %v1713 = vmul.f32 %v1681, %v1697
          %v1714 = vmul.f32 %v1682, %v1698
          %v1715 = vmul.f32 %v1683, %v1699
          %v1716 = vmul.f32 %v1684, %v1700
          %v1717 = vmul.f32 %v1685, %v1701
          %v1718 = vmul.f32 %v1686, %v1702
          %v1719 = vmul.f32 %v1687, %v1703
          %v1720 = vadd.f32 %v1416, %v1704
          %v1721 = vadd.f32 %v1417, %v1705
          %v1722 = vadd.f32 %v1418, %v1706
          %v1723 = vadd.f32 %v1419, %v1707
          %v1724 = vadd.f32 %v1420, %v1708
          %v1725 = vadd.f32 %v1421, %v1709
          %v1726 = vadd.f32 %v1422, %v1710
          %v1727 = vadd.f32 %v1423, %v1711
          %v1728 = vadd.f32 %v1424, %v1712
          %v1729 = vadd.f32 %v1425, %v1713
          %v1730 = vadd.f32 %v1426, %v1714
          %v1731 = vadd.f32 %v1427, %v1715
          %v1732 = vadd.f32 %v1428, %v1716
          %v1733 = vadd.f32 %v1429, %v1717
          %v1734 = vadd.f32 %v1430, %v1718
          %v1735 = vadd.f32 %v1431, %v1719
          %1736 = vst [vmem:[#allocation3] sm:$0xff] %v1720
          %1737 = vst [vmem:[#allocation3 + $0x8] sm:$0xff] %v1721
          %1738 = vst [vmem:[#allocation3 + $0x10] sm:$0xff] %v1722
          %1739 = vst [vmem:[#allocation3 + $0x18] sm:$0xff] %v1723
          %1740 = vst [vmem:[#allocation3 + $0x20] sm:$0xff] %v1724
          %1741 = vst [vmem:[#allocation3 + $0x28] sm:$0xff] %v1725
          %1742 = vst [vmem:[#allocation3 + $0x30] sm:$0xff] %v1726
          %1743 = vst [vmem:[#allocation3 + $0x38] sm:$0xff] %v1727
          %1744 = vst [vmem:[#allocation3 + $0x40] sm:$0xff] %v1728
          %1745 = vst [vmem:[#allocation3 + $0x48] sm:$0xff] %v1729
          %1746 = vst [vmem:[#allocation3 + $0x50] sm:$0xff] %v1730
          %1747 = vst [vmem:[#allocation3 + $0x58] sm:$0xff] %v1731
          %1748 = vst [vmem:[#allocation3 + $0x60] sm:$0xff] %v1732
          %1749 = vst [vmem:[#allocation3 + $0x68] sm:$0xff] %v1733
          %1750 = vst [vmem:[#allocation3 + $0x70] sm:$0xff] %v1734
          %1751 = vst [vmem:[#allocation3 + $0x78] sm:$0xff] %v1735
          %v1752 = vld [vmem:[%s11] sm:$0x1]
          %v1753 = vld [vmem:[%s12] sm:$0x1]
          %v1754 = vmax.f32 %v1753, 0.0
          %v1755 = vand.u32 2147483647, %v1753
          %v1756 = vsub.f32 0.0, %v1755
          %v1757 = vmul.f32 %v1756, 1.442695
          %v1758 = vpow.pop %v1757
          %v1759 = vadd.f32 %v1758, 1.0
          %v1760 = vlog2.pop %v1759
          %v1761 = vmul.f32 %v1760, 0.6931472
          %v1762 = vmul.f32 -0.5, %v1758
          %v1763 = vadd.f32 %v1762, 1.0
          %v1764 = vmul.f32 %v1763, %v1758
          %v1765 = vand.u32 2147483647, %v1758
          %vm1766 = vcmp.lt.f32.partialorder %v1765, 0.0004427343
          %v1767 = vsel %vm1766, %v1764, %v1761
          %v1768 = vadd.f32 %v1754, %v1767
          %v1769 = vld [vmem:[%s1050] sm:$0x1]
          %v1770 = vmul.f32 %v1768, %v1769
          %v1771 = vadd.f32 %v1752, %v1770
          %1772 = vst [vmem:[#allocation6] sm:$0x1] %v1771
          %v1773 = vld [vmem:[#allocation20] sm:$0xff]
          %v1774 = vld [vmem:[#allocation20 + $0x8] sm:$0xff]
          %v1775 = vld [vmem:[#allocation20 + $0x10] sm:$0xff]
          %v1776 = vld [vmem:[#allocation20 + $0x18] sm:$0xff]
          %v1777 = vld [vmem:[#allocation20 + $0x20] sm:$0xff]
          %v1778 = vld [vmem:[#allocation20 + $0x28] sm:$0xff]
          %v1779 = vld [vmem:[#allocation20 + $0x30] sm:$0xff]
          %v1780 = vld [vmem:[#allocation20 + $0x38] sm:$0xff]
          %v1781 = vld [vmem:[#allocation20 + $0x40] sm:$0xff]
          %v1782 = vld [vmem:[#allocation20 + $0x48] sm:$0xff]
          %v1783 = vld [vmem:[#allocation20 + $0x50] sm:$0xff]
          %v1784 = vld [vmem:[#allocation20 + $0x58] sm:$0xff]
          %v1785 = vld [vmem:[#allocation20 + $0x60] sm:$0xff]
          %v1786 = vld [vmem:[#allocation20 + $0x68] sm:$0xff]
          %v1787 = vld [vmem:[#allocation20 + $0x70] sm:$0xff]
          %v1788 = vld [vmem:[#allocation20 + $0x78] sm:$0xff]
          %v1789 = vld [vmem:[#allocation22] sm:$0xff]
          %v1790 = vld [vmem:[#allocation22 + $0x8] sm:$0xff]
          %v1791 = vld [vmem:[#allocation22 + $0x10] sm:$0xff]
          %v1792 = vld [vmem:[#allocation22 + $0x18] sm:$0xff]
          %v1793 = vld [vmem:[#allocation22 + $0x20] sm:$0xff]
          %v1794 = vld [vmem:[#allocation22 + $0x28] sm:$0xff]
          %v1795 = vld [vmem:[#allocation22 + $0x30] sm:$0xff]
          %v1796 = vld [vmem:[#allocation22 + $0x38] sm:$0xff]
          %v1797 = vld [vmem:[#allocation22 + $0x40] sm:$0xff]
          %v1798 = vld [vmem:[#allocation22 + $0x48] sm:$0xff]
          %v1799 = vld [vmem:[#allocation22 + $0x50] sm:$0xff]
          %v1800 = vld [vmem:[#allocation22 + $0x58] sm:$0xff]
          %v1801 = vld [vmem:[#allocation22 + $0x60] sm:$0xff]
          %v1802 = vld [vmem:[#allocation22 + $0x68] sm:$0xff]
          %v1803 = vld [vmem:[#allocation22 + $0x70] sm:$0xff]
          %v1804 = vld [vmem:[#allocation22 + $0x78] sm:$0xff]
          %v1805 = vmax.f32 %v1789, 0.0
          %v1806 = vmax.f32 %v1790, 0.0
          %v1807 = vmax.f32 %v1791, 0.0
          %v1808 = vmax.f32 %v1792, 0.0
          %v1809 = vmax.f32 %v1793, 0.0
          %v1810 = vmax.f32 %v1794, 0.0
          %v1811 = vmax.f32 %v1795, 0.0
          %v1812 = vmax.f32 %v1796, 0.0
          %v1813 = vmax.f32 %v1797, 0.0
          %v1814 = vmax.f32 %v1798, 0.0
          %v1815 = vmax.f32 %v1799, 0.0
          %v1816 = vmax.f32 %v1800, 0.0
          %v1817 = vmax.f32 %v1801, 0.0
          %v1818 = vmax.f32 %v1802, 0.0
          %v1819 = vmax.f32 %v1803, 0.0
          %v1820 = vmax.f32 %v1804, 0.0
          %v1821 = vand.u32 2147483647, %v1789
          %v1822 = vand.u32 2147483647, %v1790
          %v1823 = vand.u32 2147483647, %v1791
          %v1824 = vand.u32 2147483647, %v1792
          %v1825 = vand.u32 2147483647, %v1793
          %v1826 = vand.u32 2147483647, %v1794
          %v1827 = vand.u32 2147483647, %v1795
          %v1828 = vand.u32 2147483647, %v1796
          %v1829 = vand.u32 2147483647, %v1797
          %v1830 = vand.u32 2147483647, %v1798
          %v1831 = vand.u32 2147483647, %v1799
          %v1832 = vand.u32 2147483647, %v1800
          %v1833 = vand.u32 2147483647, %v1801
          %v1834 = vand.u32 2147483647, %v1802
          %v1835 = vand.u32 2147483647, %v1803
          %v1836 = vand.u32 2147483647, %v1804
          %v1837 = vsub.f32 0.0, %v1821
          %v1838 = vsub.f32 0.0, %v1822
          %v1839 = vsub.f32 0.0, %v1823
          %v1840 = vsub.f32 0.0, %v1824
          %v1841 = vsub.f32 0.0, %v1825
          %v1842 = vsub.f32 0.0, %v1826
          %v1843 = vsub.f32 0.0, %v1827
          %v1844 = vsub.f32 0.0, %v1828
          %v1845 = vsub.f32 0.0, %v1829
          %v1846 = vsub.f32 0.0, %v1830
          %v1847 = vsub.f32 0.0, %v1831
          %v1848 = vsub.f32 0.0, %v1832
          %v1849 = vsub.f32 0.0, %v1833
          %v1850 = vsub.f32 0.0, %v1834
          %v1851 = vsub.f32 0.0, %v1835
          %v1852 = vsub.f32 0.0, %v1836
          %v1853 = vmul.f32 %v1837, 1.442695
          %v1854 = vpow.pop %v1853
          %v1855 = vmul.f32 %v1838, 1.442695
          %v1856 = vpow.pop %v1855
          %v1857 = vmul.f32 %v1839, 1.442695
          %v1858 = vpow.pop %v1857
          %v1859 = vmul.f32 %v1840, 1.442695
          %v1860 = vpow.pop %v1859
          %v1861 = vmul.f32 %v1841, 1.442695
          %v1862 = vpow.pop %v1861
          %v1863 = vmul.f32 %v1842, 1.442695
          %v1864 = vpow.pop %v1863
          %v1865 = vmul.f32 %v1843, 1.442695
          %v1866 = vpow.pop %v1865
          %v1867 = vmul.f32 %v1844, 1.442695
          %v1868 = vpow.pop %v1867
          %v1869 = vmul.f32 %v1845, 1.442695
          %v1870 = vpow.pop %v1869
          %v1871 = vmul.f32 %v1846, 1.442695
          %v1872 = vpow.pop %v1871
          %v1873 = vmul.f32 %v1847, 1.442695
          %v1874 = vpow.pop %v1873
          %v1875 = vmul.f32 %v1848, 1.442695
          %v1876 = vpow.pop %v1875
          %v1877 = vmul.f32 %v1849, 1.442695
          %v1878 = vpow.pop %v1877
          %v1879 = vmul.f32 %v1850, 1.442695
          %v1880 = vpow.pop %v1879
          %v1881 = vmul.f32 %v1851, 1.442695
          %v1882 = vpow.pop %v1881
          %v1883 = vmul.f32 %v1852, 1.442695
          %v1884 = vpow.pop %v1883
          %v1885 = vadd.f32 %v1854, 1.0
          %v1886 = vlog2.pop %v1885
          %v1887 = vmul.f32 %v1886, 0.6931472
          %v1888 = vmul.f32 -0.5, %v1854
          %v1889 = vadd.f32 %v1888, 1.0
          %v1890 = vmul.f32 %v1889, %v1854
          %v1891 = vand.u32 2147483647, %v1854
          %vm1892 = vcmp.lt.f32.partialorder %v1891, 0.0004427343
          %v1893 = vsel %vm1892, %v1890, %v1887
          %v1894 = vadd.f32 %v1856, 1.0
          %v1895 = vlog2.pop %v1894
          %v1896 = vmul.f32 %v1895, 0.6931472
          %v1897 = vmul.f32 -0.5, %v1856
          %v1898 = vadd.f32 %v1897, 1.0
          %v1899 = vmul.f32 %v1898, %v1856
          %v1900 = vand.u32 2147483647, %v1856
          %vm1901 = vcmp.lt.f32.partialorder %v1900, 0.0004427343
          %v1902 = vsel %vm1901, %v1899, %v1896
          %v1903 = vadd.f32 %v1858, 1.0
          %v1904 = vlog2.pop %v1903
          %v1905 = vmul.f32 %v1904, 0.6931472
          %v1906 = vmul.f32 -0.5, %v1858
          %v1907 = vadd.f32 %v1906, 1.0
          %v1908 = vmul.f32 %v1907, %v1858
          %v1909 = vand.u32 2147483647, %v1858
          %vm1910 = vcmp.lt.f32.partialorder %v1909, 0.0004427343
          %v1911 = vsel %vm1910, %v1908, %v1905
          %v1912 = vadd.f32 %v1860, 1.0
          %v1913 = vlog2.pop %v1912
          %v1914 = vmul.f32 %v1913, 0.6931472
          %v1915 = vmul.f32 -0.5, %v1860
          %v1916 = vadd.f32 %v1915, 1.0
          %v1917 = vmul.f32 %v1916, %v1860
          %v1918 = vand.u32 2147483647, %v1860
          %vm1919 = vcmp.lt.f32.partialorder %v1918, 0.0004427343
          %v1920 = vsel %vm1919, %v1917, %v1914
          %v1921 = vadd.f32 %v1862, 1.0
          %v1922 = vlog2.pop %v1921
          %v1923 = vmul.f32 %v1922, 0.6931472
          %v1924 = vmul.f32 -0.5, %v1862
          %v1925 = vadd.f32 %v1924, 1.0
          %v1926 = vmul.f32 %v1925, %v1862
          %v1927 = vand.u32 2147483647, %v1862
          %vm1928 = vcmp.lt.f32.partialorder %v1927, 0.0004427343
          %v1929 = vsel %vm1928, %v1926, %v1923
          %v1930 = vadd.f32 %v1864, 1.0
          %v1931 = vlog2.pop %v1930
          %v1932 = vmul.f32 %v1931, 0.6931472
          %v1933 = vmul.f32 -0.5, %v1864
          %v1934 = vadd.f32 %v1933, 1.0
          %v1935 = vmul.f32 %v1934, %v1864
          %v1936 = vand.u32 2147483647, %v1864
          %vm1937 = vcmp.lt.f32.partialorder %v1936, 0.0004427343
          %v1938 = vsel %vm1937, %v1935, %v1932
          %v1939 = vadd.f32 %v1866, 1.0
          %v1940 = vlog2.pop %v1939
          %v1941 = vmul.f32 %v1940, 0.6931472
          %v1942 = vmul.f32 -0.5, %v1866
          %v1943 = vadd.f32 %v1942, 1.0
          %v1944 = vmul.f32 %v1943, %v1866
          %v1945 = vand.u32 2147483647, %v1866
          %vm1946 = vcmp.lt.f32.partialorder %v1945, 0.0004427343
          %v1947 = vsel %vm1946, %v1944, %v1941
          %v1948 = vadd.f32 %v1868, 1.0
          %v1949 = vlog2.pop %v1948
          %v1950 = vmul.f32 %v1949, 0.6931472
          %v1951 = vmul.f32 -0.5, %v1868
          %v1952 = vadd.f32 %v1951, 1.0
          %v1953 = vmul.f32 %v1952, %v1868
          %v1954 = vand.u32 2147483647, %v1868
          %vm1955 = vcmp.lt.f32.partialorder %v1954, 0.0004427343
          %v1956 = vsel %vm1955, %v1953, %v1950
          %v1957 = vadd.f32 %v1870, 1.0
          %v1958 = vlog2.pop %v1957
          %v1959 = vmul.f32 %v1958, 0.6931472
          %v1960 = vmul.f32 -0.5, %v1870
          %v1961 = vadd.f32 %v1960, 1.0
          %v1962 = vmul.f32 %v1961, %v1870
          %v1963 = vand.u32 2147483647, %v1870
          %vm1964 = vcmp.lt.f32.partialorder %v1963, 0.0004427343
          %v1965 = vsel %vm1964, %v1962, %v1959
          %v1966 = vadd.f32 %v1872, 1.0
          %v1967 = vlog2.pop %v1966
          %v1968 = vmul.f32 %v1967, 0.6931472
          %v1969 = vmul.f32 -0.5, %v1872
          %v1970 = vadd.f32 %v1969, 1.0
          %v1971 = vmul.f32 %v1970, %v1872
          %v1972 = vand.u32 2147483647, %v1872
          %vm1973 = vcmp.lt.f32.partialorder %v1972, 0.0004427343
          %v1974 = vsel %vm1973, %v1971, %v1968
          %v1975 = vadd.f32 %v1874, 1.0
          %v1976 = vlog2.pop %v1975
          %v1977 = vmul.f32 %v1976, 0.6931472
          %v1978 = vmul.f32 -0.5, %v1874
          %v1979 = vadd.f32 %v1978, 1.0
          %v1980 = vmul.f32 %v1979, %v1874
          %v1981 = vand.u32 2147483647, %v1874
          %vm1982 = vcmp.lt.f32.partialorder %v1981, 0.0004427343
          %v1983 = vsel %vm1982, %v1980, %v1977
          %v1984 = vadd.f32 %v1876, 1.0
          %v1985 = vlog2.pop %v1984
          %v1986 = vmul.f32 %v1985, 0.6931472
          %v1987 = vmul.f32 -0.5, %v1876
          %v1988 = vadd.f32 %v1987, 1.0
          %v1989 = vmul.f32 %v1988, %v1876
          %v1990 = vand.u32 2147483647, %v1876
          %vm1991 = vcmp.lt.f32.partialorder %v1990, 0.0004427343
          %v1992 = vsel %vm1991, %v1989, %v1986
          %v1993 = vadd.f32 %v1878, 1.0
          %v1994 = vlog2.pop %v1993
          %v1995 = vmul.f32 %v1994, 0.6931472
          %v1996 = vmul.f32 -0.5, %v1878
          %v1997 = vadd.f32 %v1996, 1.0
          %v1998 = vmul.f32 %v1997, %v1878
          %v1999 = vand.u32 2147483647, %v1878
          %vm2000 = vcmp.lt.f32.partialorder %v1999, 0.0004427343
          %v2001 = vsel %vm2000, %v1998, %v1995
          %v2002 = vadd.f32 %v1880, 1.0
          %v2003 = vlog2.pop %v2002
          %v2004 = vmul.f32 %v2003, 0.6931472
          %v2005 = vmul.f32 -0.5, %v1880
          %v2006 = vadd.f32 %v2005, 1.0
          %v2007 = vmul.f32 %v2006, %v1880
          %v2008 = vand.u32 2147483647, %v1880
          %vm2009 = vcmp.lt.f32.partialorder %v2008, 0.0004427343
          %v2010 = vsel %vm2009, %v2007, %v2004
          %v2011 = vadd.f32 %v1882, 1.0
          %v2012 = vlog2.pop %v2011
          %v2013 = vmul.f32 %v2012, 0.6931472
          %v2014 = vmul.f32 -0.5, %v1882
          %v2015 = vadd.f32 %v2014, 1.0
          %v2016 = vmul.f32 %v2015, %v1882
          %v2017 = vand.u32 2147483647, %v1882
          %vm2018 = vcmp.lt.f32.partialorder %v2017, 0.0004427343
          %v2019 = vsel %vm2018, %v2016, %v2013
          %v2020 = vadd.f32 %v1884, 1.0
          %v2021 = vlog2.pop %v2020
          %v2022 = vmul.f32 %v2021, 0.6931472
          %v2023 = vmul.f32 -0.5, %v1884
          %v2024 = vadd.f32 %v2023, 1.0
          %v2025 = vmul.f32 %v2024, %v1884
          %v2026 = vand.u32 2147483647, %v1884
          %vm2027 = vcmp.lt.f32.partialorder %v2026, 0.0004427343
          %v2028 = vsel %vm2027, %v2025, %v2022
          %v2029 = vadd.f32 %v1805, %v1893
          %v2030 = vadd.f32 %v1806, %v1902
          %v2031 = vadd.f32 %v1807, %v1911
          %v2032 = vadd.f32 %v1808, %v1920
          %v2033 = vadd.f32 %v1809, %v1929
          %v2034 = vadd.f32 %v1810, %v1938
          %v2035 = vadd.f32 %v1811, %v1947
          %v2036 = vadd.f32 %v1812, %v1956
          %v2037 = vadd.f32 %v1813, %v1965
          %v2038 = vadd.f32 %v1814, %v1974
          %v2039 = vadd.f32 %v1815, %v1983
          %v2040 = vadd.f32 %v1816, %v1992
          %v2041 = vadd.f32 %v1817, %v2001
          %v2042 = vadd.f32 %v1818, %v2010
          %v2043 = vadd.f32 %v1819, %v2019
          %v2044 = vadd.f32 %v1820, %v2028
          %v2045 = vld [vmem:[#allocation23] sm:$0xff]
          %v2046 = vld [vmem:[#allocation23 + $0x8] sm:$0xff]
          %v2047 = vld [vmem:[#allocation23 + $0x10] sm:$0xff]
          %v2048 = vld [vmem:[#allocation23 + $0x18] sm:$0xff]
          %v2049 = vld [vmem:[#allocation23 + $0x20] sm:$0xff]
          %v2050 = vld [vmem:[#allocation23 + $0x28] sm:$0xff]
          %v2051 = vld [vmem:[#allocation23 + $0x30] sm:$0xff]
          %v2052 = vld [vmem:[#allocation23 + $0x38] sm:$0xff]
          %v2053 = vld [vmem:[#allocation23 + $0x40] sm:$0xff]
          %v2054 = vld [vmem:[#allocation23 + $0x48] sm:$0xff]
          %v2055 = vld [vmem:[#allocation23 + $0x50] sm:$0xff]
          %v2056 = vld [vmem:[#allocation23 + $0x58] sm:$0xff]
          %v2057 = vld [vmem:[#allocation23 + $0x60] sm:$0xff]
          %v2058 = vld [vmem:[#allocation23 + $0x68] sm:$0xff]
          %v2059 = vld [vmem:[#allocation23 + $0x70] sm:$0xff]
          %v2060 = vld [vmem:[#allocation23 + $0x78] sm:$0xff]
          %v2061 = vmul.f32 %v2029, %v2045
          %v2062 = vmul.f32 %v2030, %v2046
          %v2063 = vmul.f32 %v2031, %v2047
          %v2064 = vmul.f32 %v2032, %v2048
          %v2065 = vmul.f32 %v2033, %v2049
          %v2066 = vmul.f32 %v2034, %v2050
          %v2067 = vmul.f32 %v2035, %v2051
          %v2068 = vmul.f32 %v2036, %v2052
          %v2069 = vmul.f32 %v2037, %v2053
          %v2070 = vmul.f32 %v2038, %v2054
          %v2071 = vmul.f32 %v2039, %v2055
          %v2072 = vmul.f32 %v2040, %v2056
          %v2073 = vmul.f32 %v2041, %v2057
          %v2074 = vmul.f32 %v2042, %v2058
          %v2075 = vmul.f32 %v2043, %v2059
          %v2076 = vmul.f32 %v2044, %v2060
          %v2077 = vadd.f32 %v1773, %v2061
          %v2078 = vadd.f32 %v1774, %v2062
          %v2079 = vadd.f32 %v1775, %v2063
          %v2080 = vadd.f32 %v1776, %v2064
          %v2081 = vadd.f32 %v1777, %v2065
          %v2082 = vadd.f32 %v1778, %v2066
          %v2083 = vadd.f32 %v1779, %v2067
          %v2084 = vadd.f32 %v1780, %v2068
          %v2085 = vadd.f32 %v1781, %v2069
          %v2086 = vadd.f32 %v1782, %v2070
          %v2087 = vadd.f32 %v1783, %v2071
          %v2088 = vadd.f32 %v1784, %v2072
          %v2089 = vadd.f32 %v1785, %v2073
          %v2090 = vadd.f32 %v1786, %v2074
          %v2091 = vadd.f32 %v1787, %v2075
          %v2092 = vadd.f32 %v1788, %v2076
          %2093 = vst [vmem:[#allocation4] sm:$0xff] %v2077
          %2094 = vst [vmem:[#allocation4 + $0x8] sm:$0xff] %v2078
          %2095 = vst [vmem:[#allocation4 + $0x10] sm:$0xff] %v2079
          %2096 = vst [vmem:[#allocation4 + $0x18] sm:$0xff] %v2080
          %2097 = vst [vmem:[#allocation4 + $0x20] sm:$0xff] %v2081
          %2098 = vst [vmem:[#allocation4 + $0x28] sm:$0xff] %v2082
          %2099 = vst [vmem:[#allocation4 + $0x30] sm:$0xff] %v2083
          %2100 = vst [vmem:[#allocation4 + $0x38] sm:$0xff] %v2084
          %2101 = vst [vmem:[#allocation4 + $0x40] sm:$0xff] %v2085
          %2102 = vst [vmem:[#allocation4 + $0x48] sm:$0xff] %v2086
          %2103 = vst [vmem:[#allocation4 + $0x50] sm:$0xff] %v2087
          %2104 = vst [vmem:[#allocation4 + $0x58] sm:$0xff] %v2088
          %2105 = vst [vmem:[#allocation4 + $0x60] sm:$0xff] %v2089
          %2106 = vst [vmem:[#allocation4 + $0x68] sm:$0xff] %v2090
          %2107 = vst [vmem:[#allocation4 + $0x70] sm:$0xff] %v2091
          %2108 = vst [vmem:[#allocation4 + $0x78] sm:$0xff] %v2092
          %v2109 = vld [vmem:[%s17] sm:$0x1]
          %v2110 = vld [vmem:[%s18] sm:$0x1]
          %v2111 = vmax.f32 %v2110, 0.0
          %v2112 = vand.u32 2147483647, %v2110
          %v2113 = vsub.f32 0.0, %v2112
          %v2114 = vmul.f32 %v2113, 1.442695
          %v2115 = vpow.pop %v2114
          %v2116 = vadd.f32 %v2115, 1.0
          %v2117 = vlog2.pop %v2116
          %v2118 = vmul.f32 %v2117, 0.6931472
          %v2119 = vmul.f32 -0.5, %v2115
          %v2120 = vadd.f32 %v2119, 1.0
          %v2121 = vmul.f32 %v2120, %v2115
          %v2122 = vand.u32 2147483647, %v2115
          %vm2123 = vcmp.lt.f32.partialorder %v2122, 0.0004427343
          %v2124 = vsel %vm2123, %v2121, %v2118
          %v2125 = vadd.f32 %v2111, %v2124
          %v2126 = vld [vmem:[%s1053] sm:$0x1]
          %v2127 = vmul.f32 %v2125, %v2126
          %v2128 = vadd.f32 %v2109, %v2127
          %2129 = vst [vmem:[#allocation7] sm:$0x1] %v2128
          %v2130 = vld [vmem:[#allocation2] sm:$0xff]
          %v2131 = vld [vmem:[#allocation2 + $0x8] sm:$0xff]
          %v2132 = vld [vmem:[#allocation2 + $0x10] sm:$0xff]
          %v2133 = vld [vmem:[#allocation2 + $0x18] sm:$0xff]
          %v2134 = vld [vmem:[#allocation2 + $0x20] sm:$0xff]
          %v2135 = vld [vmem:[#allocation2 + $0x28] sm:$0xff]
          %v2136 = vld [vmem:[#allocation2 + $0x30] sm:$0xff]
          %v2137 = vld [vmem:[#allocation2 + $0x38] sm:$0xff]
          %v2138 = vld [vmem:[#allocation2 + $0x40] sm:$0xff]
          %v2139 = vld [vmem:[#allocation2 + $0x48] sm:$0xff]
          %v2140 = vld [vmem:[#allocation2 + $0x50] sm:$0xff]
          %v2141 = vld [vmem:[#allocation2 + $0x58] sm:$0xff]
          %v2142 = vld [vmem:[#allocation2 + $0x60] sm:$0xff]
          %v2143 = vld [vmem:[#allocation2 + $0x68] sm:$0xff]
          %v2144 = vld [vmem:[#allocation2 + $0x70] sm:$0xff]
          %v2145 = vld [vmem:[#allocation2 + $0x78] sm:$0xff]
          %2146 = vst [vmem:[%s1011] sm:$0xff] %v2130
          %2147 = vst [vmem:[%s1011 + $0x8] sm:$0xff] %v2131
          %2148 = vst [vmem:[%s1011 + $0x10] sm:$0xff] %v2132
          %2149 = vst [vmem:[%s1011 + $0x18] sm:$0xff] %v2133
          %2150 = vst [vmem:[%s1011 + $0x20] sm:$0xff] %v2134
          %2151 = vst [vmem:[%s1011 + $0x28] sm:$0xff] %v2135
          %2152 = vst [vmem:[%s1011 + $0x30] sm:$0xff] %v2136
          %2153 = vst [vmem:[%s1011 + $0x38] sm:$0xff] %v2137
          %2154 = vst [vmem:[%s1011 + $0x40] sm:$0xff] %v2138
          %2155 = vst [vmem:[%s1011 + $0x48] sm:$0xff] %v2139
          %2156 = vst [vmem:[%s1011 + $0x50] sm:$0xff] %v2140
          %2157 = vst [vmem:[%s1011 + $0x58] sm:$0xff] %v2141
          %2158 = vst [vmem:[%s1011 + $0x60] sm:$0xff] %v2142
          %2159 = vst [vmem:[%s1011 + $0x68] sm:$0xff] %v2143
          %2160 = vst [vmem:[%s1011 + $0x70] sm:$0xff] %v2144
          %2161 = vst [vmem:[%s1011 + $0x78] sm:$0xff] %v2145
          %v2162 = vld [vmem:[#allocation5] sm:$0x1]
          %2163 = vst [vmem:[%s1031] sm:$0x1] %v2162
          %v2164 = vld [vmem:[#allocation3] sm:$0xff]
          %v2165 = vld [vmem:[#allocation3 + $0x8] sm:$0xff]
          %v2166 = vld [vmem:[#allocation3 + $0x10] sm:$0xff]
          %v2167 = vld [vmem:[#allocation3 + $0x18] sm:$0xff]
          %v2168 = vld [vmem:[#allocation3 + $0x20] sm:$0xff]
          %v2169 = vld [vmem:[#allocation3 + $0x28] sm:$0xff]
          %v2170 = vld [vmem:[#allocation3 + $0x30] sm:$0xff]
          %v2171 = vld [vmem:[#allocation3 + $0x38] sm:$0xff]
          %v2172 = vld [vmem:[#allocation3 + $0x40] sm:$0xff]
          %v2173 = vld [vmem:[#allocation3 + $0x48] sm:$0xff]
          %v2174 = vld [vmem:[#allocation3 + $0x50] sm:$0xff]
          %v2175 = vld [vmem:[#allocation3 + $0x58] sm:$0xff]
          %v2176 = vld [vmem:[#allocation3 + $0x60] sm:$0xff]
          %v2177 = vld [vmem:[#allocation3 + $0x68] sm:$0xff]
          %v2178 = vld [vmem:[#allocation3 + $0x70] sm:$0xff]
          %v2179 = vld [vmem:[#allocation3 + $0x78] sm:$0xff]
          %2180 = vst [vmem:[%s1018] sm:$0xff] %v2164
          %2181 = vst [vmem:[%s1018 + $0x8] sm:$0xff] %v2165
          %2182 = vst [vmem:[%s1018 + $0x10] sm:$0xff] %v2166
          %2183 = vst [vmem:[%s1018 + $0x18] sm:$0xff] %v2167
          %2184 = vst [vmem:[%s1018 + $0x20] sm:$0xff] %v2168
          %2185 = vst [vmem:[%s1018 + $0x28] sm:$0xff] %v2169
          %2186 = vst [vmem:[%s1018 + $0x30] sm:$0xff] %v2170
          %2187 = vst [vmem:[%s1018 + $0x38] sm:$0xff] %v2171
          %2188 = vst [vmem:[%s1018 + $0x40] sm:$0xff] %v2172
          %2189 = vst [vmem:[%s1018 + $0x48] sm:$0xff] %v2173
          %2190 = vst [vmem:[%s1018 + $0x50] sm:$0xff] %v2174
          %2191 = vst [vmem:[%s1018 + $0x58] sm:$0xff] %v2175
          %2192 = vst [vmem:[%s1018 + $0x60] sm:$0xff] %v2176
          %2193 = vst [vmem:[%s1018 + $0x68] sm:$0xff] %v2177
          %2194 = vst [vmem:[%s1018 + $0x70] sm:$0xff] %v2178
          %2195 = vst [vmem:[%s1018 + $0x78] sm:$0xff] %v2179
          %v2196 = vld [vmem:[#allocation6] sm:$0x1]
          %2197 = vst [vmem:[%s1037] sm:$0x1] %v2196
          %v2198 = vld [vmem:[#allocation4] sm:$0xff]
          %v2199 = vld [vmem:[#allocation4 + $0x8] sm:$0xff]
          %v2200 = vld [vmem:[#allocation4 + $0x10] sm:$0xff]
          %v2201 = vld [vmem:[#allocation4 + $0x18] sm:$0xff]
          %v2202 = vld [vmem:[#allocation4 + $0x20] sm:$0xff]
          %v2203 = vld [vmem:[#allocation4 + $0x28] sm:$0xff]
          %v2204 = vld [vmem:[#allocation4 + $0x30] sm:$0xff]
          %v2205 = vld [vmem:[#allocation4 + $0x38] sm:$0xff]
          %v2206 = vld [vmem:[#allocation4 + $0x40] sm:$0xff]
          %v2207 = vld [vmem:[#allocation4 + $0x48] sm:$0xff]
          %v2208 = vld [vmem:[#allocation4 + $0x50] sm:$0xff]
          %v2209 = vld [vmem:[#allocation4 + $0x58] sm:$0xff]
          %v2210 = vld [vmem:[#allocation4 + $0x60] sm:$0xff]
          %v2211 = vld [vmem:[#allocation4 + $0x68] sm:$0xff]
          %v2212 = vld [vmem:[#allocation4 + $0x70] sm:$0xff]
          %v2213 = vld [vmem:[#allocation4 + $0x78] sm:$0xff]
          %2214 = vst [vmem:[%s1025] sm:$0xff] %v2198
          %2215 = vst [vmem:[%s1025 + $0x8] sm:$0xff] %v2199
          %2216 = vst [vmem:[%s1025 + $0x10] sm:$0xff] %v2200
          %2217 = vst [vmem:[%s1025 + $0x18] sm:$0xff] %v2201
          %2218 = vst [vmem:[%s1025 + $0x20] sm:$0xff] %v2202
          %2219 = vst [vmem:[%s1025 + $0x28] sm:$0xff] %v2203
          %2220 = vst [vmem:[%s1025 + $0x30] sm:$0xff] %v2204
          %2221 = vst [vmem:[%s1025 + $0x38] sm:$0xff] %v2205
          %2222 = vst [vmem:[%s1025 + $0x40] sm:$0xff] %v2206
          %2223 = vst [vmem:[%s1025 + $0x48] sm:$0xff] %v2207
          %2224 = vst [vmem:[%s1025 + $0x50] sm:$0xff] %v2208
          %2225 = vst [vmem:[%s1025 + $0x58] sm:$0xff] %v2209
          %2226 = vst [vmem:[%s1025 + $0x60] sm:$0xff] %v2210
          %2227 = vst [vmem:[%s1025 + $0x68] sm:$0xff] %v2211
          %2228 = vst [vmem:[%s1025 + $0x70] sm:$0xff] %v2212
          %2229 = vst [vmem:[%s1025 + $0x78] sm:$0xff] %v2213
          %v2230 = vld [vmem:[#allocation7] sm:$0x1]
          %2231 = vst [vmem:[%s1043] sm:$0x1] %v2230
        $region144: #{tpu_custom_call.1} parent=99 // pred_fallthru
          _
        %v2232 = vld [vmem:[#allocation8] sm:$0xff]
        %v2233 = vld [vmem:[#allocation8 + $0x8] sm:$0xff]
        %v2234 = vld [vmem:[#allocation8 + $0x10] sm:$0xff]
        %v2235 = vld [vmem:[#allocation8 + $0x18] sm:$0xff]
        %v2236 = vld [vmem:[#allocation8 + $0x20] sm:$0xff]
        %v2237 = vld [vmem:[#allocation8 + $0x28] sm:$0xff]
        %v2238 = vld [vmem:[#allocation2] sm:$0xff]
        %v2239 = vld [vmem:[#allocation2 + $0x8] sm:$0xff]
        %v2240 = vld [vmem:[#allocation2 + $0x10] sm:$0xff]
        %v2241 = vld [vmem:[#allocation2 + $0x18] sm:$0xff]
        %v2242 = vld [vmem:[#allocation2 + $0x20] sm:$0xff]
        %v2243 = vld [vmem:[#allocation2 + $0x28] sm:$0xff]
        %v2244 = vld [vmem:[#allocation2 + $0x30] sm:$0xff]
        %v2245 = vld [vmem:[#allocation2 + $0x38] sm:$0xff]
        %v2246 = vld [vmem:[#allocation2 + $0x40] sm:$0xff]
        %v2247 = vld [vmem:[#allocation2 + $0x48] sm:$0xff]
        %v2248 = vld [vmem:[#allocation2 + $0x50] sm:$0xff]
        %v2249 = vld [vmem:[#allocation2 + $0x58] sm:$0xff]
        %v2250 = vld [vmem:[#allocation2 + $0x60] sm:$0xff]
        %v2251 = vld [vmem:[#allocation2 + $0x68] sm:$0xff]
        %v2252 = vld [vmem:[#allocation2 + $0x70] sm:$0xff]
        %v2253 = vld [vmem:[#allocation2 + $0x78] sm:$0xff]
        %v2254 = vld [vmem:[#allocation5] sm:$0x1]
        %v2256 = vlaneseq
        %v2257 = vshrl.u32 %v2256, 7
        %v2258 = vsub.s32 0, %v2257
        %v2259 = vrot.slane %v2254, %v2258
        %2261 = vmatprep.subr.mxu0 0.0
        %2262 = vmatpush1.msra.mxu0 %v2238
        %2263 = vmatprep.subr.mxu0 0.0
        %2264 = vmatpush1.msra.mxu0 %v2239
        %2265 = vmatprep.subr.mxu0 0.0
        %2266 = vmatpush1.msra.mxu0 %v2240
        %2267 = vmatprep.subr.mxu0 0.0
        %2268 = vmatpush1.msra.mxu0 %v2241
        %2269 = vmatprep.subr.mxu0 0.0
        %2270 = vmatpush1.msra.mxu0 %v2242
        %2271 = vmatprep.subr.mxu0 0.0
        %2272 = vmatpush1.msra.mxu0 %v2243
        %2273 = vmatprep.subr.mxu0 0.0
        %2274 = vmatpush1.msra.mxu0 %v2244
        %2275 = vmatprep.subr.mxu0 0.0
        %2276 = vmatpush1.msra.mxu0 %v2245
        %2277 = vmatprep.subr.mxu0 0.0
        %2278 = vmatpush1.msra.mxu0 %v2246
        %2279 = vmatprep.subr.mxu0 0.0
        %2280 = vmatpush1.msra.mxu0 %v2247
        %2281 = vmatprep.subr.mxu0 0.0
        %2282 = vmatpush1.msra.mxu0 %v2248
        %2283 = vmatprep.subr.mxu0 0.0
        %2284 = vmatpush1.msra.mxu0 %v2249
        %2285 = vmatprep.subr.mxu0 0.0
        %2286 = vmatpush1.msra.mxu0 %v2250
        %2287 = vmatprep.subr.mxu0 0.0
        %2288 = vmatpush1.msra.mxu0 %v2251
        %2289 = vmatprep.subr.mxu0 0.0
        %2290 = vmatpush1.msra.mxu0 %v2252
        %2291 = vmatprep.subr.mxu0 0.0
        %2292 = vmatpush1.msra.mxu0 %v2253
        %2293 = vmatprep.subr.mxu0 0.0
        %2294 = vmatpush1.msra.mxu0 0.0
        %2295 = vmatprep.subr.mxu0 0.0
        %2296 = vmatpush1.msra.mxu0 0.0
        %2297 = vmatprep.subr.mxu0 0.0
        %2298 = vmatpush1.msra.mxu0 0.0
        %2299 = vmatprep.subr.mxu0 0.0
        %2300 = vmatpush1.msra.mxu0 0.0
        %2301 = vmatprep.subr.mxu0 0.0
        %2302 = vmatpush1.msra.mxu0 0.0
        %2303 = vmatprep.subr.mxu0 0.0
        %2304 = vmatpush1.msra.mxu0 0.0
        %2305 = vmatprep.subr.mxu0 0.0
        %2306 = vmatpush1.msra.mxu0 0.0
        %2307 = vmatprep.subr.mxu0 0.0
        %2308 = vmatpush1.msra.mxu0 0.0
        %2309 = vmatprep.subr.mxu0 0.0
        %2310 = vmatpush1.msra.mxu0 0.0
        %2311 = vmatprep.subr.mxu0 0.0
        %2312 = vmatpush1.msra.mxu0 0.0
        %2313 = vmatprep.subr.mxu0 0.0
        %2314 = vmatpush1.msra.mxu0 0.0
        %2315 = vmatprep.subr.mxu0 0.0
        %2316 = vmatpush1.msra.mxu0 0.0
        %2317 = vmatprep.subr.mxu0 0.0
        %2318 = vmatpush1.msra.mxu0 0.0
        %2319 = vmatprep.subr.mxu0 0.0
        %2320 = vmatpush1.msra.mxu0 0.0
        %2321 = vmatprep.subr.mxu0 0.0
        %2322 = vmatpush1.msra.mxu0 0.0
        %2323 = vmatprep.subr.mxu0 0.0
        %2324 = vmatpush1.msra.mxu0 0.0
        %2325 = vmatprep.mubr.f32.mxu0 0.0
        %2326 = vmatmul.mubr.f32.gmra.mrb[0].mxu0 %v2232
        %v2327 = vpop.f32.mrb[0].mxu0
        %v2328 = vadd.f32 %v2259, %v2327
        %v2329 = vpop.f32.mrb[0].mxu0
        %2330 = vmatprep.mubr.f32.mxu0 0.0
        %2331 = vmatmul.mubr.f32.gmra.mrb[0].mxu0 %v2233
        %v2332 = vpop.f32.mrb[0].mxu0
        %v2333 = vadd.f32 %v2259, %v2332
        %v2334 = vpop.f32.mrb[0].mxu0
        %2335 = vmatprep.mubr.f32.mxu0 0.0
        %2336 = vmatmul.mubr.f32.gmra.mrb[0].mxu0 %v2234
        %v2337 = vpop.f32.mrb[0].mxu0
        %v2338 = vadd.f32 %v2259, %v2337
        %v2339 = vpop.f32.mrb[0].mxu0
        %2340 = vmatprep.mubr.f32.mxu0 0.0
        %2341 = vmatmul.mubr.f32.gmra.mrb[0].mxu0 %v2235
        %v2342 = vpop.f32.mrb[0].mxu0
        %v2343 = vadd.f32 %v2259, %v2342
        %v2344 = vpop.f32.mrb[0].mxu0
        %2345 = vmatprep.mubr.f32.mxu0 0.0
        %2346 = vmatmul.mubr.f32.gmra.mrb[0].mxu0 %v2236
        %v2347 = vpop.f32.mrb[0].mxu0
        %v2348 = vadd.f32 %v2259, %v2347
        %v2349 = vpop.f32.mrb[0].mxu0
        %2350 = vmatprep.mubr.f32.mxu0 0.0
        %2351 = vmatmul.mubr.f32.gmra.mrb[0].mxu0 %v2237
        %v2352 = vpop.f32.mrb[0].mxu0
        %v2353 = vadd.f32 %v2259, %v2352
        %v2354 = vpop.f32.mrb[0].mxu0
        %2355 = vdwg.mxu0
        %v2356 = vmax.f32 %v2328, 0.0
        %v2357 = vmax.f32 %v2333, 0.0
        %v2358 = vmax.f32 %v2338, 0.0
        %v2359 = vmax.f32 %v2343, 0.0
        %v2360 = vmax.f32 %v2348, 0.0
        %v2361 = vmax.f32 %v2353, 0.0
        %v2362 = vld [vmem:[#allocation3] sm:$0xff]
        %v2363 = vld [vmem:[#allocation3 + $0x8] sm:$0xff]
        %v2364 = vld [vmem:[#allocation3 + $0x10] sm:$0xff]
        %v2365 = vld [vmem:[#allocation3 + $0x18] sm:$0xff]
        %v2366 = vld [vmem:[#allocation3 + $0x20] sm:$0xff]
        %v2367 = vld [vmem:[#allocation3 + $0x28] sm:$0xff]
        %v2368 = vld [vmem:[#allocation3 + $0x30] sm:$0xff]
        %v2369 = vld [vmem:[#allocation3 + $0x38] sm:$0xff]
        %v2370 = vld [vmem:[#allocation3 + $0x40] sm:$0xff]
        %v2371 = vld [vmem:[#allocation3 + $0x48] sm:$0xff]
        %v2372 = vld [vmem:[#allocation3 + $0x50] sm:$0xff]
        %v2373 = vld [vmem:[#allocation3 + $0x58] sm:$0xff]
        %v2374 = vld [vmem:[#allocation3 + $0x60] sm:$0xff]
        %v2375 = vld [vmem:[#allocation3 + $0x68] sm:$0xff]
        %v2376 = vld [vmem:[#allocation3 + $0x70] sm:$0xff]
        %v2377 = vld [vmem:[#allocation3 + $0x78] sm:$0xff]
        %v2378 = vld [vmem:[#allocation6] sm:$0x1]
        %v2380 = vlaneseq
        %v2381 = vshrl.u32 %v2380, 7
        %v2382 = vsub.s32 0, %v2381
        %v2383 = vrot.slane %v2378, %v2382
        %2385 = vmatprep.subr.mxu0 0.0
        %2386 = vmatpush1.msra.mxu0 %v2362
        %2387 = vmatprep.subr.mxu0 0.0
        %2388 = vmatpush1.msra.mxu0 %v2363
        %2389 = vmatprep.subr.mxu0 0.0
        %2390 = vmatpush1.msra.mxu0 %v2364
        %2391 = vmatprep.subr.mxu0 0.0
        %2392 = vmatpush1.msra.mxu0 %v2365
        %2393 = vmatprep.subr.mxu0 0.0
        %2394 = vmatpush1.msra.mxu0 %v2366
        %2395 = vmatprep.subr.mxu0 0.0
        %2396 = vmatpush1.msra.mxu0 %v2367
        %2397 = vmatprep.subr.mxu0 0.0
        %2398 = vmatpush1.msra.mxu0 %v2368
        %2399 = vmatprep.subr.mxu0 0.0
        %2400 = vmatpush1.msra.mxu0 %v2369
        %2401 = vmatprep.subr.mxu0 0.0
        %2402 = vmatpush1.msra.mxu0 %v2370
        %2403 = vmatprep.subr.mxu0 0.0
        %2404 = vmatpush1.msra.mxu0 %v2371
        %2405 = vmatprep.subr.mxu0 0.0
        %2406 = vmatpush1.msra.mxu0 %v2372
        %2407 = vmatprep.subr.mxu0 0.0
        %2408 = vmatpush1.msra.mxu0 %v2373
        %2409 = vmatprep.subr.mxu0 0.0
        %2410 = vmatpush1.msra.mxu0 %v2374
        %2411 = vmatprep.subr.mxu0 0.0
        %2412 = vmatpush1.msra.mxu0 %v2375
        %2413 = vmatprep.subr.mxu0 0.0
        %2414 = vmatpush1.msra.mxu0 %v2376
        %2415 = vmatprep.subr.mxu0 0.0
        %2416 = vmatpush1.msra.mxu0 %v2377
        %2417 = vmatprep.subr.mxu0 0.0
        %2418 = vmatpush1.msra.mxu0 0.0
        %2419 = vmatprep.subr.mxu0 0.0
        %2420 = vmatpush1.msra.mxu0 0.0
        %2421 = vmatprep.subr.mxu0 0.0
        %2422 = vmatpush1.msra.mxu0 0.0
        %2423 = vmatprep.subr.mxu0 0.0
        %2424 = vmatpush1.msra.mxu0 0.0
        %2425 = vmatprep.subr.mxu0 0.0
        %2426 = vmatpush1.msra.mxu0 0.0
        %2427 = vmatprep.subr.mxu0 0.0
        %2428 = vmatpush1.msra.mxu0 0.0
        %2429 = vmatprep.subr.mxu0 0.0
        %2430 = vmatpush1.msra.mxu0 0.0
        %2431 = vmatprep.subr.mxu0 0.0
        %2432 = vmatpush1.msra.mxu0 0.0
        %2433 = vmatprep.subr.mxu0 0.0
        %2434 = vmatpush1.msra.mxu0 0.0
        %2435 = vmatprep.subr.mxu0 0.0
        %2436 = vmatpush1.msra.mxu0 0.0
        %2437 = vmatprep.subr.mxu0 0.0
        %2438 = vmatpush1.msra.mxu0 0.0
        %2439 = vmatprep.subr.mxu0 0.0
        %2440 = vmatpush1.msra.mxu0 0.0
        %2441 = vmatprep.subr.mxu0 0.0
        %2442 = vmatpush1.msra.mxu0 0.0
        %2443 = vmatprep.subr.mxu0 0.0
        %2444 = vmatpush1.msra.mxu0 0.0
        %2445 = vmatprep.subr.mxu0 0.0
        %2446 = vmatpush1.msra.mxu0 0.0
        %2447 = vmatprep.subr.mxu0 0.0
        %2448 = vmatpush1.msra.mxu0 0.0
        %2449 = vmatprep.mubr.f32.mxu0 0.0
        %2450 = vmatmul.mubr.f32.gmra.mrb[0].mxu0 %v2356
        %v2451 = vpop.f32.mrb[0].mxu0
        %v2452 = vadd.f32 %v2383, %v2451
        %v2453 = vpop.f32.mrb[0].mxu0
        %2454 = vmatprep.mubr.f32.mxu0 0.0
        %2455 = vmatmul.mubr.f32.gmra.mrb[0].mxu0 %v2357
        %v2456 = vpop.f32.mrb[0].mxu0
        %v2457 = vadd.f32 %v2383, %v2456
        %v2458 = vpop.f32.mrb[0].mxu0
        %2459 = vmatprep.mubr.f32.mxu0 0.0
        %2460 = vmatmul.mubr.f32.gmra.mrb[0].mxu0 %v2358
        %v2461 = vpop.f32.mrb[0].mxu0
        %v2462 = vadd.f32 %v2383, %v2461
        %v2463 = vpop.f32.mrb[0].mxu0
        %2464 = vmatprep.mubr.f32.mxu0 0.0
        %2465 = vmatmul.mubr.f32.gmra.mrb[0].mxu0 %v2359
        %v2466 = vpop.f32.mrb[0].mxu0
        %v2467 = vadd.f32 %v2383, %v2466
        %v2468 = vpop.f32.mrb[0].mxu0
        %2469 = vmatprep.mubr.f32.mxu0 0.0
        %2470 = vmatmul.mubr.f32.gmra.mrb[0].mxu0 %v2360
        %v2471 = vpop.f32.mrb[0].mxu0
        %v2472 = vadd.f32 %v2383, %v2471
        %v2473 = vpop.f32.mrb[0].mxu0
        %2474 = vmatprep.mubr.f32.mxu0 0.0
        %2475 = vmatmul.mubr.f32.gmra.mrb[0].mxu0 %v2361
        %v2476 = vpop.f32.mrb[0].mxu0
        %v2477 = vadd.f32 %v2383, %v2476
        %v2478 = vpop.f32.mrb[0].mxu0
        %2479 = vdwg.mxu0
        %v2480 = vmax.f32 %v2452, 0.0
        %v2481 = vmax.f32 %v2457, 0.0
        %v2482 = vmax.f32 %v2462, 0.0
        %v2483 = vmax.f32 %v2467, 0.0
        %v2484 = vmax.f32 %v2472, 0.0
        %v2485 = vmax.f32 %v2477, 0.0
        %v2486 = vld [vmem:[#allocation4] sm:$0xff]
        %v2487 = vld [vmem:[#allocation4 + $0x8] sm:$0xff]
        %v2488 = vld [vmem:[#allocation4 + $0x10] sm:$0xff]
        %v2489 = vld [vmem:[#allocation4 + $0x18] sm:$0xff]
        %v2490 = vld [vmem:[#allocation4 + $0x20] sm:$0xff]
        %v2491 = vld [vmem:[#allocation4 + $0x28] sm:$0xff]
        %v2492 = vld [vmem:[#allocation4 + $0x30] sm:$0xff]
        %v2493 = vld [vmem:[#allocation4 + $0x38] sm:$0xff]
        %v2494 = vld [vmem:[#allocation4 + $0x40] sm:$0xff]
        %v2495 = vld [vmem:[#allocation4 + $0x48] sm:$0xff]
        %v2496 = vld [vmem:[#allocation4 + $0x50] sm:$0xff]
        %v2497 = vld [vmem:[#allocation4 + $0x58] sm:$0xff]
        %v2498 = vld [vmem:[#allocation4 + $0x60] sm:$0xff]
        %v2499 = vld [vmem:[#allocation4 + $0x68] sm:$0xff]
        %v2500 = vld [vmem:[#allocation4 + $0x70] sm:$0xff]
        %v2501 = vld [vmem:[#allocation4 + $0x78] sm:$0xff]
        %v2502 = vld [vmem:[#allocation7] sm:$0x1]
        %v2504 = vlaneseq
        %v2505 = vshrl.u32 %v2504, 7
        %v2506 = vsub.s32 0, %v2505
        %v2507 = vrot.slane %v2502, %v2506
        %2509 = vmatprep.subr.mxu0 0.0
        %2510 = vmatpush1.msra.mxu0 %v2486
        %2511 = vmatprep.subr.mxu0 0.0
        %2512 = vmatpush1.msra.mxu0 %v2487
        %2513 = vmatprep.subr.mxu0 0.0
        %2514 = vmatpush1.msra.mxu0 %v2488
        %2515 = vmatprep.subr.mxu0 0.0
        %2516 = vmatpush1.msra.mxu0 %v2489
        %2517 = vmatprep.subr.mxu0 0.0
        %2518 = vmatpush1.msra.mxu0 %v2490
        %2519 = vmatprep.subr.mxu0 0.0
        %2520 = vmatpush1.msra.mxu0 %v2491
        %2521 = vmatprep.subr.mxu0 0.0
        %2522 = vmatpush1.msra.mxu0 %v2492
        %2523 = vmatprep.subr.mxu0 0.0
        %2524 = vmatpush1.msra.mxu0 %v2493
        %2525 = vmatprep.subr.mxu0 0.0
        %2526 = vmatpush1.msra.mxu0 %v2494
        %2527 = vmatprep.subr.mxu0 0.0
        %2528 = vmatpush1.msra.mxu0 %v2495
        %2529 = vmatprep.subr.mxu0 0.0
        %2530 = vmatpush1.msra.mxu0 %v2496
        %2531 = vmatprep.subr.mxu0 0.0
        %2532 = vmatpush1.msra.mxu0 %v2497
        %2533 = vmatprep.subr.mxu0 0.0
        %2534 = vmatpush1.msra.mxu0 %v2498
        %2535 = vmatprep.subr.mxu0 0.0
        %2536 = vmatpush1.msra.mxu0 %v2499
        %2537 = vmatprep.subr.mxu0 0.0
        %2538 = vmatpush1.msra.mxu0 %v2500
        %2539 = vmatprep.subr.mxu0 0.0
        %2540 = vmatpush1.msra.mxu0 %v2501
        %2541 = vmatprep.subr.mxu0 0.0
        %2542 = vmatpush1.msra.mxu0 0.0
        %2543 = vmatprep.subr.mxu0 0.0
        %2544 = vmatpush1.msra.mxu0 0.0
        %2545 = vmatprep.subr.mxu0 0.0
        %2546 = vmatpush1.msra.mxu0 0.0
        %2547 = vmatprep.subr.mxu0 0.0
        %2548 = vmatpush1.msra.mxu0 0.0
        %2549 = vmatprep.subr.mxu0 0.0
        %2550 = vmatpush1.msra.mxu0 0.0
        %2551 = vmatprep.subr.mxu0 0.0
        %2552 = vmatpush1.msra.mxu0 0.0
        %2553 = vmatprep.subr.mxu0 0.0
        %2554 = vmatpush1.msra.mxu0 0.0
        %2555 = vmatprep.subr.mxu0 0.0
        %2556 = vmatpush1.msra.mxu0 0.0
        %2557 = vmatprep.subr.mxu0 0.0
        %2558 = vmatpush1.msra.mxu0 0.0
        %2559 = vmatprep.subr.mxu0 0.0
        %2560 = vmatpush1.msra.mxu0 0.0
        %2561 = vmatprep.subr.mxu0 0.0
        %2562 = vmatpush1.msra.mxu0 0.0
        %2563 = vmatprep.subr.mxu0 0.0
        %2564 = vmatpush1.msra.mxu0 0.0
        %2565 = vmatprep.subr.mxu0 0.0
        %2566 = vmatpush1.msra.mxu0 0.0
        %2567 = vmatprep.subr.mxu0 0.0
        %2568 = vmatpush1.msra.mxu0 0.0
        %2569 = vmatprep.subr.mxu0 0.0
        %2570 = vmatpush1.msra.mxu0 0.0
        %2571 = vmatprep.subr.mxu0 0.0
        %2572 = vmatpush1.msra.mxu0 0.0
        %2573 = vmatprep.mubr.f32.mxu0 0.0
        %2574 = vmatmul.mubr.f32.gmra.mrb[0].mxu0 %v2480
        %v2575 = vpop.f32.mrb[0].mxu0
        %v2576 = vadd.f32 %v2507, %v2575
        %v2577 = vpop.f32.mrb[0].mxu0
        %2578 = vmatprep.mubr.f32.mxu0 0.0
        %2579 = vmatmul.mubr.f32.gmra.mrb[0].mxu0 %v2481
        %v2580 = vpop.f32.mrb[0].mxu0
        %v2581 = vadd.f32 %v2507, %v2580
        %v2582 = vpop.f32.mrb[0].mxu0
        %2583 = vmatprep.mubr.f32.mxu0 0.0
        %2584 = vmatmul.mubr.f32.gmra.mrb[0].mxu0 %v2482
        %v2585 = vpop.f32.mrb[0].mxu0
        %v2586 = vadd.f32 %v2507, %v2585
        %v2587 = vpop.f32.mrb[0].mxu0
        %2588 = vmatprep.mubr.f32.mxu0 0.0
        %2589 = vmatmul.mubr.f32.gmra.mrb[0].mxu0 %v2483
        %v2590 = vpop.f32.mrb[0].mxu0
        %v2591 = vadd.f32 %v2507, %v2590
        %v2592 = vpop.f32.mrb[0].mxu0
        %2593 = vmatprep.mubr.f32.mxu0 0.0
        %2594 = vmatmul.mubr.f32.gmra.mrb[0].mxu0 %v2484
        %v2595 = vpop.f32.mrb[0].mxu0
        %v2596 = vadd.f32 %v2507, %v2595
        %v2597 = vpop.f32.mrb[0].mxu0
        %2598 = vmatprep.mubr.f32.mxu0 0.0
        %2599 = vmatmul.mubr.f32.gmra.mrb[0].mxu0 %v2485
        %v2600 = vpop.f32.mrb[0].mxu0
        %v2601 = vadd.f32 %v2507, %v2600
        %v2602 = vpop.f32.mrb[0].mxu0
        %2603 = vdwg.mxu0
        %v2604 = vmax.f32 %v2576, 0.0
        %v2605 = vmax.f32 %v2581, 0.0
        %v2606 = vmax.f32 %v2586, 0.0
        %v2607 = vmax.f32 %v2591, 0.0
        %v2608 = vmax.f32 %v2596, 0.0
        %v2609 = vmax.f32 %v2601, 0.0
        %2610 = vmax.xlane.f32.xlu0 %v2604
        %v2611 = vpop.xlane.xlu0 %2610
        %2612 = vmax.xlane.f32.xlu0 %v2605
        %v2613 = vpop.xlane.xlu0 %2612
        %2614 = vmax.xlane.f32.xlu0 %v2606
        %v2615 = vpop.xlane.xlu0 %2614
        %2616 = vmax.xlane.f32.xlu0 %v2607
        %v2617 = vpop.xlane.xlu0 %2616
        %2618 = vmax.xlane.f32.xlu0 %v2608
        %v2619 = vpop.xlane.xlu0 %2618
        %2620 = vmax.xlane.f32.xlu0 %v2609
        %v2621 = vpop.xlane.xlu0 %2620
        %v2622 = vsub.f32 %v2604, %v2611
        %v2623 = vsub.f32 %v2605, %v2613
        %v2624 = vsub.f32 %v2606, %v2615
        %v2625 = vsub.f32 %v2607, %v2617
        %v2626 = vsub.f32 %v2608, %v2619
        %v2627 = vsub.f32 %v2609, %v2621
        %v2628 = vmul.f32 %v2622, 1.442695
        %v2629 = vpow.pop %v2628
        %v2630 = vmul.f32 %v2623, 1.442695
        %v2631 = vpow.pop %v2630
        %v2632 = vmul.f32 %v2624, 1.442695
        %v2633 = vpow.pop %v2632
        %v2634 = vmul.f32 %v2625, 1.442695
        %v2635 = vpow.pop %v2634
        %v2636 = vmul.f32 %v2626, 1.442695
        %v2637 = vpow.pop %v2636
        %v2638 = vmul.f32 %v2627, 1.442695
        %v2639 = vpow.pop %v2638
        %v2640 = vld [vmem:[%s1] sm:$0x1]
        %v2642 = vlaneseq
        %v2643 = vshrl.u32 %v2642, 7
        %v2644 = vsub.s32 0, %v2643
        %v2645 = vrot.slane %v2640, %v2644
        %v2647 = vmul.f32 %v2629, %v2645
        %v2648 = vmul.f32 %v2631, %v2645
        %v2649 = vmul.f32 %v2633, %v2645
        %v2650 = vmul.f32 %v2635, %v2645
        %v2651 = vmul.f32 %v2637, %v2645
        %v2652 = vmul.f32 %v2639, %v2645
        %2653 = vadd.xlane.f32.xlu0 %v2647
        %v2654 = vpop.xlane.xlu0 %2653
        %2655 = vadd.xlane.f32.xlu0 %v2648
        %v2656 = vpop.xlane.xlu0 %2655
        %2657 = vadd.xlane.f32.xlu0 %v2649
        %v2658 = vpop.xlane.xlu0 %2657
        %2659 = vadd.xlane.f32.xlu0 %v2650
        %v2660 = vpop.xlane.xlu0 %2659
        %2661 = vadd.xlane.f32.xlu0 %v2651
        %v2662 = vpop.xlane.xlu0 %2661
        %2663 = vadd.xlane.f32.xlu0 %v2652
        %v2664 = vpop.xlane.xlu0 %2663
        %v2665 = vrcp.pop %v2654
        %v2666 = vmul.f32 %v2647, %v2665
        %v2667 = vrcp.pop %v2656
        %v2668 = vmul.f32 %v2648, %v2667
        %v2669 = vrcp.pop %v2658
        %v2670 = vmul.f32 %v2649, %v2669
        %v2671 = vrcp.pop %v2660
        %v2672 = vmul.f32 %v2650, %v2671
        %v2673 = vrcp.pop %v2662
        %v2674 = vmul.f32 %v2651, %v2673
        %v2675 = vrcp.pop %v2664
        %v2676 = vmul.f32 %v2652, %v2675
        %2677 = vst [vmem:[%s1004] sm:$0xff] %v2666
        %2678 = vst [vmem:[%s1004 + $0x8] sm:$0xff] %v2668
        %2679 = vst [vmem:[%s1004 + $0x10] sm:$0xff] %v2670
        %2680 = vst [vmem:[%s1004 + $0x18] sm:$0xff] %v2672
        %2681 = vst [vmem:[%s1004 + $0x20] sm:$0xff] %v2674
        %2682 = vst [vmem:[%s1004 + $0x28] sm:$0xff] %v2676
        %s2683 = sand.u32 %s533, 1
        %s2684 = scalar_lea.sflag [#allocation10], %s2683
        %s2685 = sand.u32 %s533, 1
        %s2686 = smul.addr %s2685, 48
        %s2687 = scalar_lea.vmem [#allocation25], %s2686
        %s2688 = sand.u32 %s56, 1
        %s2689 = scalar_lea.sflag [#allocation27], %s2688
        %s2690 = sand.u32 %s559, 1
        %s2691 = smul.addr %s2690, 128
        %s2692 = scalar_lea.vmem [#allocation26], %s2691
        %s2693 = sand.u32 %s56, 1
        %s2694 = scalar_lea.sflag [#allocation27], %s2693
        %s2695 = sand.u32 %s585, 1
        %s2696 = smul.addr %s2695, 128
        %s2697 = scalar_lea.vmem [#allocation28], %s2696
        %s2698 = sand.u32 %s56, 1
        %s2699 = scalar_lea.sflag [#allocation30], %s2698
        %s2700 = sand.u32 %s611, 1
        %s2701 = smul.addr %s2700, 128
        %s2702 = scalar_lea.vmem [#allocation29], %s2701
        %s2703 = sand.u32 %s56, 1
        %s2704 = scalar_lea.sflag [#allocation30], %s2703
        %s2705 = sand.u32 %s637, 1
        %s2706 = scalar_lea.vmem [#allocation31], %s2705
        %s2707 = sand.u32 %s56, 1
        %s2708 = scalar_lea.sflag [#allocation33], %s2707
        %s2709 = sand.u32 %s663, 1
        %s2710 = scalar_lea.vmem [#allocation32], %s2709
        %s2711 = sand.u32 %s56, 1
        %s2712 = scalar_lea.sflag [#allocation33], %s2711
        %s2713 = sand.u32 %s689, 1
        %s2714 = scalar_lea.vmem [#allocation34], %s2713
        // Predicated region
        $region145: #{tpu_custom_call.1} parent=99 // pred_check
          %p2715 = pneg %p543
        $region146: #{tpu_custom_call.1} parent=99 // pred_check_branch
          %2717 = sbr.rel (%p2715) target = $region148
        $region147: #{tpu_custom_call.1} parent=99 // pred_region
          %s2718 = smul.u32 6, %s61
          %s2720 = ssub.s32 768, 768
          %2721 = vsyncadd %s2684, %s2720
          %s2722 = smul.addr %s60, 6
          %s2723 = sadd.s32 %s2718, %s2722
          %s2724 = smul.addr %s2723, 128
          %s2725 = scalar_lea.hbm %s20, %s2724
          %s2726 = sshll.u32 %s2687, 4
          %s2727 = int_to_ptr.vmem [resolvable:$true] %s2726
          %2732 = dma.vmem_to_hbm [thread:$0]  %s2727, 768, %s2725, %s2684, 128, 128, 8
        $region148: #{tpu_custom_call.1} parent=99 // pred_fallthru
          _
        // Predicated region
        $region149: #{tpu_custom_call.1} parent=99 // pred_check
          %p2733 = pneg %p569
        $region150: #{tpu_custom_call.1} parent=99 // pred_check_branch
          %2735 = sbr.rel (%p2733) target = $region152
        $region151: #{tpu_custom_call.1} parent=99 // pred_region
          %s2737 = ssub.s32 2048, 2048
          %2738 = vsyncadd %s2689, %s2737
          %s2739 = smul.addr %s60, 16
          %s2740 = smul.addr %s2739, 128
          %s2741 = scalar_lea.hbm %s21, %s2740
          %s2742 = sshll.u32 %s2692, 4
          %s2743 = int_to_ptr.vmem [resolvable:$true] %s2742
          %2748 = dma.vmem_to_hbm [thread:$0]  %s2743, 2048, %s2741, %s2689, 128, 128, 8
        $region152: #{tpu_custom_call.1} parent=99 // pred_fallthru
          _
        // Predicated region
        $region153: #{tpu_custom_call.1} parent=99 // pred_check
          %p2749 = pneg %p595
        $region154: #{tpu_custom_call.1} parent=99 // pred_check_branch
          %2751 = sbr.rel (%p2749) target = $region156
        $region155: #{tpu_custom_call.1} parent=99 // pred_region
          %s2753 = ssub.s32 2048, 2048
          %2754 = vsyncadd %s2694, %s2753
          %s2755 = smul.addr %s60, 16
          %s2756 = smul.addr %s2755, 128
          %s2757 = scalar_lea.hbm %s22, %s2756
          %s2758 = sshll.u32 %s2697, 4
          %s2759 = int_to_ptr.vmem [resolvable:$true] %s2758
          %2764 = dma.vmem_to_hbm [thread:$0]  %s2759, 2048, %s2757, %s2694, 128, 128, 8
        $region156: #{tpu_custom_call.1} parent=99 // pred_fallthru
          _
        // Predicated region
        $region157: #{tpu_custom_call.1} parent=99 // pred_check
          %p2765 = pneg %p621
        $region158: #{tpu_custom_call.1} parent=99 // pred_check_branch
          %2767 = sbr.rel (%p2765) target = $region160
        $region159: #{tpu_custom_call.1} parent=99 // pred_region
          %s2769 = ssub.s32 2048, 2048
          %2770 = vsyncadd %s2699, %s2769
          %s2771 = smul.addr %s60, 16
          %s2772 = smul.addr %s2771, 128
          %s2773 = scalar_lea.hbm %s23, %s2772
          %s2774 = sshll.u32 %s2702, 4
          %s2775 = int_to_ptr.vmem [resolvable:$true] %s2774
          %2780 = dma.vmem_to_hbm [thread:$0]  %s2775, 2048, %s2773, %s2699, 128, 128, 8
        $region160: #{tpu_custom_call.1} parent=99 // pred_fallthru
          _
        // Predicated region
        $region161: #{tpu_custom_call.1} parent=99 // pred_check
          %p2781 = pneg %p647
        $region162: #{tpu_custom_call.1} parent=99 // pred_check_branch
          %2783 = sbr.rel (%p2781) target = $region164
        $region163: #{tpu_custom_call.1} parent=99 // pred_region
          %s2785 = ssub.s32 16, 16
          %2786 = vsyncadd %s2704, %s2785
          %s2787 = smul.addr %s60, 16
          %s2788 = scalar_lea.hbm %s24, %s2787
          %s2790 = sshll.u32 %s2706, 4
          %s2791 = int_to_ptr.vmem [resolvable:$true] %s2790
          %2793 = dma.vmem_to_hbm [thread:$0]  %s2791, 16, %s2788, %s2704
        $region164: #{tpu_custom_call.1} parent=99 // pred_fallthru
          _
        // Predicated region
        $region165: #{tpu_custom_call.1} parent=99 // pred_check
          %p2794 = pneg %p673
        $region166: #{tpu_custom_call.1} parent=99 // pred_check_branch
          %2796 = sbr.rel (%p2794) target = $region168
        $region167: #{tpu_custom_call.1} parent=99 // pred_region
          %s2798 = ssub.s32 16, 16
          %2799 = vsyncadd %s2708, %s2798
          %s2800 = smul.addr %s60, 16
          %s2801 = scalar_lea.hbm %s25, %s2800
          %s2803 = sshll.u32 %s2710, 4
          %s2804 = int_to_ptr.vmem [resolvable:$true] %s2803
          %2806 = dma.vmem_to_hbm [thread:$0]  %s2804, 16, %s2801, %s2708
        $region168: #{tpu_custom_call.1} parent=99 // pred_fallthru
          _
        // Predicated region
        $region169: #{tpu_custom_call.1} parent=99 // pred_check
          %p2807 = pneg %p699
        $region170: #{tpu_custom_call.1} parent=99 // pred_check_branch
          %2809 = sbr.rel (%p2807) target = $region172
        $region171: #{tpu_custom_call.1} parent=99 // pred_region
          %s2811 = ssub.s32 16, 16
          %2812 = vsyncadd %s2712, %s2811
          %s2813 = smul.addr %s60, 16
          %s2814 = scalar_lea.hbm %s26, %s2813
          %s2816 = sshll.u32 %s2714, 4
          %s2817 = int_to_ptr.vmem [resolvable:$true] %s2816
          %2819 = dma.vmem_to_hbm [thread:$0]  %s2817, 16, %s2814, %s2712
        $region172: #{tpu_custom_call.1} parent=99 // pred_fallthru
          _
      $region100: #{tpu_custom_call.1} parent=5 // pred_fallthru
        _
      %p2820 = scmp.le.s32.totalorder 2, %s51
      // Predicated region
      $region173: #{tpu_custom_call.1} parent=5 // pred_check
        %p2821 = pneg %p2820
      $region174: #{tpu_custom_call.1} parent=5 // pred_check_branch
        %2823 = sbr.rel (%p2821) target = $region176
      $region175: #{tpu_custom_call.1} parent=5 // pred_region
        %s2824 = ssub.s32 %s51, 2
        // Predicated region
        $region177: #{tpu_custom_call.1} parent=175 // pred_check
          %p2825 = pneg %p549
        $region178: #{tpu_custom_call.1} parent=175 // pred_check_branch
          %2827 = sbr.rel (%p2825) target = $region180
        $region179: #{tpu_custom_call.1} parent=175 // pred_region
          %s2828 = sand.u32 %s534, 1
          %s2829 = scalar_lea.sflag [#allocation10], %s2828
          %s2830 = sand.u32 %s534, 1
          %s2831 = smul.addr %s2830, 48
          %s2832 = scalar_lea.vmem [#allocation25], %s2831
          %2833 = dma.done %s2829, 768
        $region180: #{tpu_custom_call.1} parent=175 // pred_fallthru
          _
        // Predicated region
        $region181: #{tpu_custom_call.1} parent=175 // pred_check
          %p2834 = pneg %p575
        $region182: #{tpu_custom_call.1} parent=175 // pred_check_branch
          %2836 = sbr.rel (%p2834) target = $region184
        $region183: #{tpu_custom_call.1} parent=175 // pred_region
          %s2837 = sand.u32 %s57, 1
          %s2838 = scalar_lea.sflag [#allocation27], %s2837
          %s2839 = sand.u32 %s560, 1
          %s2840 = smul.addr %s2839, 128
          %s2841 = scalar_lea.vmem [#allocation26], %s2840
          %2842 = dma.done %s2838, 2048
        $region184: #{tpu_custom_call.1} parent=175 // pred_fallthru
          _
        // Predicated region
        $region185: #{tpu_custom_call.1} parent=175 // pred_check
          %p2843 = pneg %p601
        $region186: #{tpu_custom_call.1} parent=175 // pred_check_branch
          %2845 = sbr.rel (%p2843) target = $region188
        $region187: #{tpu_custom_call.1} parent=175 // pred_region
          %s2846 = sand.u32 %s57, 1
          %s2847 = scalar_lea.sflag [#allocation27], %s2846
          %s2848 = sand.u32 %s586, 1
          %s2849 = smul.addr %s2848, 128
          %s2850 = scalar_lea.vmem [#allocation28], %s2849
          %2851 = dma.done %s2847, 2048
        $region188: #{tpu_custom_call.1} parent=175 // pred_fallthru
          _
        // Predicated region
        $region189: #{tpu_custom_call.1} parent=175 // pred_check
          %p2852 = pneg %p627
        $region190: #{tpu_custom_call.1} parent=175 // pred_check_branch
          %2854 = sbr.rel (%p2852) target = $region192
        $region191: #{tpu_custom_call.1} parent=175 // pred_region
          %s2855 = sand.u32 %s57, 1
          %s2856 = scalar_lea.sflag [#allocation30], %s2855
          %s2857 = sand.u32 %s612, 1
          %s2858 = smul.addr %s2857, 128
          %s2859 = scalar_lea.vmem [#allocation29], %s2858
          %2860 = dma.done %s2856, 2048
        $region192: #{tpu_custom_call.1} parent=175 // pred_fallthru
          _
        // Predicated region
        $region193: #{tpu_custom_call.1} parent=175 // pred_check
          %p2861 = pneg %p653
        $region194: #{tpu_custom_call.1} parent=175 // pred_check_branch
          %2863 = sbr.rel (%p2861) target = $region196
        $region195: #{tpu_custom_call.1} parent=175 // pred_region
          %s2864 = sand.u32 %s57, 1
          %s2865 = scalar_lea.sflag [#allocation30], %s2864
          %s2866 = sand.u32 %s638, 1
          %s2867 = scalar_lea.vmem [#allocation31], %s2866
          %2868 = dma.done %s2865, 16
        $region196: #{tpu_custom_call.1} parent=175 // pred_fallthru
          _
        // Predicated region
        $region197: #{tpu_custom_call.1} parent=175 // pred_check
          %p2869 = pneg %p679
        $region198: #{tpu_custom_call.1} parent=175 // pred_check_branch
          %2871 = sbr.rel (%p2869) target = $region200
        $region199: #{tpu_custom_call.1} parent=175 // pred_region
          %s2872 = sand.u32 %s57, 1
          %s2873 = scalar_lea.sflag [#allocation33], %s2872
          %s2874 = sand.u32 %s664, 1
          %s2875 = scalar_lea.vmem [#allocation32], %s2874
          %2876 = dma.done %s2873, 16
        $region200: #{tpu_custom_call.1} parent=175 // pred_fallthru
          _
        // Predicated region
        $region201: #{tpu_custom_call.1} parent=175 // pred_check
          %p2877 = pneg %p705
        $region202: #{tpu_custom_call.1} parent=175 // pred_check_branch
          %2879 = sbr.rel (%p2877) target = $region204
        $region203: #{tpu_custom_call.1} parent=175 // pred_region
          %s2880 = sand.u32 %s57, 1
          %s2881 = scalar_lea.sflag [#allocation33], %s2880
          %s2882 = sand.u32 %s690, 1
          %s2883 = scalar_lea.vmem [#allocation34], %s2882
          %2884 = dma.done %s2881, 16
        $region204: #{tpu_custom_call.1} parent=175 // pred_fallthru
          _
      $region176: #{tpu_custom_call.1} parent=5 // pred_fallthru
        _
    $region6: #{tpu_custom_call.1} parent=1 // loop_footer
      %s55 = sadd.s32 1, %s51
    $region7: #{tpu_custom_call.1} parent=1 // loop_footer_branch
      %50 = sbr.rel target = $region3
    $region8: #{tpu_custom_call.1} parent=1 // loop_exit
      _
    %2885 = vsyncpa [#allocation9], 1
    %s2886 = scalar_lea.sflag [#allocation9], 1
    %2887 = vsyncpa %s2886, 1
    %2888 = vsyncpa [#allocation12], 1
    %2889 = vsyncpa [#allocation15], 1
    %2890 = vsyncpa [#allocation18], 1
    %2891 = vsyncpa [#allocation21], 1
    %2892 = vsyncpa [#allocation24], 1
    %2893 = vsyncpa [#allocation10], 1
    %s2894 = scalar_lea.sflag [#allocation10], 1
    %2895 = vsyncpa %s2894, 1
    %2896 = vsyncpa [#allocation27], 1
    %s2897 = scalar_lea.sflag [#allocation27], 1
    %2898 = vsyncpa %s2897, 1
    %2899 = vsyncpa [#allocation30], 1
    %s2900 = scalar_lea.sflag [#allocation30], 1
    %2901 = vsyncpa %s2900, 1
    %2902 = vsyncpa [#allocation33], 1
    %s2903 = scalar_lea.sflag [#allocation33], 1
    %2904 = vsyncpa %s2903, 1

</llo_original>
